<compile_context>
chip_gen: v7x
topology: tpu7x:2x2x1
jax: 0.10.0
libtpu: 0.0.40
codegen_flags: <defaults>
</compile_context>

<pallas_src>
import math

import jax
import jax.numpy as jnp
from jax.experimental import pallas as pl
from jax.experimental.pallas import tpu as pltpu

# ---------------- config (small, consistent with BertConfig fields) ----------------
B = 2            # batch
S = 8            # sequence length
H = 32           # hidden_size
NH = 4           # num_attention_heads
HD = H // NH     # attention_head_size
INTER = 64       # intermediate_size
NLAYERS = 2      # num_hidden_layers
VOCAB = 32       # vocab_size
MAX_POS = 16     # max_position_embeddings
TYPE_VOCAB = 2   # type_vocab_size
EPS = 1e-12      # layer_norm_eps
CLIP = 2.5       # clip_val
INPUT_BITS = 8   # input_bits
INIT_RANGE = 0.02


# ---------------- in-kernel helpers ----------------
def _mm(a, w):
    # bf16 MXU matmul with f32 accumulation (weights are stored in bf16).
    return jnp.dot(a.astype(jnp.bfloat16), w.astype(jnp.bfloat16),
                   preferred_element_type=jnp.float32)


def _sym_quant(x, num_bits=INPUT_BITS, clip_val=CLIP):
    # SymQuantizer.apply(x, clip, bits, layerwise=True): clamp, symmetric scale from the
    # max-abs of the WHOLE tensor, round, dequantize.  Divides replaced by an EUP approx
    # reciprocal + multiplies.
    levels = float(2 ** (num_bits - 1) - 1)
    x = jnp.clip(x, -clip_val, clip_val)
    max_abs = jnp.maximum(jnp.max(jnp.abs(x)), 1e-8)                 # layerwise scalar
    inv_max = pl.reciprocal(jnp.full((1, 1), max_abs), approx=True)  # (1,1) on EUP
    q = jnp.round(x * (levels * inv_max))
    return q * (max_abs * (1.0 / levels))


def _layer_norm(x, g, b, eps=EPS):
    mu = jnp.mean(x, axis=-1, keepdims=True)
    var = jnp.mean(jnp.square(x - mu), axis=-1, keepdims=True)
    return (x - mu) * jax.lax.rsqrt(var + eps) * g + b


def _gelu(x):
    return x * 0.5 * (1.0 + jax.lax.erf(x * (1.0 / math.sqrt(2.0))))


def _softmax(x):
    m = jnp.max(x, axis=-1, keepdims=True)
    e = jnp.exp(x - m)
    return e * pl.reciprocal(jnp.sum(e, axis=-1, keepdims=True), approx=True)


def _split_heads(x):
    # [B*S, H] -> [B*NH, S, HD]   (== transpose_for_scores, batch & heads folded)
    x4 = x.reshape(B, S, NH, HD)
    heads = [x4[:, :, n, :] for n in range(NH)]          # NH x [B, S, HD]  (slices only)
    return jnp.stack(heads, axis=1).reshape(B * NH, S, HD)


def _merge_heads(x):
    # [B*NH, S, HD] -> [B*S, H]   (== permute(0,2,1,3).view(B, S, H), flattened)
    x4 = x.reshape(B, NH, S, HD)
    heads = [x4[:, n, :, :] for n in range(NH)]          # NH x [B, S, HD]
    return jnp.concatenate(heads, axis=-1).reshape(B * S, H)


# ---------------- fused whole-model kernel ----------------
def bert_encoder_kernel(emb_ref, mask_ref, embg_ref, embb_ref,
                        wqkv_ref, bqkv_ref, wo_ref, bo_ref, ln1g_ref, ln1b_ref,
                        wi_ref, bi_ref, wo2_ref, bo2_ref, ln2g_ref, ln2b_ref,
                        poolw_ref, poolb_ref,
                        emb_out_ref, hid_ref, scores_ref, probs_ref, ctx_ref,
                        attnout_ref, selfhs_ref, pooled_ref,
                        h_scr):
    l = pl.program_id(0)

    # ---- grid step 0: embeddings = LayerNorm(word + pos + type), seed hidden scratch
    @pl.when(l == 0)
    def _():
        e = _layer_norm(emb_ref[...].reshape(B * S, H), embg_ref[...], embb_ref[...])
        emb_out_ref[...] = e.reshape(B, S, H)
        h_scr[...] = e

    h = h_scr[...]                                       # [B*S, H] f32 (carried in VMEM)
    mask = mask_ref[...]                                 # [B, S], already (1-m)*-10000

    # ---- self attention: fused QKV projection
    qkv = _mm(h, wqkv_ref[0]) + bqkv_ref[0]              # [B*S, 3H]
    q = _split_heads(qkv[:, 0:H])                        # [B*NH, S, HD]
    k = _split_heads(qkv[:, H:2 * H])
    v = _split_heads(qkv[:, 2 * H:3 * H])

    q = _sym_quant(q)                                    # layerwise activation fake-quant
    k = _sym_quant(k)

    scores = jnp.einsum('bqd,bkd->bqk',
                        q.astype(jnp.bfloat16), k.astype(jnp.bfloat16),
                        preferred_element_type=jnp.float32)
    scores = scores.reshape(B, NH, S, S) * (1.0 / math.sqrt(HD)) + mask[:, None, None, :]
    scores_ref[0] = scores                               # attention_scores

    probs = _softmax(scores)
    probs_ref[0] = probs                                 # st_attention_probs

    probs_q = _sym_quant(probs).reshape(B * NH, S, S)
    v_q = _sym_quant(v)
    ctx = jnp.einsum('bqk,bkd->bqd',
                     probs_q.astype(jnp.bfloat16), v_q.astype(jnp.bfloat16),
                     preferred_element_type=jnp.float32)  # [B*NH, S, HD]
    ctx_ref[0] = ctx.reshape(B, NH, S, HD)               # context_layer_

    ctx2d = _merge_heads(ctx)                            # [B*S, H]

    # ---- attention output projection + residual LayerNorm
    so = _mm(ctx2d, wo_ref[0]) + bo_ref[0]               # [B*S, H]
    selfhs_ref[0] = so.reshape(B, S, H)                  # self_output_hs
    attn_out = _layer_norm(so + h, ln1g_ref[0], ln1b_ref[0])
    attnout_ref[0] = attn_out.reshape(B, S, H)           # attention_output

    # ---- feed-forward + residual LayerNorm
    inter = _gelu(_mm(attn_out, wi_ref[0]) + bi_ref[0])
    ff = _mm(inter, wo2_ref[0]) + bo2_ref[0]
    h_new = _layer_norm(ff + attn_out, ln2g_ref[0], ln2b_ref[0])

    hid_ref[0] = h_new.reshape(B, S, H)                  # layer_output
    h_scr[...] = h_new

    # ---- pooler on the last layer's [CLS] token
    @pl.when(l == NLAYERS - 1)
    def _():
        cls = h_new.reshape(B, S, H)[:, 0, :]            # [B, H]
        pooled_ref[...] = jnp.tanh(_mm(cls, poolw_ref[...]) + poolb_ref[...])


# ---------------- pallas_call wrapper ----------------
def run_bert(emb_sum, mask, p):
    L = NLAYERS
    c2 = lambda l: (0, 0)
    c3 = lambda l: (0, 0, 0)
    l3 = lambda l: (l, 0, 0)
    l4 = lambda l: (l, 0, 0, 0)
    l5 = lambda l: (l, 0, 0, 0, 0)

    in_specs = [
        pl.BlockSpec((B, S, H), c3),            # emb_sum (word + pos + type)
        pl.BlockSpec((B, S), c2),               # extended attention mask
        pl.BlockSpec((1, H), c2),               # emb LN gamma
        pl.BlockSpec((1, H), c2),               # emb LN beta
        pl.BlockSpec((1, H, 3 * H), l3),        # wqkv   (stacked per layer, bf16)
        pl.BlockSpec((1, 1, 3 * H), l3),        # bqkv
        pl.BlockSpec((1, H, H), l3),            # wo
        pl.BlockSpec((1, 1, H), l3),            # bo
        pl.BlockSpec((1, 1, H), l3),            # ln1 gamma
        pl.BlockSpec((1, 1, H), l3),            # ln1 beta
        pl.BlockSpec((1, H, INTER), l3),        # wi
        pl.BlockSpec((1, 1, INTER), l3),        # bi
        pl.BlockSpec((1, INTER, H), l3),        # wo2
        pl.BlockSpec((1, 1, H), l3),            # bo2
        pl.BlockSpec((1, 1, H), l3),            # ln2 gamma
        pl.BlockSpec((1, 1, H), l3),            # ln2 beta
        pl.BlockSpec((H, H), c2),               # pooler weight (bf16)
        pl.BlockSpec((1, H), c2),               # pooler bias
    ]
    out_specs = (
        pl.BlockSpec((B, S, H), c3),                      # embedding output
        pl.BlockSpec((1, B, S, H), l4),                   # hidden states per layer
        pl.BlockSpec((1, B, NH, S, S), l5),               # attention_scores
        pl.BlockSpec((1, B, NH, S, S), l5),               # attention_probs
        pl.BlockSpec((1, B, NH, S, HD), l5),              # context_layer_
        pl.BlockSpec((1, B, S, H), l4),                   # attention_output
        pl.BlockSpec((1, B, S, H), l4),                   # self_output_hs
        pl.BlockSpec((B, H), c2),                         # pooled output
    )
    out_shapes = (
        jax.ShapeDtypeStruct((B, S, H), jnp.float32),
        jax.ShapeDtypeStruct((L, B, S, H), jnp.float32),
        jax.ShapeDtypeStruct((L, B, NH, S, S), jnp.float32),
        jax.ShapeDtypeStruct((L, B, NH, S, S), jnp.float32),
        jax.ShapeDtypeStruct((L, B, NH, S, HD), jnp.float32),
        jax.ShapeDtypeStruct((L, B, S, H), jnp.float32),
        jax.ShapeDtypeStruct((L, B, S, H), jnp.float32),
        jax.ShapeDtypeStruct((B, H), jnp.float32),
    )
    return pl.pallas_call(
        bert_encoder_kernel,
        grid=(L,),
        in_specs=in_specs,
        out_specs=out_specs,
        out_shape=out_shapes,
        scratch_shapes=[pltpu.VMEM((B * S, H), jnp.float32)],   # carried hidden state
        # layer axis is a sequential dependency -> "arbitrary".  VMEM use here is tiny;
        # at real BERT sizes set vmem_limit_bytes and tile the FFN matmuls over K/N.
        compiler_params=pltpu.CompilerParams(dimension_semantics=("arbitrary",)),
    )(emb_sum, mask, p['emb_ln_g'], p['emb_ln_b'],
      p['wqkv'], p['bqkv'], p['wo'], p['bo'], p['ln1g'], p['ln1b'],
      p['wi'], p['bi'], p['wo2'], p['bo2'], p['ln2g'], p['ln2b'],
      p['pool_w'], p['pool_b'])


# ---------------- parameter init (deterministic, matches init_bert_weights) ----------------
def init_params(key):
    keys = iter(jax.random.split(key, 16))

    def nrm(shape, dtype=jnp.float32):
        return (INIT_RANGE * jax.random.normal(next(keys), shape)).astype(dtype)

    L = NLAYERS
    return {
        'word_emb': nrm((VOCAB, H)),
        'pos_emb': nrm((MAX_POS, H)),
        'type_emb': nrm((TYPE_VOCAB, H)),
        'emb_ln_g': jnp.ones((1, H), jnp.float32),
        'emb_ln_b': jnp.zeros((1, H), jnp.float32),
        # per-layer weights stacked on a leading layer axis; matmul weights in bf16
        'wqkv': nrm((L, H, 3 * H), jnp.bfloat16),
        'bqkv': jnp.zeros((L, 1, 3 * H), jnp.float32),
        'wo':   nrm((L, H, H), jnp.bfloat16),
        'bo':   jnp.zeros((L, 1, H), jnp.float32),
        'ln1g': jnp.ones((L, 1, H), jnp.float32),
        'ln1b': jnp.zeros((L, 1, H), jnp.float32),
        'wi':   nrm((L, H, INTER), jnp.bfloat16),
        'bi':   jnp.zeros((L, 1, INTER), jnp.float32),
        'wo2':  nrm((L, INTER, H), jnp.bfloat16),
        'bo2':  jnp.zeros((L, 1, H), jnp.float32),
        'ln2g': jnp.ones((L, 1, H), jnp.float32),
        'ln2b': jnp.zeros((L, 1, H), jnp.float32),
        'pool_w': nrm((H, H), jnp.bfloat16),
        'pool_b': jnp.zeros((1, H), jnp.float32),
    }


# ---------------- BertModel.forward ----------------
def bert_model_forward(params, input_ids, token_type_ids=None, attention_mask=None):
    if attention_mask is None:
        attention_mask = jnp.ones_like(input_ids)
    if token_type_ids is None:
        token_type_ids = jnp.zeros_like(input_ids)

    # extended_attention_mask: (1 - mask) * -10000, broadcast over heads/query dim in-kernel
    ext_mask = (1.0 - attention_mask.astype(jnp.float32)) * -10000.0   # [B, S]

    # Embedding gathers stay in plain JAX (tiny); sum + LayerNorm happen inside the kernel.
    # TODO(synk): at real sequence lengths move the gathers in-kernel via scalar prefetch.
    we = jnp.take(params['word_emb'], input_ids, axis=0)
    pos_ids = jnp.arange(S, dtype=jnp.int32)
    pe = jnp.broadcast_to(jnp.take(params['pos_emb'], pos_ids, axis=0), (B, S, H))
    te = jnp.take(params['type_emb'], token_type_ids, axis=0)
    emb_sum = (we + pe + te).astype(jnp.float32)

    (emb0, hids, scores, probs, ctx, attn_out, self_hs, pooled) = run_bert(
        emb_sum, ext_mask, params)

    encoded_layers = [emb0] + [hids[i] for i in range(NLAYERS)]
    all_scores = [scores[i] for i in range(NLAYERS)]
    all_probs = [probs[i] for i in range(NLAYERS)]
    all_blocks = [(ctx[i], attn_out[i], self_hs[i]) for i in range(NLAYERS)]
    return (encoded_layers, all_scores, all_probs, all_blocks, pooled)


if __name__ == "__main__":
    key = jax.random.PRNGKey(0)
    pkey, ikey = jax.random.split(key)
    params = init_params(pkey)

    input_ids = jax.random.randint(ikey, (B, S), 1, VOCAB, dtype=jnp.int32)
    token_type_ids = jnp.zeros((B, S), jnp.int32)
    attention_mask = jnp.ones((B, S), jnp.int32)

    fwd = jax.jit(bert_model_forward)
    outputs = fwd(params, input_ids, token_type_ids, attention_mask)
    jax.block_until_ready(outputs)
    print("KERNEL_OK")
</pallas_src>

<mosaic_0001>
module attributes {stable_mosaic.version = 11 : i64} {
  func.func @bert_encoder_kernel(%arg0: i32, %arg1: memref<2x8x32xf32, #tpu.memory_space<vmem>>, %arg2: memref<2x8xf32, #tpu.memory_space<vmem>>, %arg3: memref<1x32xf32, #tpu.memory_space<vmem>>, %arg4: memref<1x32xf32, #tpu.memory_space<vmem>>, %arg5: memref<1x32x96xbf16, #tpu.memory_space<vmem>>, %arg6: memref<1x1x96xf32, #tpu.memory_space<vmem>>, %arg7: memref<1x32x32xbf16, #tpu.memory_space<vmem>>, %arg8: memref<1x1x32xf32, #tpu.memory_space<vmem>>, %arg9: memref<1x1x32xf32, #tpu.memory_space<vmem>>, %arg10: memref<1x1x32xf32, #tpu.memory_space<vmem>>, %arg11: memref<1x32x64xbf16, #tpu.memory_space<vmem>>, %arg12: memref<1x1x64xf32, #tpu.memory_space<vmem>>, %arg13: memref<1x64x32xbf16, #tpu.memory_space<vmem>>, %arg14: memref<1x1x32xf32, #tpu.memory_space<vmem>>, %arg15: memref<1x1x32xf32, #tpu.memory_space<vmem>>, %arg16: memref<1x1x32xf32, #tpu.memory_space<vmem>>, %arg17: memref<32x32xbf16, #tpu.memory_space<vmem>>, %arg18: memref<1x32xf32, #tpu.memory_space<vmem>>, %arg19: memref<2x8x32xf32, #tpu.memory_space<vmem>>, %arg20: memref<1x2x8x32xf32, #tpu.memory_space<vmem>>, %arg21: memref<1x2x4x8x8xf32, #tpu.memory_space<vmem>>, %arg22: memref<1x2x4x8x8xf32, #tpu.memory_space<vmem>>, %arg23: memref<1x2x4x8x8xf32, #tpu.memory_space<vmem>>, %arg24: memref<1x2x8x32xf32, #tpu.memory_space<vmem>>, %arg25: memref<1x2x8x32xf32, #tpu.memory_space<vmem>>, %arg26: memref<2x32xf32, #tpu.memory_space<vmem>>, %arg27: memref<16x32xf32, #tpu.memory_space<vmem>>) attributes {dimension_semantics = [#tpu.dimension_semantics<arbitrary>], iteration_bounds = array<i64: 2>, scalar_prefetch = 0 : i64, scratch_operands = 1 : i64, tpu.core_type = #tpu.core_type<tc>, window_params = [{pipeline_mode = #tpu.pipeline_mode<synchronous>, transform_indices = @transform_0, window_bounds = array<i64: 2, 8, 32>}, {pipeline_mode = #tpu.pipeline_mode<synchronous>, transform_indices = @transform_1, window_bounds = array<i64: 2, 8>}, {pipeline_mode = #tpu.pipeline_mode<synchronous>, transform_indices = @transform_2, window_bounds = array<i64: 1, 32>}, {pipeline_mode = #tpu.pipeline_mode<synchronous>, transform_indices = @transform_3, window_bounds = array<i64: 1, 32>}, {transform_indices = @transform_4, window_bounds = array<i64: 1, 32, 96>}, {transform_indices = @transform_5, window_bounds = array<i64: 1, 1, 96>}, {transform_indices = @transform_6, window_bounds = array<i64: 1, 32, 32>}, {transform_indices = @transform_7, window_bounds = array<i64: 1, 1, 32>}, {transform_indices = @transform_8, window_bounds = array<i64: 1, 1, 32>}, {transform_indices = @transform_9, window_bounds = array<i64: 1, 1, 32>}, {transform_indices = @transform_10, window_bounds = array<i64: 1, 32, 64>}, {transform_indices = @transform_11, window_bounds = array<i64: 1, 1, 64>}, {transform_indices = @transform_12, window_bounds = array<i64: 1, 64, 32>}, {transform_indices = @transform_13, window_bounds = array<i64: 1, 1, 32>}, {transform_indices = @transform_14, window_bounds = array<i64: 1, 1, 32>}, {transform_indices = @transform_15, window_bounds = array<i64: 1, 1, 32>}, {pipeline_mode = #tpu.pipeline_mode<synchronous>, transform_indices = @transform_16, window_bounds = array<i64: 32, 32>}, {pipeline_mode = #tpu.pipeline_mode<synchronous>, transform_indices = @transform_17, window_bounds = array<i64: 1, 32>}, {pipeline_mode = #tpu.pipeline_mode<synchronous>, transform_indices = @transform_18, window_bounds = array<i64: 2, 8, 32>}, {transform_indices = @transform_19, window_bounds = array<i64: 1, 2, 8, 32>}, {transform_indices = @transform_20, window_bounds = array<i64: 1, 2, 4, 8, 8>}, {transform_indices = @transform_21, window_bounds = array<i64: 1, 2, 4, 8, 8>}, {transform_indices = @transform_22, window_bounds = array<i64: 1, 2, 4, 8, 8>}, {transform_indices = @transform_23, window_bounds = array<i64: 1, 2, 8, 32>}, {transform_indices = @transform_24, window_bounds = array<i64: 1, 2, 8, 32>}, {pipeline_mode = #tpu.pipeline_mode<synchronous>, transform_indices = @transform_25, window_bounds = array<i64: 2, 32>}]} {
    %c0_i32 = arith.constant 0 : i32
    %0 = arith.cmpi eq, %arg0, %c0_i32 : i32
    %1 = arith.extui %0 : i1 to i32
    %c0_i32_0 = arith.constant 0 : i32
    %2 = arith.cmpi ne, %1, %c0_i32_0 : i32
    scf.if %2 {
      %c0_115 = arith.constant 0 : index
      %c0_116 = arith.constant 0 : index
      %c0_117 = arith.constant 0 : index
      %291 = vector.load %arg1[%c0_115, %c0_116, %c0_117] : memref<2x8x32xf32, #tpu.memory_space<vmem>>, vector<2x8x32xf32>
      %292 = vector.shape_cast %291 : vector<2x8x32xf32> to vector<16x32xf32>
      %c0_118 = arith.constant 0 : index
      %c0_119 = arith.constant 0 : index
      %293 = vector.load %arg3[%c0_118, %c0_119] : memref<1x32xf32, #tpu.memory_space<vmem>>, vector<1x32xf32>
      %c0_120 = arith.constant 0 : index
      %c0_121 = arith.constant 0 : index
      %294 = vector.load %arg4[%c0_120, %c0_121] : memref<1x32xf32, #tpu.memory_space<vmem>>, vector<1x32xf32>
      %cst_122 = arith.constant dense<0.000000e+00> : vector<16xf32>
      %295 = vector.multi_reduction <add>, %292, %cst_122 [1] : vector<16x32xf32> to vector<16xf32>
      %296 = vector.shape_cast %295 : vector<16xf32> to vector<16x1xf32>
      %cst_123 = arith.constant 3.200000e+01 : f32
      %297 = vector.broadcast %cst_123 : f32 to vector<16x1xf32>
      %298 = arith.divf %296, %297 : vector<16x1xf32>
      %299 = vector.broadcast %298 : vector<16x1xf32> to vector<16x32xf32>
      %300 = arith.subf %292, %299 : vector<16x32xf32>
      %301 = arith.mulf %300, %300 : vector<16x32xf32>
      %cst_124 = arith.constant dense<0.000000e+00> : vector<16xf32>
      %302 = vector.multi_reduction <add>, %301, %cst_124 [1] : vector<16x32xf32> to vector<16xf32>
      %303 = vector.shape_cast %302 : vector<16xf32> to vector<16x1xf32>
      %cst_125 = arith.constant 3.200000e+01 : f32
      %304 = vector.broadcast %cst_125 : f32 to vector<16x1xf32>
      %305 = arith.divf %303, %304 : vector<16x1xf32>
      %306 = vector.broadcast %298 : vector<16x1xf32> to vector<16x32xf32>
      %307 = arith.subf %292, %306 : vector<16x32xf32>
      %cst_126 = arith.constant 9.99999996E-13 : f32
      %308 = vector.broadcast %cst_126 : f32 to vector<16x1xf32>
      %309 = arith.addf %305, %308 : vector<16x1xf32>
      %310 = math.rsqrt %309 : vector<16x1xf32>
      %311 = vector.broadcast %310 : vector<16x1xf32> to vector<16x32xf32>
      %312 = arith.mulf %307, %311 : vector<16x32xf32>
      %313 = vector.broadcast %293 : vector<1x32xf32> to vector<16x32xf32>
      %314 = arith.mulf %312, %313 : vector<16x32xf32>
      %315 = vector.broadcast %294 : vector<1x32xf32> to vector<16x32xf32>
      %316 = arith.addf %314, %315 : vector<16x32xf32>
      %317 = vector.shape_cast %316 : vector<16x32xf32> to vector<2x8x32xf32>
      %c0_127 = arith.constant 0 : index
      %c0_128 = arith.constant 0 : index
      %c0_129 = arith.constant 0 : index
      %318 = vector.load %arg19[%c0_127, %c0_128, %c0_129] : memref<2x8x32xf32, #tpu.memory_space<vmem>>, vector<2x8x32xf32>
      tpu.vector_store %arg19[%c0_127, %c0_128, %c0_129], %317 {strides = array<i32>} : memref<2x8x32xf32, #tpu.memory_space<vmem>>, vector<2x8x32xf32>,
      %c0_130 = arith.constant 0 : index
      %c0_131 = arith.constant 0 : index
      %319 = vector.load %arg27[%c0_130, %c0_131] : memref<16x32xf32, #tpu.memory_space<vmem>>, vector<16x32xf32>
      tpu.vector_store %arg27[%c0_130, %c0_131], %316 {strides = array<i32>} : memref<16x32xf32, #tpu.memory_space<vmem>>, vector<16x32xf32>,
    } else {
    }
    %c0 = arith.constant 0 : index
    %c0_1 = arith.constant 0 : index
    %3 = vector.load %arg27[%c0, %c0_1] : memref<16x32xf32, #tpu.memory_space<vmem>>, vector<16x32xf32>
    %c0_2 = arith.constant 0 : index
    %c0_3 = arith.constant 0 : index
    %4 = vector.load %arg2[%c0_2, %c0_3] : memref<2x8xf32, #tpu.memory_space<vmem>>, vector<2x8xf32>
    %c0_4 = arith.constant 0 : index
    %c0_5 = arith.constant 0 : index
    %c0_6 = arith.constant 0 : index
    %5 = vector.load %arg5[%c0_4, %c0_5, %c0_6] : memref<1x32x96xbf16, #tpu.memory_space<vmem>>, vector<1x32x96xbf16>
    %6 = vector.shape_cast %5 : vector<1x32x96xbf16> to vector<32x96xbf16>
    %7 = arith.truncf %3 : vector<16x32xf32> to vector<16x32xbf16>
    %cst = arith.constant dense<0.000000e+00> : vector<16x96xf32>
    %8 = tpu.matmul %7, %6, %cst {dimension_numbers = #tpu.dot_dimension_numbers<[1], [0], [0], [1], [0, 0, 1, 1], [], []>} : vector<16x32xbf16>, vector<32x96xbf16>, vector<16x96xf32> -> vector<16x96xf32>
    %c0_7 = arith.constant 0 : index
    %c0_8 = arith.constant 0 : index
    %c0_9 = arith.constant 0 : index
    %9 = vector.load %arg6[%c0_7, %c0_8, %c0_9] : memref<1x1x96xf32, #tpu.memory_space<vmem>>, vector<1x1x96xf32>
    %10 = vector.shape_cast %9 : vector<1x1x96xf32> to vector<1x96xf32>
    %11 = vector.broadcast %10 : vector<1x96xf32> to vector<16x96xf32>
    %12 = arith.addf %8, %11 : vector<16x96xf32>
    %13 = vector.extract_strided_slice %12 {offsets = [0, 0], sizes = [16, 32], strides = [1, 1]} : vector<16x96xf32> to vector<16x32xf32>
    %14 = vector.shape_cast %13 : vector<16x32xf32> to vector<2x8x4x8xf32>
    %15 = vector.extract_strided_slice %14 {offsets = [0, 0, 0, 0], sizes = [2, 8, 1, 8], strides = [1, 1, 1, 1]} : vector<2x8x4x8xf32> to vector<2x8x1x8xf32>
    %16 = vector.shape_cast %15 : vector<2x8x1x8xf32> to vector<2x8x8xf32>
    %17 = vector.extract_strided_slice %14 {offsets = [0, 0, 1, 0], sizes = [2, 8, 1, 8], strides = [1, 1, 1, 1]} : vector<2x8x4x8xf32> to vector<2x8x1x8xf32>
    %18 = vector.shape_cast %17 : vector<2x8x1x8xf32> to vector<2x8x8xf32>
    %19 = vector.extract_strided_slice %14 {offsets = [0, 0, 2, 0], sizes = [2, 8, 1, 8], strides = [1, 1, 1, 1]} : vector<2x8x4x8xf32> to vector<2x8x1x8xf32>
    %20 = vector.shape_cast %19 : vector<2x8x1x8xf32> to vector<2x8x8xf32>
    %21 = vector.extract_strided_slice %14 {offsets = [0, 0, 3, 0], sizes = [2, 8, 1, 8], strides = [1, 1, 1, 1]} : vector<2x8x4x8xf32> to vector<2x8x1x8xf32>
    %22 = vector.shape_cast %21 : vector<2x8x1x8xf32> to vector<2x8x8xf32>
    %23 = vector.shape_cast %16 : vector<2x8x8xf32> to vector<2x1x8x8xf32>
    %24 = vector.shape_cast %18 : vector<2x8x8xf32> to vector<2x1x8x8xf32>
    %25 = vector.shape_cast %20 : vector<2x8x8xf32> to vector<2x1x8x8xf32>
    %26 = vector.shape_cast %22 : vector<2x8x8xf32> to vector<2x1x8x8xf32>
    %27 = tpu.concatenate %23, %24, %25, %26 in 1 : vector<2x1x8x8xf32>, vector<2x1x8x8xf32>, vector<2x1x8x8xf32>, vector<2x1x8x8xf32> -> vector<2x4x8x8xf32>
    %28 = vector.shape_cast %27 : vector<2x4x8x8xf32> to vector<8x8x8xf32>
    %29 = vector.extract_strided_slice %12 {offsets = [0, 32], sizes = [16, 32], strides = [1, 1]} : vector<16x96xf32> to vector<16x32xf32>
    %30 = vector.shape_cast %29 : vector<16x32xf32> to vector<2x8x4x8xf32>
    %31 = vector.extract_strided_slice %30 {offsets = [0, 0, 0, 0], sizes = [2, 8, 1, 8], strides = [1, 1, 1, 1]} : vector<2x8x4x8xf32> to vector<2x8x1x8xf32>
    %32 = vector.shape_cast %31 : vector<2x8x1x8xf32> to vector<2x8x8xf32>
    %33 = vector.extract_strided_slice %30 {offsets = [0, 0, 1, 0], sizes = [2, 8, 1, 8], strides = [1, 1, 1, 1]} : vector<2x8x4x8xf32> to vector<2x8x1x8xf32>
    %34 = vector.shape_cast %33 : vector<2x8x1x8xf32> to vector<2x8x8xf32>
    %35 = vector.extract_strided_slice %30 {offsets = [0, 0, 2, 0], sizes = [2, 8, 1, 8], strides = [1, 1, 1, 1]} : vector<2x8x4x8xf32> to vector<2x8x1x8xf32>
    %36 = vector.shape_cast %35 : vector<2x8x1x8xf32> to vector<2x8x8xf32>
    %37 = vector.extract_strided_slice %30 {offsets = [0, 0, 3, 0], sizes = [2, 8, 1, 8], strides = [1, 1, 1, 1]} : vector<2x8x4x8xf32> to vector<2x8x1x8xf32>
    %38 = vector.shape_cast %37 : vector<2x8x1x8xf32> to vector<2x8x8xf32>
    %39 = vector.shape_cast %32 : vector<2x8x8xf32> to vector<2x1x8x8xf32>
    %40 = vector.shape_cast %34 : vector<2x8x8xf32> to vector<2x1x8x8xf32>
    %41 = vector.shape_cast %36 : vector<2x8x8xf32> to vector<2x1x8x8xf32>
    %42 = vector.shape_cast %38 : vector<2x8x8xf32> to vector<2x1x8x8xf32>
    %43 = tpu.concatenate %39, %40, %41, %42 in 1 : vector<2x1x8x8xf32>, vector<2x1x8x8xf32>, vector<2x1x8x8xf32>, vector<2x1x8x8xf32> -> vector<2x4x8x8xf32>
    %44 = vector.shape_cast %43 : vector<2x4x8x8xf32> to vector<8x8x8xf32>
    %45 = vector.extract_strided_slice %12 {offsets = [0, 64], sizes = [16, 32], strides = [1, 1]} : vector<16x96xf32> to vector<16x32xf32>
    %46 = vector.shape_cast %45 : vector<16x32xf32> to vector<2x8x4x8xf32>
    %47 = vector.extract_strided_slice %46 {offsets = [0, 0, 0, 0], sizes = [2, 8, 1, 8], strides = [1, 1, 1, 1]} : vector<2x8x4x8xf32> to vector<2x8x1x8xf32>
    %48 = vector.shape_cast %47 : vector<2x8x1x8xf32> to vector<2x8x8xf32>
    %49 = vector.extract_strided_slice %46 {offsets = [0, 0, 1, 0], sizes = [2, 8, 1, 8], strides = [1, 1, 1, 1]} : vector<2x8x4x8xf32> to vector<2x8x1x8xf32>
    %50 = vector.shape_cast %49 : vector<2x8x1x8xf32> to vector<2x8x8xf32>
    %51 = vector.extract_strided_slice %46 {offsets = [0, 0, 2, 0], sizes = [2, 8, 1, 8], strides = [1, 1, 1, 1]} : vector<2x8x4x8xf32> to vector<2x8x1x8xf32>
    %52 = vector.shape_cast %51 : vector<2x8x1x8xf32> to vector<2x8x8xf32>
    %53 = vector.extract_strided_slice %46 {offsets = [0, 0, 3, 0], sizes = [2, 8, 1, 8], strides = [1, 1, 1, 1]} : vector<2x8x4x8xf32> to vector<2x8x1x8xf32>
    %54 = vector.shape_cast %53 : vector<2x8x1x8xf32> to vector<2x8x8xf32>
    %55 = vector.shape_cast %48 : vector<2x8x8xf32> to vector<2x1x8x8xf32>
    %56 = vector.shape_cast %50 : vector<2x8x8xf32> to vector<2x1x8x8xf32>
    %57 = vector.shape_cast %52 : vector<2x8x8xf32> to vector<2x1x8x8xf32>
    %58 = vector.shape_cast %54 : vector<2x8x8xf32> to vector<2x1x8x8xf32>
    %59 = tpu.concatenate %55, %56, %57, %58 in 1 : vector<2x1x8x8xf32>, vector<2x1x8x8xf32>, vector<2x1x8x8xf32>, vector<2x1x8x8xf32> -> vector<2x4x8x8xf32>
    %60 = vector.shape_cast %59 : vector<2x4x8x8xf32> to vector<8x8x8xf32>
    %cst_10 = arith.constant -2.500000e+00 : f32
    %cst_11 = arith.constant 2.500000e+00 : f32
    %61 = vector.broadcast %cst_10 : f32 to vector<8x8x8xf32>
    %62 = arith.maximumf %61, %28 : vector<8x8x8xf32>
    %63 = vector.broadcast %cst_11 : f32 to vector<8x8x8xf32>
    %64 = arith.minimumf %63, %62 : vector<8x8x8xf32>
    %65 = math.absf %64 : vector<8x8x8xf32>
    %66 = vector.shape_cast %65 : vector<8x8x8xf32> to vector<1x8x8x8xf32>
    %cst_12 = arith.constant dense<0xFF800000> : vector<1xf32>
    %67 = vector.multi_reduction <maximumf>, %66, %cst_12 [1, 2, 3] : vector<1x8x8x8xf32> to vector<1xf32>
    %68 = vector.shape_cast %67 : vector<1xf32> to vector<1x1x1x1xf32>
    %69 = vector.extract %68[0, 0, 0, 0] : f32 from vector<1x1x1x1xf32>
    %cst_13 = arith.constant 9.99999993E-9 : f32
    %70 = arith.maximumf %69, %cst_13 : f32
    %71 = vector.broadcast %70 : f32 to vector<1x1xf32>
    %72 = tpu.reciprocal %71 {approx = true} : vector<1x1xf32> -> vector<1x1xf32>
    %cst_14 = arith.constant 1.270000e+02 : f32
    %73 = vector.broadcast %cst_14 : f32 to vector<1x1xf32>
    %74 = arith.mulf %73, %72 : vector<1x1xf32>
    %75 = vector.shape_cast %74 : vector<1x1xf32> to vector<1x1x1xf32>
    %76 = vector.broadcast %75 : vector<1x1x1xf32> to vector<8x8x8xf32>
    %77 = arith.mulf %64, %76 : vector<8x8x8xf32>
    %78 = math.roundeven %77 : vector<8x8x8xf32>
    %cst_15 = arith.constant 0.00787401571 : f32
    %79 = arith.mulf %70, %cst_15 : f32
    %80 = vector.broadcast %79 : f32 to vector<8x8x8xf32>
    %81 = arith.mulf %78, %80 : vector<8x8x8xf32>
    %cst_16 = arith.constant -2.500000e+00 : f32
    %cst_17 = arith.constant 2.500000e+00 : f32
    %82 = vector.broadcast %cst_16 : f32 to vector<8x8x8xf32>
    %83 = arith.maximumf %82, %44 : vector<8x8x8xf32>
    %84 = vector.broadcast %cst_17 : f32 to vector<8x8x8xf32>
    %85 = arith.minimumf %84, %83 : vector<8x8x8xf32>
    %86 = math.absf %85 : vector<8x8x8xf32>
    %87 = vector.shape_cast %86 : vector<8x8x8xf32> to vector<1x8x8x8xf32>
    %cst_18 = arith.constant dense<0xFF800000> : vector<1xf32>
    %88 = vector.multi_reduction <maximumf>, %87, %cst_18 [1, 2, 3] : vector<1x8x8x8xf32> to vector<1xf32>
    %89 = vector.shape_cast %88 : vector<1xf32> to vector<1x1x1x1xf32>
    %90 = vector.extract %89[0, 0, 0, 0] : f32 from vector<1x1x1x1xf32>
    %cst_19 = arith.constant 9.99999993E-9 : f32
    %91 = arith.maximumf %90, %cst_19 : f32
    %92 = vector.broadcast %91 : f32 to vector<1x1xf32>
    %93 = tpu.reciprocal %92 {approx = true} : vector<1x1xf32> -> vector<1x1xf32>
    %cst_20 = arith.constant 1.270000e+02 : f32
    %94 = vector.broadcast %cst_20 : f32 to vector<1x1xf32>
    %95 = arith.mulf %94, %93 : vector<1x1xf32>
    %96 = vector.shape_cast %95 : vector<1x1xf32> to vector<1x1x1xf32>
    %97 = vector.broadcast %96 : vector<1x1x1xf32> to vector<8x8x8xf32>
    %98 = arith.mulf %85, %97 : vector<8x8x8xf32>
    %99 = math.roundeven %98 : vector<8x8x8xf32>
    %cst_21 = arith.constant 0.00787401571 : f32
    %100 = arith.mulf %91, %cst_21 : f32
    %101 = vector.broadcast %100 : f32 to vector<8x8x8xf32>
    %102 = arith.mulf %99, %101 : vector<8x8x8xf32>
    %103 = arith.truncf %81 : vector<8x8x8xf32> to vector<8x8x8xbf16>
    %104 = arith.truncf %102 : vector<8x8x8xf32> to vector<8x8x8xbf16>
    "tpu.trace_start"() <{level = 10 : i32, message = "bqd,bkd->bqk"}> : () -> ()
    %cst_22 = arith.constant dense<0.000000e+00> : vector<8x8x8xf32>
    %105 = tpu.matmul %103, %104, %cst_22 {dimension_numbers = #tpu.dot_dimension_numbers<[2], [2], [1], [1], [0, 0, 0, 1, 1, 1], [0], [0]>} : vector<8x8x8xbf16>, vector<8x8x8xbf16>, vector<8x8x8xf32> -> vector<8x8x8xf32>
    "tpu.trace_stop"() : () -> ()
    %106 = vector.shape_cast %105 : vector<8x8x8xf32> to vector<2x4x8x8xf32>
    %cst_23 = arith.constant 0.353553385 : f32
    %107 = vector.broadcast %cst_23 : f32 to vector<2x4x8x8xf32>
    %108 = arith.mulf %106, %107 : vector<2x4x8x8xf32>
    %109 = vector.shape_cast %4 : vector<2x8xf32> to vector<2x1x1x8xf32>
    %110 = vector.broadcast %109 : vector<2x1x1x8xf32> to vector<2x4x8x8xf32>
    %111 = arith.addf %108, %110 : vector<2x4x8x8xf32>
    %c0_24 = arith.constant 0 : index
    %c0_25 = arith.constant 0 : index
    %c0_26 = arith.constant 0 : index
    %c0_27 = arith.constant 0 : index
    %c0_28 = arith.constant 0 : index
    %112 = vector.load %arg21[%c0_24, %c0_25, %c0_26, %c0_27, %c0_28] : memref<1x2x4x8x8xf32, #tpu.memory_space<vmem>>, vector<1x2x4x8x8xf32>
    %113 = vector.shape_cast %112 : vector<1x2x4x8x8xf32> to vector<2x4x8x8xf32>
    %114 = vector.shape_cast %111 : vector<2x4x8x8xf32> to vector<1x2x4x8x8xf32>
    tpu.vector_store %arg21[%c0_24, %c0_25, %c0_26, %c0_27, %c0_28], %114 {strides = array<i32>} : memref<1x2x4x8x8xf32, #tpu.memory_space<vmem>>, vector<1x2x4x8x8xf32>,
    %cst_29 = arith.constant dense<0xFF800000> : vector<2x4x8xf32>
    %115 = vector.multi_reduction <maximumf>, %111, %cst_29 [3] : vector<2x4x8x8xf32> to vector<2x4x8xf32>
    %116 = vector.shape_cast %115 : vector<2x4x8xf32> to vector<2x4x8x1xf32>
    %117 = vector.broadcast %116 : vector<2x4x8x1xf32> to vector<2x4x8x8xf32>
    %118 = arith.subf %111, %117 : vector<2x4x8x8xf32>
    %119 = math.exp %118 : vector<2x4x8x8xf32>
    %cst_30 = arith.constant dense<0.000000e+00> : vector<2x4x8xf32>
    %120 = vector.multi_reduction <add>, %119, %cst_30 [3] : vector<2x4x8x8xf32> to vector<2x4x8xf32>
    %121 = vector.shape_cast %120 : vector<2x4x8xf32> to vector<2x4x8x1xf32>
    %122 = tpu.reciprocal %121 {approx = true} : vector<2x4x8x1xf32> -> vector<2x4x8x1xf32>
    %123 = vector.broadcast %122 : vector<2x4x8x1xf32> to vector<2x4x8x8xf32>
    %124 = arith.mulf %119, %123 : vector<2x4x8x8xf32>
    %c0_31 = arith.constant 0 : index
    %c0_32 = arith.constant 0 : index
    %c0_33 = arith.constant 0 : index
    %c0_34 = arith.constant 0 : index
    %c0_35 = arith.constant 0 : index
    %125 = vector.load %arg22[%c0_31, %c0_32, %c0_33, %c0_34, %c0_35] : memref<1x2x4x8x8xf32, #tpu.memory_space<vmem>>, vector<1x2x4x8x8xf32>
    %126 = vector.shape_cast %125 : vector<1x2x4x8x8xf32> to vector<2x4x8x8xf32>
    %127 = vector.shape_cast %124 : vector<2x4x8x8xf32> to vector<1x2x4x8x8xf32>
    tpu.vector_store %arg22[%c0_31, %c0_32, %c0_33, %c0_34, %c0_35], %127 {strides = array<i32>} : memref<1x2x4x8x8xf32, #tpu.memory_space<vmem>>, vector<1x2x4x8x8xf32>,
    %cst_36 = arith.constant -2.500000e+00 : f32
    %cst_37 = arith.constant 2.500000e+00 : f32
    %128 = vector.broadcast %cst_36 : f32 to vector<2x4x8x8xf32>
    %129 = arith.maximumf %128, %124 : vector<2x4x8x8xf32>
    %130 = vector.broadcast %cst_37 : f32 to vector<2x4x8x8xf32>
    %131 = arith.minimumf %130, %129 : vector<2x4x8x8xf32>
    %132 = math.absf %131 : vector<2x4x8x8xf32>
    %133 = vector.shape_cast %132 : vector<2x4x8x8xf32> to vector<1x2x4x8x8xf32>
    %cst_38 = arith.constant dense<0xFF800000> : vector<1xf32>
    %134 = vector.multi_reduction <maximumf>, %133, %cst_38 [1, 2, 3, 4] : vector<1x2x4x8x8xf32> to vector<1xf32>
    %135 = vector.shape_cast %134 : vector<1xf32> to vector<1x1x1x1x1xf32>
    %136 = vector.extract %135[0, 0, 0, 0, 0] : f32 from vector<1x1x1x1x1xf32>
    %cst_39 = arith.constant 9.99999993E-9 : f32
    %137 = arith.maximumf %136, %cst_39 : f32
    %138 = vector.broadcast %137 : f32 to vector<1x1xf32>
    %139 = tpu.reciprocal %138 {approx = true} : vector<1x1xf32> -> vector<1x1xf32>
    %cst_40 = arith.constant 1.270000e+02 : f32
    %140 = vector.broadcast %cst_40 : f32 to vector<1x1xf32>
    %141 = arith.mulf %140, %139 : vector<1x1xf32>
    %142 = vector.shape_cast %141 : vector<1x1xf32> to vector<1x1x1x1xf32>
    %143 = vector.broadcast %142 : vector<1x1x1x1xf32> to vector<2x4x8x8xf32>
    %144 = arith.mulf %131, %143 : vector<2x4x8x8xf32>
    %145 = math.roundeven %144 : vector<2x4x8x8xf32>
    %cst_41 = arith.constant 0.00787401571 : f32
    %146 = arith.mulf %137, %cst_41 : f32
    %147 = vector.broadcast %146 : f32 to vector<2x4x8x8xf32>
    %148 = arith.mulf %145, %147 : vector<2x4x8x8xf32>
    %149 = vector.shape_cast %148 : vector<2x4x8x8xf32> to vector<8x8x8xf32>
    %cst_42 = arith.constant -2.500000e+00 : f32
    %cst_43 = arith.constant 2.500000e+00 : f32
    %150 = vector.broadcast %cst_42 : f32 to vector<8x8x8xf32>
    %151 = arith.maximumf %150, %60 : vector<8x8x8xf32>
    %152 = vector.broadcast %cst_43 : f32 to vector<8x8x8xf32>
    %153 = arith.minimumf %152, %151 : vector<8x8x8xf32>
    %154 = math.absf %153 : vector<8x8x8xf32>
    %155 = vector.shape_cast %154 : vector<8x8x8xf32> to vector<1x8x8x8xf32>
    %cst_44 = arith.constant dense<0xFF800000> : vector<1xf32>
    %156 = vector.multi_reduction <maximumf>, %155, %cst_44 [1, 2, 3] : vector<1x8x8x8xf32> to vector<1xf32>
    %157 = vector.shape_cast %156 : vector<1xf32> to vector<1x1x1x1xf32>
    %158 = vector.extract %157[0, 0, 0, 0] : f32 from vector<1x1x1x1xf32>
    %cst_45 = arith.constant 9.99999993E-9 : f32
    %159 = arith.maximumf %158, %cst_45 : f32
    %160 = vector.broadcast %159 : f32 to vector<1x1xf32>
    %161 = tpu.reciprocal %160 {approx = true} : vector<1x1xf32> -> vector<1x1xf32>
    %cst_46 = arith.constant 1.270000e+02 : f32
    %162 = vector.broadcast %cst_46 : f32 to vector<1x1xf32>
    %163 = arith.mulf %162, %161 : vector<1x1xf32>
    %164 = vector.shape_cast %163 : vector<1x1xf32> to vector<1x1x1xf32>
    %165 = vector.broadcast %164 : vector<1x1x1xf32> to vector<8x8x8xf32>
    %166 = arith.mulf %153, %165 : vector<8x8x8xf32>
    %167 = math.roundeven %166 : vector<8x8x8xf32>
    %cst_47 = arith.constant 0.00787401571 : f32
    %168 = arith.mulf %159, %cst_47 : f32
    %169 = vector.broadcast %168 : f32 to vector<8x8x8xf32>
    %170 = arith.mulf %167, %169 : vector<8x8x8xf32>
    %171 = arith.truncf %149 : vector<8x8x8xf32> to vector<8x8x8xbf16>
    %172 = arith.truncf %170 : vector<8x8x8xf32> to vector<8x8x8xbf16>
    "tpu.trace_start"() <{level = 10 : i32, message = "bqk,bkd->bqd"}> : () -> ()
    %cst_48 = arith.constant dense<0.000000e+00> : vector<8x8x8xf32>
    %173 = tpu.matmul %171, %172, %cst_48 {dimension_numbers = #tpu.dot_dimension_numbers<[2], [1], [1], [2], [0, 0, 0, 1, 1, 2], [0], [0]>} : vector<8x8x8xbf16>, vector<8x8x8xbf16>, vector<8x8x8xf32> -> vector<8x8x8xf32>
    "tpu.trace_stop"() : () -> ()
    %174 = vector.shape_cast %173 : vector<8x8x8xf32> to vector<2x4x8x8xf32>
    %c0_49 = arith.constant 0 : index
    %c0_50 = arith.constant 0 : index
    %c0_51 = arith.constant 0 : index
    %c0_52 = arith.constant 0 : index
    %c0_53 = arith.constant 0 : index
    %175 = vector.load %arg23[%c0_49, %c0_50, %c0_51, %c0_52, %c0_53] : memref<1x2x4x8x8xf32, #tpu.memory_space<vmem>>, vector<1x2x4x8x8xf32>
    %176 = vector.shape_cast %175 : vector<1x2x4x8x8xf32> to vector<2x4x8x8xf32>
    %177 = vector.shape_cast %174 : vector<2x4x8x8xf32> to vector<1x2x4x8x8xf32>
    tpu.vector_store %arg23[%c0_49, %c0_50, %c0_51, %c0_52, %c0_53], %177 {strides = array<i32>} : memref<1x2x4x8x8xf32, #tpu.memory_space<vmem>>, vector<1x2x4x8x8xf32>,
    %178 = vector.shape_cast %173 : vector<8x8x8xf32> to vector<2x4x8x8xf32>
    %179 = vector.extract_strided_slice %178 {offsets = [0, 0, 0, 0], sizes = [2, 1, 8, 8], strides = [1, 1, 1, 1]} : vector<2x4x8x8xf32> to vector<2x1x8x8xf32>
    %180 = vector.shape_cast %179 : vector<2x1x8x8xf32> to vector<2x8x8xf32>
    %181 = vector.extract_strided_slice %178 {offsets = [0, 1, 0, 0], sizes = [2, 1, 8, 8], strides = [1, 1, 1, 1]} : vector<2x4x8x8xf32> to vector<2x1x8x8xf32>
    %182 = vector.shape_cast %181 : vector<2x1x8x8xf32> to vector<2x8x8xf32>
    %183 = vector.extract_strided_slice %178 {offsets = [0, 2, 0, 0], sizes = [2, 1, 8, 8], strides = [1, 1, 1, 1]} : vector<2x4x8x8xf32> to vector<2x1x8x8xf32>
    %184 = vector.shape_cast %183 : vector<2x1x8x8xf32> to vector<2x8x8xf32>
    %185 = vector.extract_strided_slice %178 {offsets = [0, 3, 0, 0], sizes = [2, 1, 8, 8], strides = [1, 1, 1, 1]} : vector<2x4x8x8xf32> to vector<2x1x8x8xf32>
    %186 = vector.shape_cast %185 : vector<2x1x8x8xf32> to vector<2x8x8xf32>
    %187 = tpu.concatenate %180, %182, %184, %186 in 2 : vector<2x8x8xf32>, vector<2x8x8xf32>, vector<2x8x8xf32>, vector<2x8x8xf32> -> vector<2x8x32xf32>
    %188 = vector.shape_cast %187 : vector<2x8x32xf32> to vector<16x32xf32>
    %c0_54 = arith.constant 0 : index
    %c0_55 = arith.constant 0 : index
    %c0_56 = arith.constant 0 : index
    %189 = vector.load %arg7[%c0_54, %c0_55, %c0_56] : memref<1x32x32xbf16, #tpu.memory_space<vmem>>, vector<1x32x32xbf16>
    %190 = vector.shape_cast %189 : vector<1x32x32xbf16> to vector<32x32xbf16>
    %191 = arith.truncf %188 : vector<16x32xf32> to vector<16x32xbf16>
    %cst_57 = arith.constant dense<0.000000e+00> : vector<16x32xf32>
    %192 = tpu.matmul %191, %190, %cst_57 {dimension_numbers = #tpu.dot_dimension_numbers<[1], [0], [0], [1], [0, 0, 1, 1], [], []>} : vector<16x32xbf16>, vector<32x32xbf16>, vector<16x32xf32> -> vector<16x32xf32>
    %c0_58 = arith.constant 0 : index
    %c0_59 = arith.constant 0 : index
    %c0_60 = arith.constant 0 : index
    %193 = vector.load %arg8[%c0_58, %c0_59, %c0_60] : memref<1x1x32xf32, #tpu.memory_space<vmem>>, vector<1x1x32xf32>
    %194 = vector.shape_cast %193 : vector<1x1x32xf32> to vector<1x32xf32>
    %195 = vector.broadcast %194 : vector<1x32xf32> to vector<16x32xf32>
    %196 = arith.addf %192, %195 : vector<16x32xf32>
    %197 = vector.shape_cast %196 : vector<16x32xf32> to vector<2x8x32xf32>
    %c0_61 = arith.constant 0 : index
    %c0_62 = arith.constant 0 : index
    %c0_63 = arith.constant 0 : index
    %c0_64 = arith.constant 0 : index
    %198 = vector.load %arg25[%c0_61, %c0_62, %c0_63, %c0_64] : memref<1x2x8x32xf32, #tpu.memory_space<vmem>>, vector<1x2x8x32xf32>
    %199 = vector.shape_cast %198 : vector<1x2x8x32xf32> to vector<2x8x32xf32>
    %200 = vector.shape_cast %197 : vector<2x8x32xf32> to vector<1x2x8x32xf32>
    tpu.vector_store %arg25[%c0_61, %c0_62, %c0_63, %c0_64], %200 {strides = array<i32>} : memref<1x2x8x32xf32, #tpu.memory_space<vmem>>, vector<1x2x8x32xf32>,
    %201 = arith.addf %196, %3 : vector<16x32xf32>
    %c0_65 = arith.constant 0 : index
    %c0_66 = arith.constant 0 : index
    %c0_67 = arith.constant 0 : index
    %202 = vector.load %arg9[%c0_65, %c0_66, %c0_67] : memref<1x1x32xf32, #tpu.memory_space<vmem>>, vector<1x1x32xf32>
    %203 = vector.shape_cast %202 : vector<1x1x32xf32> to vector<1x32xf32>
    %c0_68 = arith.constant 0 : index
    %c0_69 = arith.constant 0 : index
    %c0_70 = arith.constant 0 : index
    %204 = vector.load %arg10[%c0_68, %c0_69, %c0_70] : memref<1x1x32xf32, #tpu.memory_space<vmem>>, vector<1x1x32xf32>
    %205 = vector.shape_cast %204 : vector<1x1x32xf32> to vector<1x32xf32>
    %cst_71 = arith.constant dense<0.000000e+00> : vector<16xf32>
    %206 = vector.multi_reduction <add>, %201, %cst_71 [1] : vector<16x32xf32> to vector<16xf32>
    %207 = vector.shape_cast %206 : vector<16xf32> to vector<16x1xf32>
    %cst_72 = arith.constant 3.200000e+01 : f32
    %208 = vector.broadcast %cst_72 : f32 to vector<16x1xf32>
    %209 = arith.divf %207, %208 : vector<16x1xf32>
    %210 = vector.broadcast %209 : vector<16x1xf32> to vector<16x32xf32>
    %211 = arith.subf %201, %210 : vector<16x32xf32>
    %212 = arith.mulf %211, %211 : vector<16x32xf32>
    %cst_73 = arith.constant dense<0.000000e+00> : vector<16xf32>
    %213 = vector.multi_reduction <add>, %212, %cst_73 [1] : vector<16x32xf32> to vector<16xf32>
    %214 = vector.shape_cast %213 : vector<16xf32> to vector<16x1xf32>
    %cst_74 = arith.constant 3.200000e+01 : f32
    %215 = vector.broadcast %cst_74 : f32 to vector<16x1xf32>
    %216 = arith.divf %214, %215 : vector<16x1xf32>
    %217 = vector.broadcast %209 : vector<16x1xf32> to vector<16x32xf32>
    %218 = arith.subf %201, %217 : vector<16x32xf32>
    %cst_75 = arith.constant 9.99999996E-13 : f32
    %219 = vector.broadcast %cst_75 : f32 to vector<16x1xf32>
    %220 = arith.addf %216, %219 : vector<16x1xf32>
    %221 = math.rsqrt %220 : vector<16x1xf32>
    %222 = vector.broadcast %221 : vector<16x1xf32> to vector<16x32xf32>
    %223 = arith.mulf %218, %222 : vector<16x32xf32>
    %224 = vector.broadcast %203 : vector<1x32xf32> to vector<16x32xf32>
    %225 = arith.mulf %223, %224 : vector<16x32xf32>
    %226 = vector.broadcast %205 : vector<1x32xf32> to vector<16x32xf32>
    %227 = arith.addf %225, %226 : vector<16x32xf32>
    %228 = vector.shape_cast %227 : vector<16x32xf32> to vector<2x8x32xf32>
    %c0_76 = arith.constant 0 : index
    %c0_77 = arith.constant 0 : index
    %c0_78 = arith.constant 0 : index
    %c0_79 = arith.constant 0 : index
    %229 = vector.load %arg24[%c0_76, %c0_77, %c0_78, %c0_79] : memref<1x2x8x32xf32, #tpu.memory_space<vmem>>, vector<1x2x8x32xf32>
    %230 = vector.shape_cast %229 : vector<1x2x8x32xf32> to vector<2x8x32xf32>
    %231 = vector.shape_cast %228 : vector<2x8x32xf32> to vector<1x2x8x32xf32>
    tpu.vector_store %arg24[%c0_76, %c0_77, %c0_78, %c0_79], %231 {strides = array<i32>} : memref<1x2x8x32xf32, #tpu.memory_space<vmem>>, vector<1x2x8x32xf32>,
    %c0_80 = arith.constant 0 : index
    %c0_81 = arith.constant 0 : index
    %c0_82 = arith.constant 0 : index
    %232 = vector.load %arg11[%c0_80, %c0_81, %c0_82] : memref<1x32x64xbf16, #tpu.memory_space<vmem>>, vector<1x32x64xbf16>
    %233 = vector.shape_cast %232 : vector<1x32x64xbf16> to vector<32x64xbf16>
    %234 = arith.truncf %227 : vector<16x32xf32> to vector<16x32xbf16>
    %cst_83 = arith.constant dense<0.000000e+00> : vector<16x64xf32>
    %235 = tpu.matmul %234, %233, %cst_83 {dimension_numbers = #tpu.dot_dimension_numbers<[1], [0], [0], [1], [0, 0, 1, 1], [], []>} : vector<16x32xbf16>, vector<32x64xbf16>, vector<16x64xf32> -> vector<16x64xf32>
    %c0_84 = arith.constant 0 : index
    %c0_85 = arith.constant 0 : index
    %c0_86 = arith.constant 0 : index
    %236 = vector.load %arg12[%c0_84, %c0_85, %c0_86] : memref<1x1x64xf32, #tpu.memory_space<vmem>>, vector<1x1x64xf32>
    %237 = vector.shape_cast %236 : vector<1x1x64xf32> to vector<1x64xf32>
    %238 = vector.broadcast %237 : vector<1x64xf32> to vector<16x64xf32>
    %239 = arith.addf %235, %238 : vector<16x64xf32>
    %cst_87 = arith.constant 5.000000e-01 : f32
    %240 = vector.broadcast %cst_87 : f32 to vector<16x64xf32>
    %241 = arith.mulf %239, %240 : vector<16x64xf32>
    %cst_88 = arith.constant 0.707106769 : f32
    %242 = vector.broadcast %cst_88 : f32 to vector<16x64xf32>
    %243 = arith.mulf %239, %242 : vector<16x64xf32>
    %244 = math.erf %243 : vector<16x64xf32>
    %cst_89 = arith.constant 1.000000e+00 : f32
    %245 = vector.broadcast %cst_89 : f32 to vector<16x64xf32>
    %246 = arith.addf %245, %244 : vector<16x64xf32>
    %247 = arith.mulf %241, %246 : vector<16x64xf32>
    %c0_90 = arith.constant 0 : index
    %c0_91 = arith.constant 0 : index
    %c0_92 = arith.constant 0 : index
    %248 = vector.load %arg13[%c0_90, %c0_91, %c0_92] : memref<1x64x32xbf16, #tpu.memory_space<vmem>>, vector<1x64x32xbf16>
    %249 = vector.shape_cast %248 : vector<1x64x32xbf16> to vector<64x32xbf16>
    %250 = arith.truncf %247 : vector<16x64xf32> to vector<16x64xbf16>
    %cst_93 = arith.constant dense<0.000000e+00> : vector<16x32xf32>
    %251 = tpu.matmul %250, %249, %cst_93 {dimension_numbers = #tpu.dot_dimension_numbers<[1], [0], [0], [1], [0, 0, 1, 1], [], []>} : vector<16x64xbf16>, vector<64x32xbf16>, vector<16x32xf32> -> vector<16x32xf32>
    %c0_94 = arith.constant 0 : index
    %c0_95 = arith.constant 0 : index
    %c0_96 = arith.constant 0 : index
    %252 = vector.load %arg14[%c0_94, %c0_95, %c0_96] : memref<1x1x32xf32, #tpu.memory_space<vmem>>, vector<1x1x32xf32>
    %253 = vector.shape_cast %252 : vector<1x1x32xf32> to vector<1x32xf32>
    %254 = vector.broadcast %253 : vector<1x32xf32> to vector<16x32xf32>
    %255 = arith.addf %251, %254 : vector<16x32xf32>
    %256 = arith.addf %255, %227 : vector<16x32xf32>
    %c0_97 = arith.constant 0 : index
    %c0_98 = arith.constant 0 : index
    %c0_99 = arith.constant 0 : index
    %257 = vector.load %arg15[%c0_97, %c0_98, %c0_99] : memref<1x1x32xf32, #tpu.memory_space<vmem>>, vector<1x1x32xf32>
    %258 = vector.shape_cast %257 : vector<1x1x32xf32> to vector<1x32xf32>
    %c0_100 = arith.constant 0 : index
    %c0_101 = arith.constant 0 : index
    %c0_102 = arith.constant 0 : index
    %259 = vector.load %arg16[%c0_100, %c0_101, %c0_102] : memref<1x1x32xf32, #tpu.memory_space<vmem>>, vector<1x1x32xf32>
    %260 = vector.shape_cast %259 : vector<1x1x32xf32> to vector<1x32xf32>
    %cst_103 = arith.constant dense<0.000000e+00> : vector<16xf32>
    %261 = vector.multi_reduction <add>, %256, %cst_103 [1] : vector<16x32xf32> to vector<16xf32>
    %262 = vector.shape_cast %261 : vector<16xf32> to vector<16x1xf32>
    %cst_104 = arith.constant 3.200000e+01 : f32
    %263 = vector.broadcast %cst_104 : f32 to vector<16x1xf32>
    %264 = arith.divf %262, %263 : vector<16x1xf32>
    %265 = vector.broadcast %264 : vector<16x1xf32> to vector<16x32xf32>
    %266 = arith.subf %256, %265 : vector<16x32xf32>
    %267 = arith.mulf %266, %266 : vector<16x32xf32>
    %cst_105 = arith.constant dense<0.000000e+00> : vector<16xf32>
    %268 = vector.multi_reduction <add>, %267, %cst_105 [1] : vector<16x32xf32> to vector<16xf32>
    %269 = vector.shape_cast %268 : vector<16xf32> to vector<16x1xf32>
    %cst_106 = arith.constant 3.200000e+01 : f32
    %270 = vector.broadcast %cst_106 : f32 to vector<16x1xf32>
    %271 = arith.divf %269, %270 : vector<16x1xf32>
    %272 = vector.broadcast %264 : vector<16x1xf32> to vector<16x32xf32>
    %273 = arith.subf %256, %272 : vector<16x32xf32>
    %cst_107 = arith.constant 9.99999996E-13 : f32
    %274 = vector.broadcast %cst_107 : f32 to vector<16x1xf32>
    %275 = arith.addf %271, %274 : vector<16x1xf32>
    %276 = math.rsqrt %275 : vector<16x1xf32>
    %277 = vector.broadcast %276 : vector<16x1xf32> to vector<16x32xf32>
    %278 = arith.mulf %273, %277 : vector<16x32xf32>
    %279 = vector.broadcast %258 : vector<1x32xf32> to vector<16x32xf32>
    %280 = arith.mulf %278, %279 : vector<16x32xf32>
    %281 = vector.broadcast %260 : vector<1x32xf32> to vector<16x32xf32>
    %282 = arith.addf %280, %281 : vector<16x32xf32>
    %283 = vector.shape_cast %282 : vector<16x32xf32> to vector<2x8x32xf32>
    %c0_108 = arith.constant 0 : index
    %c0_109 = arith.constant 0 : index
    %c0_110 = arith.constant 0 : index
    %c0_111 = arith.constant 0 : index
    %284 = vector.load %arg20[%c0_108, %c0_109, %c0_110, %c0_111] : memref<1x2x8x32xf32, #tpu.memory_space<vmem>>, vector<1x2x8x32xf32>
    %285 = vector.shape_cast %284 : vector<1x2x8x32xf32> to vector<2x8x32xf32>
    %286 = vector.shape_cast %283 : vector<2x8x32xf32> to vector<1x2x8x32xf32>
    tpu.vector_store %arg20[%c0_108, %c0_109, %c0_110, %c0_111], %286 {strides = array<i32>} : memref<1x2x8x32xf32, #tpu.memory_space<vmem>>, vector<1x2x8x32xf32>,
    %c0_112 = arith.constant 0 : index
    %c0_113 = arith.constant 0 : index
    %287 = vector.load %arg27[%c0_112, %c0_113] : memref<16x32xf32, #tpu.memory_space<vmem>>, vector<16x32xf32>
    tpu.vector_store %arg27[%c0_112, %c0_113], %282 {strides = array<i32>} : memref<16x32xf32, #tpu.memory_space<vmem>>, vector<16x32xf32>,
    %c1_i32 = arith.constant 1 : i32
    %288 = arith.cmpi eq, %arg0, %c1_i32 : i32
    %289 = arith.extui %288 : i1 to i32
    %c0_i32_114 = arith.constant 0 : i32
    %290 = arith.cmpi ne, %289, %c0_i32_114 : i32
    scf.if %290 {
      %291 = vector.shape_cast %282 : vector<16x32xf32> to vector<2x8x32xf32>
      %292 = vector.extract_strided_slice %291 {offsets = [0, 0, 0], sizes = [2, 1, 32], strides = [1, 1, 1]} : vector<2x8x32xf32> to vector<2x1x32xf32>
      %293 = vector.shape_cast %292 : vector<2x1x32xf32> to vector<2x32xf32>
      %c0_115 = arith.constant 0 : index
      %c0_116 = arith.constant 0 : index
      %294 = vector.load %arg17[%c0_115, %c0_116] : memref<32x32xbf16, #tpu.memory_space<vmem>>, vector<32x32xbf16>
      %295 = arith.truncf %293 : vector<2x32xf32> to vector<2x32xbf16>
      %cst_117 = arith.constant dense<0.000000e+00> : vector<2x32xf32>
      %296 = tpu.matmul %295, %294, %cst_117 {dimension_numbers = #tpu.dot_dimension_numbers<[1], [0], [0], [1], [0, 0, 1, 1], [], []>} : vector<2x32xbf16>, vector<32x32xbf16>, vector<2x32xf32> -> vector<2x32xf32>
      %c0_118 = arith.constant 0 : index
      %c0_119 = arith.constant 0 : index
      %297 = vector.load %arg18[%c0_118, %c0_119] : memref<1x32xf32, #tpu.memory_space<vmem>>, vector<1x32xf32>
      %298 = vector.broadcast %297 : vector<1x32xf32> to vector<2x32xf32>
      %299 = arith.addf %296, %298 : vector<2x32xf32>
      %300 = math.tanh %299 : vector<2x32xf32>
      %c0_120 = arith.constant 0 : index
      %c0_121 = arith.constant 0 : index
      %301 = vector.load %arg26[%c0_120, %c0_121] : memref<2x32xf32, #tpu.memory_space<vmem>>, vector<2x32xf32>
      tpu.vector_store %arg26[%c0_120, %c0_121], %300 {strides = array<i32>} : memref<2x32xf32, #tpu.memory_space<vmem>>, vector<2x32xf32>,
    } else {
    }
    return
  }
  func.func @transform_0(%arg0: i32) -> (i32, i32, i32) {
    %c0_i32 = arith.constant 0 : i32
    %c0_i32_0 = arith.constant 0 : i32
    %c0_i32_1 = arith.constant 0 : i32
    %c0_i32_2 = arith.constant 0 : i32
    return %c0_i32, %c0_i32_0, %c0_i32_1 : i32, i32, i32
  }
  func.func @transform_1(%arg0: i32) -> (i32, i32) {
    %c0_i32 = arith.constant 0 : i32
    %c0_i32_0 = arith.constant 0 : i32
    %c0_i32_1 = arith.constant 0 : i32
    return %c0_i32, %c0_i32_0 : i32, i32
  }
  func.func @transform_2(%arg0: i32) -> (i32, i32) {
    %c0_i32 = arith.constant 0 : i32
    %c0_i32_0 = arith.constant 0 : i32
    %c0_i32_1 = arith.constant 0 : i32
    return %c0_i32, %c0_i32_0 : i32, i32
  }
  func.func @transform_3(%arg0: i32) -> (i32, i32) {
    %c0_i32 = arith.constant 0 : i32
    %c0_i32_0 = arith.constant 0 : i32
    %c0_i32_1 = arith.constant 0 : i32
    return %c0_i32, %c0_i32_0 : i32, i32
  }
  func.func @transform_4(%arg0: i32) -> (i32, i32, i32) {
    %c0_i32 = arith.constant 0 : i32
    %c0_i32_0 = arith.constant 0 : i32
    %c0_i32_1 = arith.constant 0 : i32
    return %arg0, %c0_i32, %c0_i32_0 : i32, i32, i32
  }
  func.func @transform_5(%arg0: i32) -> (i32, i32, i32) {
    %c0_i32 = arith.constant 0 : i32
    %c0_i32_0 = arith.constant 0 : i32
    %c0_i32_1 = arith.constant 0 : i32
    return %arg0, %c0_i32, %c0_i32_0 : i32, i32, i32
  }
  func.func @transform_6(%arg0: i32) -> (i32, i32, i32) {
    %c0_i32 = arith.constant 0 : i32
    %c0_i32_0 = arith.constant 0 : i32
    %c0_i32_1 = arith.constant 0 : i32
    return %arg0, %c0_i32, %c0_i32_0 : i32, i32, i32
  }
  func.func @transform_7(%arg0: i32) -> (i32, i32, i32) {
    %c0_i32 = arith.constant 0 : i32
    %c0_i32_0 = arith.constant 0 : i32
    %c0_i32_1 = arith.constant 0 : i32
    return %arg0, %c0_i32, %c0_i32_0 : i32, i32, i32
  }
  func.func @transform_8(%arg0: i32) -> (i32, i32, i32) {
    %c0_i32 = arith.constant 0 : i32
    %c0_i32_0 = arith.constant 0 : i32
    %c0_i32_1 = arith.constant 0 : i32
    return %arg0, %c0_i32, %c0_i32_0 : i32, i32, i32
  }
  func.func @transform_9(%arg0: i32) -> (i32, i32, i32) {
    %c0_i32 = arith.constant 0 : i32
    %c0_i32_0 = arith.constant 0 : i32
    %c0_i32_1 = arith.constant 0 : i32
    return %arg0, %c0_i32, %c0_i32_0 : i32, i32, i32
  }
  func.func @transform_10(%arg0: i32) -> (i32, i32, i32) {
    %c0_i32 = arith.constant 0 : i32
    %c0_i32_0 = arith.constant 0 : i32
    %c0_i32_1 = arith.constant 0 : i32
    return %arg0, %c0_i32, %c0_i32_0 : i32, i32, i32
  }
  func.func @transform_11(%arg0: i32) -> (i32, i32, i32) {
    %c0_i32 = arith.constant 0 : i32
    %c0_i32_0 = arith.constant 0 : i32
    %c0_i32_1 = arith.constant 0 : i32
    return %arg0, %c0_i32, %c0_i32_0 : i32, i32, i32
  }
  func.func @transform_12(%arg0: i32) -> (i32, i32, i32) {
    %c0_i32 = arith.constant 0 : i32
    %c0_i32_0 = arith.constant 0 : i32
    %c0_i32_1 = arith.constant 0 : i32
    return %arg0, %c0_i32, %c0_i32_0 : i32, i32, i32
  }
  func.func @transform_13(%arg0: i32) -> (i32, i32, i32) {
    %c0_i32 = arith.constant 0 : i32
    %c0_i32_0 = arith.constant 0 : i32
    %c0_i32_1 = arith.constant 0 : i32
    return %arg0, %c0_i32, %c0_i32_0 : i32, i32, i32
  }
  func.func @transform_14(%arg0: i32) -> (i32, i32, i32) {
    %c0_i32 = arith.constant 0 : i32
    %c0_i32_0 = arith.constant 0 : i32
    %c0_i32_1 = arith.constant 0 : i32
    return %arg0, %c0_i32, %c0_i32_0 : i32, i32, i32
  }
  func.func @transform_15(%arg0: i32) -> (i32, i32, i32) {
    %c0_i32 = arith.constant 0 : i32
    %c0_i32_0 = arith.constant 0 : i32
    %c0_i32_1 = arith.constant 0 : i32
    return %arg0, %c0_i32, %c0_i32_0 : i32, i32, i32
  }
  func.func @transform_16(%arg0: i32) -> (i32, i32) {
    %c0_i32 = arith.constant 0 : i32
    %c0_i32_0 = arith.constant 0 : i32
    %c0_i32_1 = arith.constant 0 : i32
    return %c0_i32, %c0_i32_0 : i32, i32
  }
  func.func @transform_17(%arg0: i32) -> (i32, i32) {
    %c0_i32 = arith.constant 0 : i32
    %c0_i32_0 = arith.constant 0 : i32
    %c0_i32_1 = arith.constant 0 : i32
    return %c0_i32, %c0_i32_0 : i32, i32
  }
  func.func @transform_18(%arg0: i32) -> (i32, i32, i32) {
    %c0_i32 = arith.constant 0 : i32
    %c0_i32_0 = arith.constant 0 : i32
    %c0_i32_1 = arith.constant 0 : i32
    %c0_i32_2 = arith.constant 0 : i32
    return %c0_i32, %c0_i32_0, %c0_i32_1 : i32, i32, i32
  }
  func.func @transform_19(%arg0: i32) -> (i32, i32, i32, i32) {
    %c0_i32 = arith.constant 0 : i32
    %c0_i32_0 = arith.constant 0 : i32
    %c0_i32_1 = arith.constant 0 : i32
    %c0_i32_2 = arith.constant 0 : i32
    return %arg0, %c0_i32, %c0_i32_0, %c0_i32_1 : i32, i32, i32, i32
  }
  func.func @transform_20(%arg0: i32) -> (i32, i32, i32, i32, i32) {
    %c0_i32 = arith.constant 0 : i32
    %c0_i32_0 = arith.constant 0 : i32
    %c0_i32_1 = arith.constant 0 : i32
    %c0_i32_2 = arith.constant 0 : i32
    %c0_i32_3 = arith.constant 0 : i32
    return %arg0, %c0_i32, %c0_i32_0, %c0_i32_1, %c0_i32_2 : i32, i32, i32, i32, i32
  }
  func.func @transform_21(%arg0: i32) -> (i32, i32, i32, i32, i32) {
    %c0_i32 = arith.constant 0 : i32
    %c0_i32_0 = arith.constant 0 : i32
    %c0_i32_1 = arith.constant 0 : i32
    %c0_i32_2 = arith.constant 0 : i32
    %c0_i32_3 = arith.constant 0 : i32
    return %arg0, %c0_i32, %c0_i32_0, %c0_i32_1, %c0_i32_2 : i32, i32, i32, i32, i32
  }
  func.func @transform_22(%arg0: i32) -> (i32, i32, i32, i32, i32) {
    %c0_i32 = arith.constant 0 : i32
    %c0_i32_0 = arith.constant 0 : i32
    %c0_i32_1 = arith.constant 0 : i32
    %c0_i32_2 = arith.constant 0 : i32
    %c0_i32_3 = arith.constant 0 : i32
    return %arg0, %c0_i32, %c0_i32_0, %c0_i32_1, %c0_i32_2 : i32, i32, i32, i32, i32
  }
  func.func @transform_23(%arg0: i32) -> (i32, i32, i32, i32) {
    %c0_i32 = arith.constant 0 : i32
    %c0_i32_0 = arith.constant 0 : i32
    %c0_i32_1 = arith.constant 0 : i32
    %c0_i32_2 = arith.constant 0 : i32
    return %arg0, %c0_i32, %c0_i32_0, %c0_i32_1 : i32, i32, i32, i32
  }
  func.func @transform_24(%arg0: i32) -> (i32, i32, i32, i32) {
    %c0_i32 = arith.constant 0 : i32
    %c0_i32_0 = arith.constant 0 : i32
    %c0_i32_1 = arith.constant 0 : i32
    %c0_i32_2 = arith.constant 0 : i32
    return %arg0, %c0_i32, %c0_i32_0, %c0_i32_1 : i32, i32, i32, i32
  }
  func.func @transform_25(%arg0: i32) -> (i32, i32) {
    %c0_i32 = arith.constant 0 : i32
    %c0_i32_0 = arith.constant 0 : i32
    %c0_i32_1 = arith.constant 0 : i32
    return %c0_i32, %c0_i32_0 : i32, i32
  }
}

</mosaic_0001>

<llo_original>
// kernel: bert_model_forward.1
$region0: #{bert_model_forward.1}
  #allocation0 [shape = 'u32[]', space=smem, size = 0x4, offset = 0x4, fixed_abs, tag = 'smem constant byte address 0x4 - core index']
  #allocation1 [shape = 'u32[144,128]{1,0:T(1,128)}', space=vmem, size = 0x12000, scoped, tag = 'internal scratch']
  #allocation2 [shape = 'f32[16,32]{1,0:T(8,128)}', space=vmem, size = 0x2000, scoped, tag = 'scratch operand']
  %s0 = inlined_call_operand.vmem [shape: f32[2,8,32], index: 0, kind: input, shape index: {}]
  %s1 = inlined_call_operand.vmem [shape: f32[2,8], index: 1, kind: input, shape index: {}]
  %s2 = inlined_call_operand.vmem [shape: f32[1,32], index: 2, kind: input, shape index: {}]
  %s3 = inlined_call_operand.vmem [shape: f32[1,32], index: 3, kind: input, shape index: {}]
  %s4 = inlined_call_operand.vmem [shape: bf16[2,32,96], index: 4, kind: input, shape index: {}]
  %s5 = inlined_call_operand.vmem [shape: f32[2,1,96], index: 5, kind: input, shape index: {}]
  %s6 = inlined_call_operand.vmem [shape: bf16[2,32,32], index: 6, kind: input, shape index: {}]
  %s7 = inlined_call_operand.vmem [shape: f32[2,1,32], index: 7, kind: input, shape index: {}]
  %s8 = inlined_call_operand.vmem [shape: f32[2,1,32], index: 8, kind: input, shape index: {}]
  %s9 = inlined_call_operand.vmem [shape: f32[2,1,32], index: 9, kind: input, shape index: {}]
  %s10 = inlined_call_operand.vmem [shape: bf16[2,32,64], index: 10, kind: input, shape index: {}]
  %s11 = inlined_call_operand.vmem [shape: f32[2,1,64], index: 11, kind: input, shape index: {}]
  %s12 = inlined_call_operand.vmem [shape: bf16[2,64,32], index: 12, kind: input, shape index: {}]
  %s13 = inlined_call_operand.vmem [shape: f32[2,1,32], index: 13, kind: input, shape index: {}]
  %s14 = inlined_call_operand.vmem [shape: f32[2,1,32], index: 14, kind: input, shape index: {}]
  %s15 = inlined_call_operand.vmem [shape: f32[2,1,32], index: 15, kind: input, shape index: {}]
  %s16 = inlined_call_operand.vmem [shape: bf16[32,32], index: 16, kind: input, shape index: {}]
  %s17 = inlined_call_operand.vmem [shape: f32[1,32], index: 17, kind: input, shape index: {}]
  %s18 = inlined_call_operand.hbm [shape: f32[2,8,32], index: 18, kind: output, shape index: {0}]
  %s19 = inlined_call_operand.vmem [shape: f32[2,2,8,32], index: 19, kind: output, shape index: {1}]
  %s20 = inlined_call_operand.vmem [shape: f32[2,2,4,8,8], index: 20, kind: output, shape index: {2}]
  %s21 = inlined_call_operand.vmem [shape: f32[2,2,4,8,8], index: 21, kind: output, shape index: {3}]
  %s22 = inlined_call_operand.vmem [shape: f32[2,2,4,8,8], index: 22, kind: output, shape index: {4}]
  %s23 = inlined_call_operand.vmem [shape: f32[2,2,8,32], index: 23, kind: output, shape index: {5}]
  %s24 = inlined_call_operand.vmem [shape: f32[2,2,8,32], index: 24, kind: output, shape index: {6}]
  %s25 = inlined_call_operand.hbm [shape: f32[2,32], index: 25, kind: output, shape index: {7}]
  %26 = xla_tuple %s18, %s19, %s20, %s21, %s22, %s23, %s24, %s25
  %s27 = sld [smem:[#allocation0]]
  $region169: #{bert_model_forward.1} parent=0
    _
  %s29 = ssub.s32 1, %s27
  %s30 = scalar_select 0, %s29, %s27
  $region1: #{bert_model_forward.1} parent=0
    #allocation3 [shape = 'u8[8192]{0}', space=vmem, size = 0x2000, scoped, tag = 'output window, operand 0, single buffered']
    #allocation4 [shape = 's32[2]{0}', space=sflag, size = 0x8, scoped, tag = 'scoped memory for bert_model_forward.1']
    #allocation5 [shape = 'u8[1024]{0}', space=vmem, size = 0x400, scoped, tag = 'output window, operand 7, single buffered']
    #allocation6 [shape = 's32[1]{0}', space=sflag, size = 0x4, scoped, tag = 'scoped memory for bert_model_forward.1']
    %31 = vsyncpa [#allocation4], 0
    %32 = vsyncpa [#allocation6], 0
    loop: start=0, step=1, limit=4
    $region2: #{bert_model_forward.1} parent=1 // loop_pre_header
      _
    $region3: #{bert_model_forward.1} parent=1 // loop_header
      %s34 = sphi 0, %s38
      %p35 = scmp.ge.s32.totalorder %s34, 4
      %s42 = sphi 0, %s42
      %s44 = sphi 0, %s42
      %s45 = sphi 0, %s44
      %s59 = sphi 0, %s45
      %s63 = sphi 0, %s63
      %s65 = sphi 0, %s63
      %s66 = sphi 0, %s65
      %s80 = sphi 0, %s66
      %s84 = sphi 0, %s84
      %s86 = sphi 0, %s84
      %s87 = sphi 0, %s86
      %s101 = sphi 0, %s87
      %s105 = sphi 0, %s105
      %s107 = sphi 0, %s105
      %s108 = sphi 0, %s107
      %s122 = sphi 0, %s108
      %s128 = sphi 0, %s130
      %s131 = sphi 0, %s128
      %s132 = sphi 0, %s131
      %s148 = sphi 0, %s132
      %s154 = sphi 0, %s156
      %s157 = sphi 0, %s154
      %s158 = sphi 0, %s157
      %s174 = sphi 0, %s158
      %s180 = sphi 0, %s182
      %s183 = sphi 0, %s180
      %s184 = sphi 0, %s183
      %s200 = sphi 0, %s184
      %s206 = sphi 0, %s208
      %s209 = sphi 0, %s206
      %s210 = sphi 0, %s209
      %s226 = sphi 0, %s210
      %s232 = sphi 0, %s234
      %s235 = sphi 0, %s232
      %s236 = sphi 0, %s235
      %s252 = sphi 0, %s236
      %s258 = sphi 0, %s260
      %s261 = sphi 0, %s258
      %s262 = sphi 0, %s261
      %s278 = sphi 0, %s262
      %s284 = sphi 0, %s286
      %s287 = sphi 0, %s284
      %s288 = sphi 0, %s287
      %s304 = sphi 0, %s288
      %s310 = sphi 0, %s312
      %s313 = sphi 0, %s310
      %s314 = sphi 0, %s313
      %s330 = sphi 0, %s314
      %s336 = sphi 0, %s338
      %s339 = sphi 0, %s336
      %s340 = sphi 0, %s339
      %s356 = sphi 0, %s340
      %s362 = sphi 0, %s364
      %s365 = sphi 0, %s362
      %s366 = sphi 0, %s365
      %s382 = sphi 0, %s366
      %s388 = sphi 0, %s390
      %s391 = sphi 0, %s388
      %s392 = sphi 0, %s391
      %s408 = sphi 0, %s392
      %s414 = sphi 0, %s416
      %s417 = sphi 0, %s414
      %s418 = sphi 0, %s417
      %s434 = sphi 0, %s418
      %s438 = sphi 0, %s438
      %s440 = sphi 0, %s438
      %s441 = sphi 0, %s440
      %s455 = sphi 0, %s441
      %s459 = sphi 0, %s459
      %s461 = sphi 0, %s459
      %s462 = sphi 0, %s461
      %s476 = sphi 0, %s462
      %s480 = sphi 0, %s480
      %s482 = sphi 0, %s480
      %s483 = sphi 0, %s482
      %s497 = sphi 0, %s483
      %s503 = sphi 0, %s505
      %s506 = sphi 0, %s503
      %s507 = sphi 0, %s506
      %s523 = sphi 0, %s507
      %s529 = sphi 0, %s531
      %s532 = sphi 0, %s529
      %s533 = sphi 0, %s532
      %s549 = sphi 0, %s533
      %s555 = sphi 0, %s557
      %s558 = sphi 0, %s555
      %s559 = sphi 0, %s558
      %s575 = sphi 0, %s559
      %s581 = sphi 0, %s583
      %s584 = sphi 0, %s581
      %s585 = sphi 0, %s584
      %s601 = sphi 0, %s585
      %s607 = sphi 0, %s609
      %s610 = sphi 0, %s607
      %s611 = sphi 0, %s610
      %s627 = sphi 0, %s611
      %s633 = sphi 0, %s635
      %s636 = sphi 0, %s633
      %s637 = sphi 0, %s636
      %s653 = sphi 0, %s637
      %s657 = sphi 0, %s657
      %s659 = sphi 0, %s657
      %s660 = sphi 0, %s659
      %s674 = sphi 0, %s660
    $region4: #{bert_model_forward.1} parent=1 // loop_header_branch
      %37 = sbr.rel (%p35) target = $region8
    $region5: #{bert_model_forward.1} parent=1 // loop_body
      %s39 = ssub.s32 %s34, 1
      %s40 = ssub.s32 %s34, 2
      %s41 = sadd.s32 %s34, 1
      %s43 = sadd.s32 %s42, 1
      %p46 = scmp.eq.s32.totalorder %s34, 1
      %p47 = scmp.ne.s32.totalorder %s42, %s44
      %p48 = scmp.eq.s32.totalorder %s34, 0
      %p49 = por %p47, %p48
      %p50 = scmp.ne.s32.totalorder %s42, %s44
      %p51 = scmp.eq.s32.totalorder %s39, 1
      %p52 = por %p50, %p51
      %p53 = scmp.ne.s32.totalorder %s44, %s45
      %p54 = scmp.eq.s32.totalorder %s39, 0
      %p55 = por %p53, %p54
      %p56 = scmp.ne.s32.totalorder %s44, %s45
      %p57 = scmp.eq.s32.totalorder %s40, 1
      %p58 = por %p56, %p57
      %p60 = scmp.ne.s32.totalorder %s45, %s59
      %p61 = scmp.eq.s32.totalorder %s40, 0
      %p62 = por %p60, %p61
      %s64 = sadd.s32 %s63, 1
      %p67 = scmp.eq.s32.totalorder %s34, 1
      %p68 = scmp.ne.s32.totalorder %s63, %s65
      %p69 = scmp.eq.s32.totalorder %s34, 0
      %p70 = por %p68, %p69
      %p71 = scmp.ne.s32.totalorder %s63, %s65
      %p72 = scmp.eq.s32.totalorder %s39, 1
      %p73 = por %p71, %p72
      %p74 = scmp.ne.s32.totalorder %s65, %s66
      %p75 = scmp.eq.s32.totalorder %s39, 0
      %p76 = por %p74, %p75
      %p77 = scmp.ne.s32.totalorder %s65, %s66
      %p78 = scmp.eq.s32.totalorder %s40, 1
      %p79 = por %p77, %p78
      %p81 = scmp.ne.s32.totalorder %s66, %s80
      %p82 = scmp.eq.s32.totalorder %s40, 0
      %p83 = por %p81, %p82
      %s85 = sadd.s32 %s84, 1
      %p88 = scmp.eq.s32.totalorder %s34, 1
      %p89 = scmp.ne.s32.totalorder %s84, %s86
      %p90 = scmp.eq.s32.totalorder %s34, 0
      %p91 = por %p89, %p90
      %p92 = scmp.ne.s32.totalorder %s84, %s86
      %p93 = scmp.eq.s32.totalorder %s39, 1
      %p94 = por %p92, %p93
      %p95 = scmp.ne.s32.totalorder %s86, %s87
      %p96 = scmp.eq.s32.totalorder %s39, 0
      %p97 = por %p95, %p96
      %p98 = scmp.ne.s32.totalorder %s86, %s87
      %p99 = scmp.eq.s32.totalorder %s40, 1
      %p100 = por %p98, %p99
      %p102 = scmp.ne.s32.totalorder %s87, %s101
      %p103 = scmp.eq.s32.totalorder %s40, 0
      %p104 = por %p102, %p103
      %s106 = sadd.s32 %s105, 1
      %p109 = scmp.eq.s32.totalorder %s34, 1
      %p110 = scmp.ne.s32.totalorder %s105, %s107
      %p111 = scmp.eq.s32.totalorder %s34, 0
      %p112 = por %p110, %p111
      %p113 = scmp.ne.s32.totalorder %s105, %s107
      %p114 = scmp.eq.s32.totalorder %s39, 1
      %p115 = por %p113, %p114
      %p116 = scmp.ne.s32.totalorder %s107, %s108
      %p117 = scmp.eq.s32.totalorder %s39, 0
      %p118 = por %p116, %p117
      %p119 = scmp.ne.s32.totalorder %s107, %s108
      %p120 = scmp.eq.s32.totalorder %s40, 1
      %p121 = por %p119, %p120
      %p123 = scmp.ne.s32.totalorder %s108, %s122
      %p124 = scmp.eq.s32.totalorder %s40, 0
      %p125 = por %p123, %p124
      %s126 = ssub.s32 %s34, %s41
      %p127 = scmp.eq.s32.totalorder %s126, 0
      %s129 = sadd.s32 %s128, 1
      %s130 = scalar_select %p127, %s128, %s129
      %p133 = pneg %p127
      %p134 = scmp.eq.s32.totalorder %s34, 1
      %p135 = por %p133, %p134
      %p136 = scmp.ne.s32.totalorder %s128, %s131
      %p137 = scmp.eq.s32.totalorder %s34, 0
      %p138 = por %p136, %p137
      %p139 = scmp.ne.s32.totalorder %s128, %s131
      %p140 = scmp.eq.s32.totalorder %s39, 1
      %p141 = por %p139, %p140
      %p142 = scmp.ne.s32.totalorder %s131, %s132
      %p143 = scmp.eq.s32.totalorder %s39, 0
      %p144 = por %p142, %p143
      %p145 = scmp.ne.s32.totalorder %s131, %s132
      %p146 = scmp.eq.s32.totalorder %s40, 1
      %p147 = por %p145, %p146
      %p149 = scmp.ne.s32.totalorder %s132, %s148
      %p150 = scmp.eq.s32.totalorder %s40, 0
      %p151 = por %p149, %p150
      %s152 = ssub.s32 %s34, %s41
      %p153 = scmp.eq.s32.totalorder %s152, 0
      %s155 = sadd.s32 %s154, 1
      %s156 = scalar_select %p153, %s154, %s155
      %p159 = pneg %p153
      %p160 = scmp.eq.s32.totalorder %s34, 1
      %p161 = por %p159, %p160
      %p162 = scmp.ne.s32.totalorder %s154, %s157
      %p163 = scmp.eq.s32.totalorder %s34, 0
      %p164 = por %p162, %p163
      %p165 = scmp.ne.s32.totalorder %s154, %s157
      %p166 = scmp.eq.s32.totalorder %s39, 1
      %p167 = por %p165, %p166
      %p168 = scmp.ne.s32.totalorder %s157, %s158
      %p169 = scmp.eq.s32.totalorder %s39, 0
      %p170 = por %p168, %p169
      %p171 = scmp.ne.s32.totalorder %s157, %s158
      %p172 = scmp.eq.s32.totalorder %s40, 1
      %p173 = por %p171, %p172
      %p175 = scmp.ne.s32.totalorder %s158, %s174
      %p176 = scmp.eq.s32.totalorder %s40, 0
      %p177 = por %p175, %p176
      %s178 = ssub.s32 %s34, %s41
      %p179 = scmp.eq.s32.totalorder %s178, 0
      %s181 = sadd.s32 %s180, 1
      %s182 = scalar_select %p179, %s180, %s181
      %p185 = pneg %p179
      %p186 = scmp.eq.s32.totalorder %s34, 1
      %p187 = por %p185, %p186
      %p188 = scmp.ne.s32.totalorder %s180, %s183
      %p189 = scmp.eq.s32.totalorder %s34, 0
      %p190 = por %p188, %p189
      %p191 = scmp.ne.s32.totalorder %s180, %s183
      %p192 = scmp.eq.s32.totalorder %s39, 1
      %p193 = por %p191, %p192
      %p194 = scmp.ne.s32.totalorder %s183, %s184
      %p195 = scmp.eq.s32.totalorder %s39, 0
      %p196 = por %p194, %p195
      %p197 = scmp.ne.s32.totalorder %s183, %s184
      %p198 = scmp.eq.s32.totalorder %s40, 1
      %p199 = por %p197, %p198
      %p201 = scmp.ne.s32.totalorder %s184, %s200
      %p202 = scmp.eq.s32.totalorder %s40, 0
      %p203 = por %p201, %p202
      %s204 = ssub.s32 %s34, %s41
      %p205 = scmp.eq.s32.totalorder %s204, 0
      %s207 = sadd.s32 %s206, 1
      %s208 = scalar_select %p205, %s206, %s207
      %p211 = pneg %p205
      %p212 = scmp.eq.s32.totalorder %s34, 1
      %p213 = por %p211, %p212
      %p214 = scmp.ne.s32.totalorder %s206, %s209
      %p215 = scmp.eq.s32.totalorder %s34, 0
      %p216 = por %p214, %p215
      %p217 = scmp.ne.s32.totalorder %s206, %s209
      %p218 = scmp.eq.s32.totalorder %s39, 1
      %p219 = por %p217, %p218
      %p220 = scmp.ne.s32.totalorder %s209, %s210
      %p221 = scmp.eq.s32.totalorder %s39, 0
      %p222 = por %p220, %p221
      %p223 = scmp.ne.s32.totalorder %s209, %s210
      %p224 = scmp.eq.s32.totalorder %s40, 1
      %p225 = por %p223, %p224
      %p227 = scmp.ne.s32.totalorder %s210, %s226
      %p228 = scmp.eq.s32.totalorder %s40, 0
      %p229 = por %p227, %p228
      %s230 = ssub.s32 %s34, %s41
      %p231 = scmp.eq.s32.totalorder %s230, 0
      %s233 = sadd.s32 %s232, 1
      %s234 = scalar_select %p231, %s232, %s233
      %p237 = pneg %p231
      %p238 = scmp.eq.s32.totalorder %s34, 1
      %p239 = por %p237, %p238
      %p240 = scmp.ne.s32.totalorder %s232, %s235
      %p241 = scmp.eq.s32.totalorder %s34, 0
      %p242 = por %p240, %p241
      %p243 = scmp.ne.s32.totalorder %s232, %s235
      %p244 = scmp.eq.s32.totalorder %s39, 1
      %p245 = por %p243, %p244
      %p246 = scmp.ne.s32.totalorder %s235, %s236
      %p247 = scmp.eq.s32.totalorder %s39, 0
      %p248 = por %p246, %p247
      %p249 = scmp.ne.s32.totalorder %s235, %s236
      %p250 = scmp.eq.s32.totalorder %s40, 1
      %p251 = por %p249, %p250
      %p253 = scmp.ne.s32.totalorder %s236, %s252
      %p254 = scmp.eq.s32.totalorder %s40, 0
      %p255 = por %p253, %p254
      %s256 = ssub.s32 %s34, %s41
      %p257 = scmp.eq.s32.totalorder %s256, 0
      %s259 = sadd.s32 %s258, 1
      %s260 = scalar_select %p257, %s258, %s259
      %p263 = pneg %p257
      %p264 = scmp.eq.s32.totalorder %s34, 1
      %p265 = por %p263, %p264
      %p266 = scmp.ne.s32.totalorder %s258, %s261
      %p267 = scmp.eq.s32.totalorder %s34, 0
      %p268 = por %p266, %p267
      %p269 = scmp.ne.s32.totalorder %s258, %s261
      %p270 = scmp.eq.s32.totalorder %s39, 1
      %p271 = por %p269, %p270
      %p272 = scmp.ne.s32.totalorder %s261, %s262
      %p273 = scmp.eq.s32.totalorder %s39, 0
      %p274 = por %p272, %p273
      %p275 = scmp.ne.s32.totalorder %s261, %s262
      %p276 = scmp.eq.s32.totalorder %s40, 1
      %p277 = por %p275, %p276
      %p279 = scmp.ne.s32.totalorder %s262, %s278
      %p280 = scmp.eq.s32.totalorder %s40, 0
      %p281 = por %p279, %p280
      %s282 = ssub.s32 %s34, %s41
      %p283 = scmp.eq.s32.totalorder %s282, 0
      %s285 = sadd.s32 %s284, 1
      %s286 = scalar_select %p283, %s284, %s285
      %p289 = pneg %p283
      %p290 = scmp.eq.s32.totalorder %s34, 1
      %p291 = por %p289, %p290
      %p292 = scmp.ne.s32.totalorder %s284, %s287
      %p293 = scmp.eq.s32.totalorder %s34, 0
      %p294 = por %p292, %p293
      %p295 = scmp.ne.s32.totalorder %s284, %s287
      %p296 = scmp.eq.s32.totalorder %s39, 1
      %p297 = por %p295, %p296
      %p298 = scmp.ne.s32.totalorder %s287, %s288
      %p299 = scmp.eq.s32.totalorder %s39, 0
      %p300 = por %p298, %p299
      %p301 = scmp.ne.s32.totalorder %s287, %s288
      %p302 = scmp.eq.s32.totalorder %s40, 1
      %p303 = por %p301, %p302
      %p305 = scmp.ne.s32.totalorder %s288, %s304
      %p306 = scmp.eq.s32.totalorder %s40, 0
      %p307 = por %p305, %p306
      %s308 = ssub.s32 %s34, %s41
      %p309 = scmp.eq.s32.totalorder %s308, 0
      %s311 = sadd.s32 %s310, 1
      %s312 = scalar_select %p309, %s310, %s311
      %p315 = pneg %p309
      %p316 = scmp.eq.s32.totalorder %s34, 1
      %p317 = por %p315, %p316
      %p318 = scmp.ne.s32.totalorder %s310, %s313
      %p319 = scmp.eq.s32.totalorder %s34, 0
      %p320 = por %p318, %p319
      %p321 = scmp.ne.s32.totalorder %s310, %s313
      %p322 = scmp.eq.s32.totalorder %s39, 1
      %p323 = por %p321, %p322
      %p324 = scmp.ne.s32.totalorder %s313, %s314
      %p325 = scmp.eq.s32.totalorder %s39, 0
      %p326 = por %p324, %p325
      %p327 = scmp.ne.s32.totalorder %s313, %s314
      %p328 = scmp.eq.s32.totalorder %s40, 1
      %p329 = por %p327, %p328
      %p331 = scmp.ne.s32.totalorder %s314, %s330
      %p332 = scmp.eq.s32.totalorder %s40, 0
      %p333 = por %p331, %p332
      %s334 = ssub.s32 %s34, %s41
      %p335 = scmp.eq.s32.totalorder %s334, 0
      %s337 = sadd.s32 %s336, 1
      %s338 = scalar_select %p335, %s336, %s337
      %p341 = pneg %p335
      %p342 = scmp.eq.s32.totalorder %s34, 1
      %p343 = por %p341, %p342
      %p344 = scmp.ne.s32.totalorder %s336, %s339
      %p345 = scmp.eq.s32.totalorder %s34, 0
      %p346 = por %p344, %p345
      %p347 = scmp.ne.s32.totalorder %s336, %s339
      %p348 = scmp.eq.s32.totalorder %s39, 1
      %p349 = por %p347, %p348
      %p350 = scmp.ne.s32.totalorder %s339, %s340
      %p351 = scmp.eq.s32.totalorder %s39, 0
      %p352 = por %p350, %p351
      %p353 = scmp.ne.s32.totalorder %s339, %s340
      %p354 = scmp.eq.s32.totalorder %s40, 1
      %p355 = por %p353, %p354
      %p357 = scmp.ne.s32.totalorder %s340, %s356
      %p358 = scmp.eq.s32.totalorder %s40, 0
      %p359 = por %p357, %p358
      %s360 = ssub.s32 %s34, %s41
      %p361 = scmp.eq.s32.totalorder %s360, 0
      %s363 = sadd.s32 %s362, 1
      %s364 = scalar_select %p361, %s362, %s363
      %p367 = pneg %p361
      %p368 = scmp.eq.s32.totalorder %s34, 1
      %p369 = por %p367, %p368
      %p370 = scmp.ne.s32.totalorder %s362, %s365
      %p371 = scmp.eq.s32.totalorder %s34, 0
      %p372 = por %p370, %p371
      %p373 = scmp.ne.s32.totalorder %s362, %s365
      %p374 = scmp.eq.s32.totalorder %s39, 1
      %p375 = por %p373, %p374
      %p376 = scmp.ne.s32.totalorder %s365, %s366
      %p377 = scmp.eq.s32.totalorder %s39, 0
      %p378 = por %p376, %p377
      %p379 = scmp.ne.s32.totalorder %s365, %s366
      %p380 = scmp.eq.s32.totalorder %s40, 1
      %p381 = por %p379, %p380
      %p383 = scmp.ne.s32.totalorder %s366, %s382
      %p384 = scmp.eq.s32.totalorder %s40, 0
      %p385 = por %p383, %p384
      %s386 = ssub.s32 %s34, %s41
      %p387 = scmp.eq.s32.totalorder %s386, 0
      %s389 = sadd.s32 %s388, 1
      %s390 = scalar_select %p387, %s388, %s389
      %p393 = pneg %p387
      %p394 = scmp.eq.s32.totalorder %s34, 1
      %p395 = por %p393, %p394
      %p396 = scmp.ne.s32.totalorder %s388, %s391
      %p397 = scmp.eq.s32.totalorder %s34, 0
      %p398 = por %p396, %p397
      %p399 = scmp.ne.s32.totalorder %s388, %s391
      %p400 = scmp.eq.s32.totalorder %s39, 1
      %p401 = por %p399, %p400
      %p402 = scmp.ne.s32.totalorder %s391, %s392
      %p403 = scmp.eq.s32.totalorder %s39, 0
      %p404 = por %p402, %p403
      %p405 = scmp.ne.s32.totalorder %s391, %s392
      %p406 = scmp.eq.s32.totalorder %s40, 1
      %p407 = por %p405, %p406
      %p409 = scmp.ne.s32.totalorder %s392, %s408
      %p410 = scmp.eq.s32.totalorder %s40, 0
      %p411 = por %p409, %p410
      %s412 = ssub.s32 %s34, %s41
      %p413 = scmp.eq.s32.totalorder %s412, 0
      %s415 = sadd.s32 %s414, 1
      %s416 = scalar_select %p413, %s414, %s415
      %p419 = pneg %p413
      %p420 = scmp.eq.s32.totalorder %s34, 1
      %p421 = por %p419, %p420
      %p422 = scmp.ne.s32.totalorder %s414, %s417
      %p423 = scmp.eq.s32.totalorder %s34, 0
      %p424 = por %p422, %p423
      %p425 = scmp.ne.s32.totalorder %s414, %s417
      %p426 = scmp.eq.s32.totalorder %s39, 1
      %p427 = por %p425, %p426
      %p428 = scmp.ne.s32.totalorder %s417, %s418
      %p429 = scmp.eq.s32.totalorder %s39, 0
      %p430 = por %p428, %p429
      %p431 = scmp.ne.s32.totalorder %s417, %s418
      %p432 = scmp.eq.s32.totalorder %s40, 1
      %p433 = por %p431, %p432
      %p435 = scmp.ne.s32.totalorder %s418, %s434
      %p436 = scmp.eq.s32.totalorder %s40, 0
      %p437 = por %p435, %p436
      %s439 = sadd.s32 %s438, 1
      %p442 = scmp.eq.s32.totalorder %s34, 1
      %p443 = scmp.ne.s32.totalorder %s438, %s440
      %p444 = scmp.eq.s32.totalorder %s34, 0
      %p445 = por %p443, %p444
      %p446 = scmp.ne.s32.totalorder %s438, %s440
      %p447 = scmp.eq.s32.totalorder %s39, 1
      %p448 = por %p446, %p447
      %p449 = scmp.ne.s32.totalorder %s440, %s441
      %p450 = scmp.eq.s32.totalorder %s39, 0
      %p451 = por %p449, %p450
      %p452 = scmp.ne.s32.totalorder %s440, %s441
      %p453 = scmp.eq.s32.totalorder %s40, 1
      %p454 = por %p452, %p453
      %p456 = scmp.ne.s32.totalorder %s441, %s455
      %p457 = scmp.eq.s32.totalorder %s40, 0
      %p458 = por %p456, %p457
      %s460 = sadd.s32 %s459, 1
      %p463 = scmp.eq.s32.totalorder %s34, 1
      %p464 = scmp.ne.s32.totalorder %s459, %s461
      %p465 = scmp.eq.s32.totalorder %s34, 0
      %p466 = por %p464, %p465
      %p467 = scmp.ne.s32.totalorder %s459, %s461
      %p468 = scmp.eq.s32.totalorder %s39, 1
      %p469 = por %p467, %p468
      %p470 = scmp.ne.s32.totalorder %s461, %s462
      %p471 = scmp.eq.s32.totalorder %s39, 0
      %p472 = por %p470, %p471
      %p473 = scmp.ne.s32.totalorder %s461, %s462
      %p474 = scmp.eq.s32.totalorder %s40, 1
      %p475 = por %p473, %p474
      %p477 = scmp.ne.s32.totalorder %s462, %s476
      %p478 = scmp.eq.s32.totalorder %s40, 0
      %p479 = por %p477, %p478
      %s481 = sadd.s32 %s480, 1
      %p484 = scmp.eq.s32.totalorder %s34, 1
      %p485 = scmp.ne.s32.totalorder %s480, %s482
      %p486 = scmp.eq.s32.totalorder %s34, 0
      %p487 = por %p485, %p486
      %p488 = scmp.ne.s32.totalorder %s480, %s482
      %p489 = scmp.eq.s32.totalorder %s39, 1
      %p490 = por %p488, %p489
      %p491 = scmp.ne.s32.totalorder %s482, %s483
      %p492 = scmp.eq.s32.totalorder %s39, 0
      %p493 = por %p491, %p492
      %p494 = scmp.ne.s32.totalorder %s482, %s483
      %p495 = scmp.eq.s32.totalorder %s40, 1
      %p496 = por %p494, %p495
      %p498 = scmp.ne.s32.totalorder %s483, %s497
      %p499 = scmp.eq.s32.totalorder %s40, 0
      %p500 = por %p498, %p499
      %s501 = ssub.s32 %s34, %s41
      %p502 = scmp.eq.s32.totalorder %s501, 0
      %s504 = sadd.s32 %s503, 1
      %s505 = scalar_select %p502, %s503, %s504
      %p508 = pneg %p502
      %p509 = scmp.eq.s32.totalorder %s34, 1
      %p510 = por %p508, %p509
      %p511 = scmp.ne.s32.totalorder %s503, %s506
      %p512 = scmp.eq.s32.totalorder %s34, 0
      %p513 = por %p511, %p512
      %p514 = scmp.ne.s32.totalorder %s503, %s506
      %p515 = scmp.eq.s32.totalorder %s39, 1
      %p516 = por %p514, %p515
      %p517 = scmp.ne.s32.totalorder %s506, %s507
      %p518 = scmp.eq.s32.totalorder %s39, 0
      %p519 = por %p517, %p518
      %p520 = scmp.ne.s32.totalorder %s506, %s507
      %p521 = scmp.eq.s32.totalorder %s40, 1
      %p522 = por %p520, %p521
      %p524 = scmp.ne.s32.totalorder %s507, %s523
      %p525 = scmp.eq.s32.totalorder %s40, 0
      %p526 = por %p524, %p525
      %s527 = ssub.s32 %s34, %s41
      %p528 = scmp.eq.s32.totalorder %s527, 0
      %s530 = sadd.s32 %s529, 1
      %s531 = scalar_select %p528, %s529, %s530
      %p534 = pneg %p528
      %p535 = scmp.eq.s32.totalorder %s34, 1
      %p536 = por %p534, %p535
      %p537 = scmp.ne.s32.totalorder %s529, %s532
      %p538 = scmp.eq.s32.totalorder %s34, 0
      %p539 = por %p537, %p538
      %p540 = scmp.ne.s32.totalorder %s529, %s532
      %p541 = scmp.eq.s32.totalorder %s39, 1
      %p542 = por %p540, %p541
      %p543 = scmp.ne.s32.totalorder %s532, %s533
      %p544 = scmp.eq.s32.totalorder %s39, 0
      %p545 = por %p543, %p544
      %p546 = scmp.ne.s32.totalorder %s532, %s533
      %p547 = scmp.eq.s32.totalorder %s40, 1
      %p548 = por %p546, %p547
      %p550 = scmp.ne.s32.totalorder %s533, %s549
      %p551 = scmp.eq.s32.totalorder %s40, 0
      %p552 = por %p550, %p551
      %s553 = ssub.s32 %s34, %s41
      %p554 = scmp.eq.s32.totalorder %s553, 0
      %s556 = sadd.s32 %s555, 1
      %s557 = scalar_select %p554, %s555, %s556
      %p560 = pneg %p554
      %p561 = scmp.eq.s32.totalorder %s34, 1
      %p562 = por %p560, %p561
      %p563 = scmp.ne.s32.totalorder %s555, %s558
      %p564 = scmp.eq.s32.totalorder %s34, 0
      %p565 = por %p563, %p564
      %p566 = scmp.ne.s32.totalorder %s555, %s558
      %p567 = scmp.eq.s32.totalorder %s39, 1
      %p568 = por %p566, %p567
      %p569 = scmp.ne.s32.totalorder %s558, %s559
      %p570 = scmp.eq.s32.totalorder %s39, 0
      %p571 = por %p569, %p570
      %p572 = scmp.ne.s32.totalorder %s558, %s559
      %p573 = scmp.eq.s32.totalorder %s40, 1
      %p574 = por %p572, %p573
      %p576 = scmp.ne.s32.totalorder %s559, %s575
      %p577 = scmp.eq.s32.totalorder %s40, 0
      %p578 = por %p576, %p577
      %s579 = ssub.s32 %s34, %s41
      %p580 = scmp.eq.s32.totalorder %s579, 0
      %s582 = sadd.s32 %s581, 1
      %s583 = scalar_select %p580, %s581, %s582
      %p586 = pneg %p580
      %p587 = scmp.eq.s32.totalorder %s34, 1
      %p588 = por %p586, %p587
      %p589 = scmp.ne.s32.totalorder %s581, %s584
      %p590 = scmp.eq.s32.totalorder %s34, 0
      %p591 = por %p589, %p590
      %p592 = scmp.ne.s32.totalorder %s581, %s584
      %p593 = scmp.eq.s32.totalorder %s39, 1
      %p594 = por %p592, %p593
      %p595 = scmp.ne.s32.totalorder %s584, %s585
      %p596 = scmp.eq.s32.totalorder %s39, 0
      %p597 = por %p595, %p596
      %p598 = scmp.ne.s32.totalorder %s584, %s585
      %p599 = scmp.eq.s32.totalorder %s40, 1
      %p600 = por %p598, %p599
      %p602 = scmp.ne.s32.totalorder %s585, %s601
      %p603 = scmp.eq.s32.totalorder %s40, 0
      %p604 = por %p602, %p603
      %s605 = ssub.s32 %s34, %s41
      %p606 = scmp.eq.s32.totalorder %s605, 0
      %s608 = sadd.s32 %s607, 1
      %s609 = scalar_select %p606, %s607, %s608
      %p612 = pneg %p606
      %p613 = scmp.eq.s32.totalorder %s34, 1
      %p614 = por %p612, %p613
      %p615 = scmp.ne.s32.totalorder %s607, %s610
      %p616 = scmp.eq.s32.totalorder %s34, 0
      %p617 = por %p615, %p616
      %p618 = scmp.ne.s32.totalorder %s607, %s610
      %p619 = scmp.eq.s32.totalorder %s39, 1
      %p620 = por %p618, %p619
      %p621 = scmp.ne.s32.totalorder %s610, %s611
      %p622 = scmp.eq.s32.totalorder %s39, 0
      %p623 = por %p621, %p622
      %p624 = scmp.ne.s32.totalorder %s610, %s611
      %p625 = scmp.eq.s32.totalorder %s40, 1
      %p626 = por %p624, %p625
      %p628 = scmp.ne.s32.totalorder %s611, %s627
      %p629 = scmp.eq.s32.totalorder %s40, 0
      %p630 = por %p628, %p629
      %s631 = ssub.s32 %s34, %s41
      %p632 = scmp.eq.s32.totalorder %s631, 0
      %s634 = sadd.s32 %s633, 1
      %s635 = scalar_select %p632, %s633, %s634
      %p638 = pneg %p632
      %p639 = scmp.eq.s32.totalorder %s34, 1
      %p640 = por %p638, %p639
      %p641 = scmp.ne.s32.totalorder %s633, %s636
      %p642 = scmp.eq.s32.totalorder %s34, 0
      %p643 = por %p641, %p642
      %p644 = scmp.ne.s32.totalorder %s633, %s636
      %p645 = scmp.eq.s32.totalorder %s39, 1
      %p646 = por %p644, %p645
      %p647 = scmp.ne.s32.totalorder %s636, %s637
      %p648 = scmp.eq.s32.totalorder %s39, 0
      %p649 = por %p647, %p648
      %p650 = scmp.ne.s32.totalorder %s636, %s637
      %p651 = scmp.eq.s32.totalorder %s40, 1
      %p652 = por %p650, %p651
      %p654 = scmp.ne.s32.totalorder %s637, %s653
      %p655 = scmp.eq.s32.totalorder %s40, 0
      %p656 = por %p654, %p655
      %s658 = sadd.s32 %s657, 1
      %p661 = scmp.eq.s32.totalorder %s34, 1
      %p662 = scmp.ne.s32.totalorder %s657, %s659
      %p663 = scmp.eq.s32.totalorder %s34, 0
      %p664 = por %p662, %p663
      %p665 = scmp.ne.s32.totalorder %s657, %s659
      %p666 = scmp.eq.s32.totalorder %s39, 1
      %p667 = por %p665, %p666
      %p668 = scmp.ne.s32.totalorder %s659, %s660
      %p669 = scmp.eq.s32.totalorder %s39, 0
      %p670 = por %p668, %p669
      %p671 = scmp.ne.s32.totalorder %s659, %s660
      %p672 = scmp.eq.s32.totalorder %s40, 1
      %p673 = por %p671, %p672
      %p675 = scmp.ne.s32.totalorder %s660, %s674
      %p676 = scmp.eq.s32.totalorder %s40, 0
      %p677 = por %p675, %p676
      %p678 = scmp.le.s32.totalorder 1, %s34
      %p679 = scmp.lt.s32.totalorder %s34, 3
      %p680 = pnand %p678, %p679
      %p681 = pneg %p680
      // Predicated region
      $region9: #{bert_model_forward.1} parent=5 // pred_check
        _
      $region10: #{bert_model_forward.1} parent=5 // pred_check_branch
        %683 = sbr.rel (%p680) target = $region12
      $region11: #{bert_model_forward.1} parent=5 // pred_region
        %s684 = ssub.s32 %s34, 1
        // Predicated region
        $region13: #{bert_model_forward.1} parent=11 // pred_check
          %p685 = pneg %p55
        $region14: #{bert_model_forward.1} parent=11 // pred_check_branch
          %687 = sbr.rel (%p685) target = $region16
        $region15: #{bert_model_forward.1} parent=11 // pred_region
          _
        $region16: #{bert_model_forward.1} parent=11 // pred_fallthru
          _
        // Predicated region
        $region17: #{bert_model_forward.1} parent=11 // pred_check
          %p688 = pneg %p76
        $region18: #{bert_model_forward.1} parent=11 // pred_check_branch
          %690 = sbr.rel (%p688) target = $region20
        $region19: #{bert_model_forward.1} parent=11 // pred_region
          _
        $region20: #{bert_model_forward.1} parent=11 // pred_fallthru
          _
        // Predicated region
        $region21: #{bert_model_forward.1} parent=11 // pred_check
          %p691 = pneg %p97
        $region22: #{bert_model_forward.1} parent=11 // pred_check_branch
          %693 = sbr.rel (%p691) target = $region24
        $region23: #{bert_model_forward.1} parent=11 // pred_region
          _
        $region24: #{bert_model_forward.1} parent=11 // pred_fallthru
          _
        // Predicated region
        $region25: #{bert_model_forward.1} parent=11 // pred_check
          %p694 = pneg %p118
        $region26: #{bert_model_forward.1} parent=11 // pred_check_branch
          %696 = sbr.rel (%p694) target = $region28
        $region27: #{bert_model_forward.1} parent=11 // pred_region
          _
        $region28: #{bert_model_forward.1} parent=11 // pred_fallthru
          _
        // Predicated region
        $region29: #{bert_model_forward.1} parent=11 // pred_check
          %p697 = pneg %p451
        $region30: #{bert_model_forward.1} parent=11 // pred_check_branch
          %699 = sbr.rel (%p697) target = $region32
        $region31: #{bert_model_forward.1} parent=11 // pred_region
          _
        $region32: #{bert_model_forward.1} parent=11 // pred_fallthru
          _
        // Predicated region
        $region33: #{bert_model_forward.1} parent=11 // pred_check
          %p700 = pneg %p472
        $region34: #{bert_model_forward.1} parent=11 // pred_check_branch
          %702 = sbr.rel (%p700) target = $region36
        $region35: #{bert_model_forward.1} parent=11 // pred_region
          _
        $region36: #{bert_model_forward.1} parent=11 // pred_fallthru
          _
      $region12: #{bert_model_forward.1} parent=5 // pred_fallthru
        _
      %p703 = scmp.lt.s32.totalorder %s34, 2
      // Predicated region
      $region37: #{bert_model_forward.1} parent=5 // pred_check
        %p704 = pneg %p703
      $region38: #{bert_model_forward.1} parent=5 // pred_check_branch
        %706 = sbr.rel (%p704) target = $region40
      $region39: #{bert_model_forward.1} parent=5 // pred_region
        // Predicated region
        $region41: #{bert_model_forward.1} parent=39 // pred_check
          %p707 = pneg %p138
        $region42: #{bert_model_forward.1} parent=39 // pred_check_branch
          %709 = sbr.rel (%p707) target = $region44
        $region43: #{bert_model_forward.1} parent=39 // pred_region
          %p710 = scmp.lt.s32.totalorder %s34, 1
          %s711 = scalar_select %p710, %s34, 1
          %s712 = smul.addr %s711, 4
          %s713 = smul.addr %s712, 4
          %s714 = scalar_lea.vmem %s4, %s713
        $region44: #{bert_model_forward.1} parent=39 // pred_fallthru
          _
        // Predicated region
        $region45: #{bert_model_forward.1} parent=39 // pred_check
          %p715 = pneg %p164
        $region46: #{bert_model_forward.1} parent=39 // pred_check_branch
          %717 = sbr.rel (%p715) target = $region48
        $region47: #{bert_model_forward.1} parent=39 // pred_region
          %p718 = scmp.lt.s32.totalorder %s34, 1
          %s719 = scalar_select %p718, %s34, 1
          %s720 = scalar_lea.vmem %s5, %s719
        $region48: #{bert_model_forward.1} parent=39 // pred_fallthru
          _
        // Predicated region
        $region49: #{bert_model_forward.1} parent=39 // pred_check
          %p721 = pneg %p190
        $region50: #{bert_model_forward.1} parent=39 // pred_check_branch
          %723 = sbr.rel (%p721) target = $region52
        $region51: #{bert_model_forward.1} parent=39 // pred_region
          %p724 = scmp.lt.s32.totalorder %s34, 1
          %s725 = scalar_select %p724, %s34, 1
          %s726 = smul.addr %s725, 4
          %s727 = smul.addr %s726, 4
          %s728 = scalar_lea.vmem %s6, %s727
        $region52: #{bert_model_forward.1} parent=39 // pred_fallthru
          _
        // Predicated region
        $region53: #{bert_model_forward.1} parent=39 // pred_check
          %p729 = pneg %p216
        $region54: #{bert_model_forward.1} parent=39 // pred_check_branch
          %731 = sbr.rel (%p729) target = $region56
        $region55: #{bert_model_forward.1} parent=39 // pred_region
          %p732 = scmp.lt.s32.totalorder %s34, 1
          %s733 = scalar_select %p732, %s34, 1
          %s734 = scalar_lea.vmem %s7, %s733
        $region56: #{bert_model_forward.1} parent=39 // pred_fallthru
          _
        // Predicated region
        $region57: #{bert_model_forward.1} parent=39 // pred_check
          %p735 = pneg %p242
        $region58: #{bert_model_forward.1} parent=39 // pred_check_branch
          %737 = sbr.rel (%p735) target = $region60
        $region59: #{bert_model_forward.1} parent=39 // pred_region
          %p738 = scmp.lt.s32.totalorder %s34, 1
          %s739 = scalar_select %p738, %s34, 1
          %s740 = scalar_lea.vmem %s8, %s739
        $region60: #{bert_model_forward.1} parent=39 // pred_fallthru
          _
        // Predicated region
        $region61: #{bert_model_forward.1} parent=39 // pred_check
          %p741 = pneg %p268
        $region62: #{bert_model_forward.1} parent=39 // pred_check_branch
          %743 = sbr.rel (%p741) target = $region64
        $region63: #{bert_model_forward.1} parent=39 // pred_region
          %p744 = scmp.lt.s32.totalorder %s34, 1
          %s745 = scalar_select %p744, %s34, 1
          %s746 = scalar_lea.vmem %s9, %s745
        $region64: #{bert_model_forward.1} parent=39 // pred_fallthru
          _
        // Predicated region
        $region65: #{bert_model_forward.1} parent=39 // pred_check
          %p747 = pneg %p294
        $region66: #{bert_model_forward.1} parent=39 // pred_check_branch
          %749 = sbr.rel (%p747) target = $region68
        $region67: #{bert_model_forward.1} parent=39 // pred_region
          %p750 = scmp.lt.s32.totalorder %s34, 1
          %s751 = scalar_select %p750, %s34, 1
          %s752 = smul.addr %s751, 4
          %s753 = smul.addr %s752, 4
          %s754 = scalar_lea.vmem %s10, %s753
        $region68: #{bert_model_forward.1} parent=39 // pred_fallthru
          _
        // Predicated region
        $region69: #{bert_model_forward.1} parent=39 // pred_check
          %p755 = pneg %p320
        $region70: #{bert_model_forward.1} parent=39 // pred_check_branch
          %757 = sbr.rel (%p755) target = $region72
        $region71: #{bert_model_forward.1} parent=39 // pred_region
          %p758 = scmp.lt.s32.totalorder %s34, 1
          %s759 = scalar_select %p758, %s34, 1
          %s760 = scalar_lea.vmem %s11, %s759
        $region72: #{bert_model_forward.1} parent=39 // pred_fallthru
          _
        // Predicated region
        $region73: #{bert_model_forward.1} parent=39 // pred_check
          %p761 = pneg %p346
        $region74: #{bert_model_forward.1} parent=39 // pred_check_branch
          %763 = sbr.rel (%p761) target = $region76
        $region75: #{bert_model_forward.1} parent=39 // pred_region
          %p764 = scmp.lt.s32.totalorder %s34, 1
          %s765 = scalar_select %p764, %s34, 1
          %s766 = smul.addr %s765, 8
          %s767 = smul.addr %s766, 4
          %s768 = scalar_lea.vmem %s12, %s767
        $region76: #{bert_model_forward.1} parent=39 // pred_fallthru
          _
        // Predicated region
        $region77: #{bert_model_forward.1} parent=39 // pred_check
          %p769 = pneg %p372
        $region78: #{bert_model_forward.1} parent=39 // pred_check_branch
          %771 = sbr.rel (%p769) target = $region80
        $region79: #{bert_model_forward.1} parent=39 // pred_region
          %p772 = scmp.lt.s32.totalorder %s34, 1
          %s773 = scalar_select %p772, %s34, 1
          %s774 = scalar_lea.vmem %s13, %s773
        $region80: #{bert_model_forward.1} parent=39 // pred_fallthru
          _
        // Predicated region
        $region81: #{bert_model_forward.1} parent=39 // pred_check
          %p775 = pneg %p398
        $region82: #{bert_model_forward.1} parent=39 // pred_check_branch
          %777 = sbr.rel (%p775) target = $region84
        $region83: #{bert_model_forward.1} parent=39 // pred_region
          %p778 = scmp.lt.s32.totalorder %s34, 1
          %s779 = scalar_select %p778, %s34, 1
          %s780 = scalar_lea.vmem %s14, %s779
        $region84: #{bert_model_forward.1} parent=39 // pred_fallthru
          _
        // Predicated region
        $region85: #{bert_model_forward.1} parent=39 // pred_check
          %p781 = pneg %p424
        $region86: #{bert_model_forward.1} parent=39 // pred_check_branch
          %783 = sbr.rel (%p781) target = $region88
        $region87: #{bert_model_forward.1} parent=39 // pred_region
          %p784 = scmp.lt.s32.totalorder %s34, 1
          %s785 = scalar_select %p784, %s34, 1
          %s786 = scalar_lea.vmem %s15, %s785
        $region88: #{bert_model_forward.1} parent=39 // pred_fallthru
          _
      $region40: #{bert_model_forward.1} parent=5 // pred_fallthru
        _
      %p787 = scmp.le.s32.totalorder 1, %s34
      %p788 = scmp.lt.s32.totalorder %s34, 3
      %p789 = pnand %p787, %p788
      %p790 = pneg %p789
      // Predicated region
      $region89: #{bert_model_forward.1} parent=5 // pred_check
        _
      $region90: #{bert_model_forward.1} parent=5 // pred_check_branch
        %792 = sbr.rel (%p789) target = $region92
      $region91: #{bert_model_forward.1} parent=5 // pred_region
        %s793 = ssub.s32 %s34, 1
        %p794 = pneg %p55
        %p795 = pneg %p52
        %p796 = pneg %p76
        %p797 = pneg %p73
        %p798 = pneg %p97
        %p799 = pneg %p94
        %p800 = pneg %p118
        %p801 = pneg %p115
        %p802 = scmp.lt.s32.totalorder %s39, 1
        %s803 = scalar_select %p802, %s39, 1
        %s804 = smul.addr %s803, 4
        %s805 = smul.addr %s804, 4
        %s806 = scalar_lea.vmem %s4, %s805
        %p807 = pneg %p144
        %p808 = pneg %p141
        %p809 = scmp.lt.s32.totalorder %s39, 1
        %s810 = scalar_select %p809, %s39, 1
        %s811 = scalar_lea.vmem %s5, %s810
        %p812 = pneg %p170
        %p813 = pneg %p167
        %p814 = scmp.lt.s32.totalorder %s39, 1
        %s815 = scalar_select %p814, %s39, 1
        %s816 = smul.addr %s815, 4
        %s817 = smul.addr %s816, 4
        %s818 = scalar_lea.vmem %s6, %s817
        %p819 = pneg %p196
        %p820 = pneg %p193
        %p821 = scmp.lt.s32.totalorder %s39, 1
        %s822 = scalar_select %p821, %s39, 1
        %s823 = scalar_lea.vmem %s7, %s822
        %p824 = pneg %p222
        %p825 = pneg %p219
        %p826 = scmp.lt.s32.totalorder %s39, 1
        %s827 = scalar_select %p826, %s39, 1
        %s828 = scalar_lea.vmem %s8, %s827
        %p829 = pneg %p248
        %p830 = pneg %p245
        %p831 = scmp.lt.s32.totalorder %s39, 1
        %s832 = scalar_select %p831, %s39, 1
        %s833 = scalar_lea.vmem %s9, %s832
        %p834 = pneg %p274
        %p835 = pneg %p271
        %p836 = scmp.lt.s32.totalorder %s39, 1
        %s837 = scalar_select %p836, %s39, 1
        %s838 = smul.addr %s837, 4
        %s839 = smul.addr %s838, 4
        %s840 = scalar_lea.vmem %s10, %s839
        %p841 = pneg %p300
        %p842 = pneg %p297
        %p843 = scmp.lt.s32.totalorder %s39, 1
        %s844 = scalar_select %p843, %s39, 1
        %s845 = scalar_lea.vmem %s11, %s844
        %p846 = pneg %p326
        %p847 = pneg %p323
        %p848 = scmp.lt.s32.totalorder %s39, 1
        %s849 = scalar_select %p848, %s39, 1
        %s850 = smul.addr %s849, 8
        %s851 = smul.addr %s850, 4
        %s852 = scalar_lea.vmem %s12, %s851
        %p853 = pneg %p352
        %p854 = pneg %p349
        %p855 = scmp.lt.s32.totalorder %s39, 1
        %s856 = scalar_select %p855, %s39, 1
        %s857 = scalar_lea.vmem %s13, %s856
        %p858 = pneg %p378
        %p859 = pneg %p375
        %p860 = scmp.lt.s32.totalorder %s39, 1
        %s861 = scalar_select %p860, %s39, 1
        %s862 = scalar_lea.vmem %s14, %s861
        %p863 = pneg %p404
        %p864 = pneg %p401
        %p865 = scmp.lt.s32.totalorder %s39, 1
        %s866 = scalar_select %p865, %s39, 1
        %s867 = scalar_lea.vmem %s15, %s866
        %p868 = pneg %p430
        %p869 = pneg %p427
        %p870 = pneg %p451
        %p871 = pneg %p448
        %p872 = pneg %p472
        %p873 = pneg %p469
        %p874 = pneg %p493
        %p875 = pneg %p490
        %p876 = pneg %p519
        %p877 = pneg %p516
        %p878 = scmp.lt.s32.totalorder %s39, 1
        %s879 = scalar_select %p878, %s39, 1
        %s880 = smul.addr %s879, 2
        %s881 = smul.addr %s880, 8
        %s882 = scalar_lea.vmem %s19, %s881
        %p883 = pneg %p545
        %p884 = pneg %p542
        %p885 = scmp.lt.s32.totalorder %s39, 1
        %s886 = scalar_select %p885, %s39, 1
        %s887 = smul.addr %s886, 8
        %s888 = smul.addr %s887, 8
        %s889 = scalar_lea.vmem %s20, %s888
        %p890 = pneg %p571
        %p891 = pneg %p568
        %p892 = scmp.lt.s32.totalorder %s39, 1
        %s893 = scalar_select %p892, %s39, 1
        %s894 = smul.addr %s893, 8
        %s895 = smul.addr %s894, 8
        %s896 = scalar_lea.vmem %s21, %s895
        %p897 = pneg %p597
        %p898 = pneg %p594
        %p899 = scmp.lt.s32.totalorder %s39, 1
        %s900 = scalar_select %p899, %s39, 1
        %s901 = smul.addr %s900, 8
        %s902 = smul.addr %s901, 8
        %s903 = scalar_lea.vmem %s22, %s902
        %p904 = pneg %p623
        %p905 = pneg %p620
        %p906 = scmp.lt.s32.totalorder %s39, 1
        %s907 = scalar_select %p906, %s39, 1
        %s908 = smul.addr %s907, 2
        %s909 = smul.addr %s908, 8
        %s910 = scalar_lea.vmem %s23, %s909
        %p911 = pneg %p649
        %p912 = pneg %p646
        %p913 = scmp.lt.s32.totalorder %s39, 1
        %s914 = scalar_select %p913, %s39, 1
        %s915 = smul.addr %s914, 2
        %s916 = smul.addr %s915, 8
        %s917 = scalar_lea.vmem %s24, %s916
        %p918 = pneg %p670
        %p919 = pneg %p667
        %p920 = scmp.lt.s32.totalorder %s39, 1
        %s921 = scalar_select %p920, %s39, 1
        %s922 = smul.addr %s921, 4
        %s923 = smul.addr %s922, 4
        %s924 = scalar_lea.vmem %s4, %s923
        %p925 = scmp.lt.s32.totalorder %s39, 1
        %s926 = scalar_select %p925, %s39, 1
        %s927 = scalar_lea.vmem %s5, %s926
        %p928 = scmp.lt.s32.totalorder %s39, 1
        %s929 = scalar_select %p928, %s39, 1
        %s930 = smul.addr %s929, 4
        %s931 = smul.addr %s930, 4
        %s932 = scalar_lea.vmem %s6, %s931
        %p933 = scmp.lt.s32.totalorder %s39, 1
        %s934 = scalar_select %p933, %s39, 1
        %s935 = scalar_lea.vmem %s7, %s934
        %p936 = scmp.lt.s32.totalorder %s39, 1
        %s937 = scalar_select %p936, %s39, 1
        %s938 = scalar_lea.vmem %s8, %s937
        %p939 = scmp.lt.s32.totalorder %s39, 1
        %s940 = scalar_select %p939, %s39, 1
        %s941 = scalar_lea.vmem %s9, %s940
        %p942 = scmp.lt.s32.totalorder %s39, 1
        %s943 = scalar_select %p942, %s39, 1
        %s944 = smul.addr %s943, 4
        %s945 = smul.addr %s944, 4
        %s946 = scalar_lea.vmem %s10, %s945
        %p947 = scmp.lt.s32.totalorder %s39, 1
        %s948 = scalar_select %p947, %s39, 1
        %s949 = scalar_lea.vmem %s11, %s948
        %p950 = scmp.lt.s32.totalorder %s39, 1
        %s951 = scalar_select %p950, %s39, 1
        %s952 = smul.addr %s951, 8
        %s953 = smul.addr %s952, 4
        %s954 = scalar_lea.vmem %s12, %s953
        %p955 = scmp.lt.s32.totalorder %s39, 1
        %s956 = scalar_select %p955, %s39, 1
        %s957 = scalar_lea.vmem %s13, %s956
        %p958 = scmp.lt.s32.totalorder %s39, 1
        %s959 = scalar_select %p958, %s39, 1
        %s960 = scalar_lea.vmem %s14, %s959
        %p961 = scmp.lt.s32.totalorder %s39, 1
        %s962 = scalar_select %p961, %s39, 1
        %s963 = scalar_lea.vmem %s15, %s962
        %p964 = scmp.lt.s32.totalorder %s39, 1
        %s965 = scalar_select %p964, %s39, 1
        %s966 = smul.addr %s965, 2
        %s967 = smul.addr %s966, 8
        %s968 = scalar_lea.vmem %s19, %s967
        %p969 = scmp.lt.s32.totalorder %s39, 1
        %s970 = scalar_select %p969, %s39, 1
        %s971 = smul.addr %s970, 8
        %s972 = smul.addr %s971, 8
        %s973 = scalar_lea.vmem %s20, %s972
        %p974 = scmp.lt.s32.totalorder %s39, 1
        %s975 = scalar_select %p974, %s39, 1
        %s976 = smul.addr %s975, 8
        %s977 = smul.addr %s976, 8
        %s978 = scalar_lea.vmem %s21, %s977
        %p979 = scmp.lt.s32.totalorder %s39, 1
        %s980 = scalar_select %p979, %s39, 1
        %s981 = smul.addr %s980, 8
        %s982 = smul.addr %s981, 8
        %s983 = scalar_lea.vmem %s22, %s982
        %p984 = scmp.lt.s32.totalorder %s39, 1
        %s985 = scalar_select %p984, %s39, 1
        %s986 = smul.addr %s985, 2
        %s987 = smul.addr %s986, 8
        %s988 = scalar_lea.vmem %s23, %s987
        %p989 = scmp.lt.s32.totalorder %s39, 1
        %s990 = scalar_select %p989, %s39, 1
        %s991 = smul.addr %s990, 2
        %s992 = smul.addr %s991, 8
        %s993 = scalar_lea.vmem %s24, %s992
        %p995 = scmp.eq.s32.totalorder %s39, 0
        // Predicated region
        $region93: #{bert_model_forward.1} parent=91 // pred_check
          %p996 = pneg %p995
        $region94: #{bert_model_forward.1} parent=91 // pred_check_branch
          %998 = sbr.rel (%p996) target = $region96
        $region95: #{bert_model_forward.1} parent=91 // pred_region
          %v999 = vld [vmem:[%s0] sm:$0xff]
          %v1000 = vld [vmem:[%s0 + $0x8] sm:$0xff]
          %v1001 = vld [vmem:[%s2] sm:$0x1]
          %v1002 = vld [vmem:[%s3] sm:$0x1]
          %vm1003 = vcmask 261120
          %v1004 = vsel %vm1003, %v999, 0.0
          %1005 = vadd.xlane.f32.xlu0 %v1004
          %v1006 = vpop.xlane.xlu0 %1005
          %v1007 = vsel %vm1003, %v1000, 0.0
          %1008 = vadd.xlane.f32.xlu0 %v1007
          %v1009 = vpop.xlane.xlu0 %1008
          %v1010 = vrcp.pop 32.0
          %v1011 = vmul.f32 %v1006, %v1010
          %v1012 = vmul.f32 %v1009, %v1010
          %v1013 = vsub.f32 %v999, %v1011
          %v1014 = vsub.f32 %v1000, %v1012
          %v1015 = vmul.f32 %v1013, %v1013
          %v1016 = vmul.f32 %v1014, %v1014
          %v1017 = vsel %vm1003, %v1015, 0.0
          %1018 = vadd.xlane.f32.xlu0 %v1017
          %v1019 = vpop.xlane.xlu0 %1018
          %v1020 = vsel %vm1003, %v1016, 0.0
          %1021 = vadd.xlane.f32.xlu0 %v1020
          %v1022 = vpop.xlane.xlu0 %1021
          %v1023 = vmul.f32 %v1019, %v1010
          %v1024 = vmul.f32 %v1022, %v1010
          %v1025 = vadd.f32 %v1023, 1e-12
          %v1026 = vadd.f32 %v1024, 1e-12
          %v1027 = vrsqrt.pop %v1025
          %v1028 = vrsqrt.pop %v1026
          %v1029 = vmul.f32 %v1013, %v1027
          %v1030 = vmul.f32 %v1014, %v1028
          %v1032 = vlaneseq
          %v1033 = vshrl.u32 %v1032, 7
          %v1034 = vsub.s32 0, %v1033
          %v1035 = vrot.slane %v1001, %v1034
          %v1037 = vmul.f32 %v1029, %v1035
          %v1038 = vmul.f32 %v1030, %v1035
          %v1040 = vlaneseq
          %v1041 = vshrl.u32 %v1040, 7
          %v1042 = vsub.s32 0, %v1041
          %v1043 = vrot.slane %v1002, %v1042
          %v1045 = vadd.f32 %v1037, %v1043
          %v1046 = vadd.f32 %v1038, %v1043
          %1047 = vst.msk [vmem:[#allocation3] sm:$0xff] %vm1003, %v1045
          %1048 = vst.msk [vmem:[#allocation3 + $0x8] sm:$0xff] %vm1003, %v1046
          %1049 = vst.msk [vmem:[#allocation2] sm:$0xff] %vm1003, %v1045
          %1050 = vst.msk [vmem:[#allocation2 + $0x8] sm:$0xff] %vm1003, %v1046
        $region96: #{bert_model_forward.1} parent=91 // pred_fallthru
          _
        %v1051 = vld [vmem:[#allocation2] sm:$0xff]
        %v1052 = vld [vmem:[#allocation2 + $0x8] sm:$0xff]
        %v1053 = vld [vmem:[%s1] sm:$0x3]
        %v1054 = vld [vmem:[%s924] sm:$0xf]
        %v1055 = vld [vmem:[%s924 + $0x4] sm:$0xf]
        %v1056 = vld [vmem:[%s924 + $0x8] sm:$0xf]
        %v1057 = vld [vmem:[%s924 + $0xc] sm:$0xf]
        %v1058 = vpack.c.bf16 %v1052, %v1051
        %v1059 = vld [vmem:[%s927] sm:$0x1]
        %v1061 = vlaneseq
        %v1062 = vshrl.u32 %v1061, 7
        %v1063 = vsub.s32 0, %v1062
        %v1064 = vrot.slane %v1059, %v1063
        %v1070 = vunpack.c.l.b16 %v1054
        %v1071 = vunpack.c.l.b16 %v1055
        %v1072 = vunpack.c.l.b16 %v1056
        %v1073 = vunpack.c.l.b16 %v1057
        %v1074 = vpack.c.b16 %v1071, %v1070
        %v1075 = vpack.c.b16 %v1073, %v1072
        %vm1078 = vcmask 261120
        %v1080 = vsel %vm1078, %v1058, 0
        %1082 = vmatprep.subr.bf16.mxu0 0
        %1083 = vmatpush1.bf16.msra.mxu0 %v1074
        %1084 = vmatprep.subr.bf16.mxu0 0
        %1085 = vmatpush1.bf16.msra.mxu0 %v1075
        %1086 = vmatprep.subr.bf16.mxu0 0
        %1087 = vmatpush1.bf16.msra.mxu0 0
        %1088 = vmatprep.subr.bf16.mxu0 0
        %1089 = vmatpush1.bf16.msra.mxu0 0
        %1090 = vmatprep.subr.bf16.mxu0 0
        %1091 = vmatpush1.bf16.msra.mxu0 0
        %1092 = vmatprep.subr.bf16.mxu0 0
        %1093 = vmatpush1.bf16.msra.mxu0 0
        %1094 = vmatprep.subr.bf16.mxu0 0
        %1095 = vmatpush1.bf16.msra.mxu0 0
        %1096 = vmatprep.subr.bf16.mxu0 0
        %1097 = vmatpush1.bf16.msra.mxu0 0
        %1098 = vmatprep.subr.bf16.mxu0 0
        %1099 = vmatpush1.bf16.msra.mxu0 0
        %1100 = vmatprep.subr.bf16.mxu0 0
        %1101 = vmatpush1.bf16.msra.mxu0 0
        %1102 = vmatprep.subr.bf16.mxu0 0
        %1103 = vmatpush1.bf16.msra.mxu0 0
        %1104 = vmatprep.subr.bf16.mxu0 0
        %1105 = vmatpush1.bf16.msra.mxu0 0
        %1106 = vmatprep.subr.bf16.mxu0 0
        %1107 = vmatpush1.bf16.msra.mxu0 0
        %1108 = vmatprep.subr.bf16.mxu0 0
        %1109 = vmatpush1.bf16.msra.mxu0 0
        %1110 = vmatprep.subr.bf16.mxu0 0
        %1111 = vmatpush1.bf16.msra.mxu0 0
        %1112 = vmatprep.subr.bf16.mxu0 0
        %1113 = vmatpush1.bf16.msra.mxu0 0
        %1114 = vmatprep.mubr.bf16.mxu0 0
        %1115 = vmatmul.mubr.bf16.gmra.mrb[0].mxu0 %v1080
        %v1116 = vpop.f32.mrb[0].mxu0
        %v1117 = vadd.f32 %v1064, %v1116
        %v1118 = vpop.f32.mrb[0].mxu0
        %v1119 = vpop.f32.mrb[0].mxu0
        %v1120 = vadd.f32 %v1064, %v1119
        %v1121 = vpop.f32.mrb[0].mxu0
        %1122 = vdwg.mxu0
        %1125 = vrot.lane.b32.xlu0 %v1117, 120
        %v1126 = vpop.permute.xlu0 %1125
        %1127 = vrot.lane.b32.xlu0 %v1120, 120
        %v1128 = vpop.permute.xlu0 %1127
        %1131 = vrot.lane.b32.xlu0 %v1117, 112
        %v1132 = vpop.permute.xlu0 %1131
        %1133 = vrot.lane.b32.xlu0 %v1120, 112
        %v1134 = vpop.permute.xlu0 %1133
        %1137 = vrot.lane.b32.xlu0 %v1117, 104
        %v1138 = vpop.permute.xlu0 %1137
        %1139 = vrot.lane.b32.xlu0 %v1120, 104
        %v1140 = vpop.permute.xlu0 %1139
        %v1143 = vcombine.low %v1117, %v1132
        %v1144 = vcombine.high %v1117, %v1132
        %v1146 = vunpack.c.l.s4 1983009808
        %v1147 = vunpack.c.0.s8 %v1146
        %v1148 = vlaneseq
        %v1149 = vshrl.u32 %v1148, 7
        %v1150 = vsub.s32 %v1147, %v1149
        %v1151 = vrot.slane %v1143, %v1150
        %v1153 = vunpack.c.l.s4 1983009808
        %v1154 = vunpack.c.0.s8 %v1153
        %v1155 = vlaneseq
        %v1156 = vshrl.u32 %v1155, 7
        %v1157 = vsub.s32 %v1154, %v1156
        %v1158 = vrot.slane %v1144, %v1157
        %v1159 = vcombine.low %v1126, %v1138
        %v1160 = vcombine.high %v1126, %v1138
        %v1162 = vunpack.c.l.s4 1983009808
        %v1163 = vunpack.c.0.s8 %v1162
        %v1164 = vlaneseq
        %v1165 = vshrl.u32 %v1164, 7
        %v1166 = vsub.s32 %v1163, %v1165
        %v1167 = vrot.slane %v1159, %v1166
        %v1169 = vunpack.c.l.s4 1983009808
        %v1170 = vunpack.c.0.s8 %v1169
        %v1171 = vlaneseq
        %v1172 = vshrl.u32 %v1171, 7
        %v1173 = vsub.s32 %v1170, %v1172
        %v1174 = vrot.slane %v1160, %v1173
        %v1175 = vcombine.low %v1151, %v1167
        %v1176 = vcombine.high %v1151, %v1167
        %v1178 = vunpack.c.l.s4 1934713408
        %v1179 = vunpack.c.0.s8 %v1178
        %v1180 = vlaneseq
        %v1181 = vshrl.u32 %v1180, 7
        %v1182 = vsub.s32 %v1179, %v1181
        %v1183 = vrot.slane %v1175, %v1182
        %v1185 = vunpack.c.l.s4 1934713408
        %v1186 = vunpack.c.0.s8 %v1185
        %v1187 = vlaneseq
        %v1188 = vshrl.u32 %v1187, 7
        %v1189 = vsub.s32 %v1186, %v1188
        %v1190 = vrot.slane %v1176, %v1189
        %v1191 = vcombine.low %v1158, %v1174
        %v1192 = vcombine.high %v1158, %v1174
        %v1194 = vunpack.c.l.s4 1934713408
        %v1195 = vunpack.c.0.s8 %v1194
        %v1196 = vlaneseq
        %v1197 = vshrl.u32 %v1196, 7
        %v1198 = vsub.s32 %v1195, %v1197
        %v1199 = vrot.slane %v1191, %v1198
        %v1201 = vunpack.c.l.s4 1934713408
        %v1202 = vunpack.c.0.s8 %v1201
        %v1203 = vlaneseq
        %v1204 = vshrl.u32 %v1203, 7
        %v1205 = vsub.s32 %v1202, %v1204
        %v1206 = vrot.slane %v1192, %v1205
        %v1207 = vcombine.high %v1183, 0.0
        %v1208 = vcombine.high %v1190, 0.0
        %v1209 = vcombine.high %v1199, 0.0
        %v1210 = vcombine.high %v1206, 0.0
        %v1211 = vcombine.low %v1120, %v1134
        %v1212 = vcombine.high %v1120, %v1134
        %v1214 = vunpack.c.l.s4 1983009808
        %v1215 = vunpack.c.0.s8 %v1214
        %v1216 = vlaneseq
        %v1217 = vshrl.u32 %v1216, 7
        %v1218 = vsub.s32 %v1215, %v1217
        %v1219 = vrot.slane %v1211, %v1218
        %v1221 = vunpack.c.l.s4 1983009808
        %v1222 = vunpack.c.0.s8 %v1221
        %v1223 = vlaneseq
        %v1224 = vshrl.u32 %v1223, 7
        %v1225 = vsub.s32 %v1222, %v1224
        %v1226 = vrot.slane %v1212, %v1225
        %v1227 = vcombine.low %v1128, %v1140
        %v1228 = vcombine.high %v1128, %v1140
        %v1230 = vunpack.c.l.s4 1983009808
        %v1231 = vunpack.c.0.s8 %v1230
        %v1232 = vlaneseq
        %v1233 = vshrl.u32 %v1232, 7
        %v1234 = vsub.s32 %v1231, %v1233
        %v1235 = vrot.slane %v1227, %v1234
        %v1237 = vunpack.c.l.s4 1983009808
        %v1238 = vunpack.c.0.s8 %v1237
        %v1239 = vlaneseq
        %v1240 = vshrl.u32 %v1239, 7
        %v1241 = vsub.s32 %v1238, %v1240
        %v1242 = vrot.slane %v1228, %v1241
        %v1243 = vcombine.low %v1219, %v1235
        %v1244 = vcombine.high %v1219, %v1235
        %v1246 = vunpack.c.l.s4 1934713408
        %v1247 = vunpack.c.0.s8 %v1246
        %v1248 = vlaneseq
        %v1249 = vshrl.u32 %v1248, 7
        %v1250 = vsub.s32 %v1247, %v1249
        %v1251 = vrot.slane %v1243, %v1250
        %v1253 = vunpack.c.l.s4 1934713408
        %v1254 = vunpack.c.0.s8 %v1253
        %v1255 = vlaneseq
        %v1256 = vshrl.u32 %v1255, 7
        %v1257 = vsub.s32 %v1254, %v1256
        %v1258 = vrot.slane %v1244, %v1257
        %v1259 = vcombine.low %v1226, %v1242
        %v1260 = vcombine.high %v1226, %v1242
        %v1262 = vunpack.c.l.s4 1934713408
        %v1263 = vunpack.c.0.s8 %v1262
        %v1264 = vlaneseq
        %v1265 = vshrl.u32 %v1264, 7
        %v1266 = vsub.s32 %v1263, %v1265
        %v1267 = vrot.slane %v1259, %v1266
        %v1269 = vunpack.c.l.s4 1934713408
        %v1270 = vunpack.c.0.s8 %v1269
        %v1271 = vlaneseq
        %v1272 = vshrl.u32 %v1271, 7
        %v1273 = vsub.s32 %v1270, %v1272
        %v1274 = vrot.slane %v1260, %v1273
        %v1275 = vcombine.high %v1251, 0.0
        %v1276 = vcombine.high %v1258, 0.0
        %v1277 = vcombine.high %v1267, 0.0
        %v1278 = vcombine.high %v1274, 0.0
        %v1295 = vrot.slane %v1183, 1
        %v1296 = vrot.slane %v1207, 1
        %v1297 = vrot.slane %v1190, 1
        %v1298 = vrot.slane %v1208, 1
        %v1299 = vrot.slane %v1199, 1
        %v1300 = vrot.slane %v1209, 1
        %v1301 = vrot.slane %v1206, 1
        %v1302 = vrot.slane %v1210, 1
        %v1303 = vrot.slane %v1251, 1
        %v1304 = vrot.slane %v1275, 1
        %v1305 = vrot.slane %v1258, 1
        %v1306 = vrot.slane %v1276, 1
        %v1307 = vrot.slane %v1267, 1
        %v1308 = vrot.slane %v1277, 1
        %v1309 = vrot.slane %v1274, 1
        %v1310 = vrot.slane %v1278, 1
        %v1327 = vrot.slane %v1183, 2
        %v1328 = vrot.slane %v1207, 2
        %v1329 = vrot.slane %v1190, 2
        %v1330 = vrot.slane %v1208, 2
        %v1331 = vrot.slane %v1199, 2
        %v1332 = vrot.slane %v1209, 2
        %v1333 = vrot.slane %v1206, 2
        %v1334 = vrot.slane %v1210, 2
        %v1335 = vrot.slane %v1251, 2
        %v1336 = vrot.slane %v1275, 2
        %v1337 = vrot.slane %v1258, 2
        %v1338 = vrot.slane %v1276, 2
        %v1339 = vrot.slane %v1267, 2
        %v1340 = vrot.slane %v1277, 2
        %v1341 = vrot.slane %v1274, 2
        %v1342 = vrot.slane %v1278, 2
        %v1359 = vrot.slane %v1183, 3
        %v1360 = vrot.slane %v1207, 3
        %v1361 = vrot.slane %v1190, 3
        %v1362 = vrot.slane %v1208, 3
        %v1363 = vrot.slane %v1199, 3
        %v1364 = vrot.slane %v1209, 3
        %v1365 = vrot.slane %v1206, 3
        %v1366 = vrot.slane %v1210, 3
        %v1367 = vrot.slane %v1251, 3
        %v1368 = vrot.slane %v1275, 3
        %v1369 = vrot.slane %v1258, 3
        %v1370 = vrot.slane %v1276, 3
        %v1371 = vrot.slane %v1267, 3
        %v1372 = vrot.slane %v1277, 3
        %v1373 = vrot.slane %v1274, 3
        %v1374 = vrot.slane %v1278, 3
        %1391 = vrot.lane.b32.xlu0 %v1117, 96
        %v1392 = vpop.permute.xlu0 %1391
        %1393 = vrot.lane.b32.xlu0 %v1120, 96
        %v1394 = vpop.permute.xlu0 %1393
        %1395 = vrot.lane.b32.xlu0 %v1126, 96
        %v1396 = vpop.permute.xlu0 %1395
        %1397 = vrot.lane.b32.xlu0 %v1128, 96
        %v1398 = vpop.permute.xlu0 %1397
        %1399 = vrot.lane.b32.xlu0 %v1132, 96
        %v1400 = vpop.permute.xlu0 %1399
        %1401 = vrot.lane.b32.xlu0 %v1134, 96
        %v1402 = vpop.permute.xlu0 %1401
        %1403 = vrot.lane.b32.xlu0 %v1138, 96
        %v1404 = vpop.permute.xlu0 %1403
        %1405 = vrot.lane.b32.xlu0 %v1140, 96
        %v1406 = vpop.permute.xlu0 %1405
        %v1415 = vcombine.low %v1392, %v1400
        %v1416 = vcombine.high %v1392, %v1400
        %v1418 = vunpack.c.l.s4 1983009808
        %v1419 = vunpack.c.0.s8 %v1418
        %v1420 = vlaneseq
        %v1421 = vshrl.u32 %v1420, 7
        %v1422 = vsub.s32 %v1419, %v1421
        %v1423 = vrot.slane %v1415, %v1422
        %v1425 = vunpack.c.l.s4 1983009808
        %v1426 = vunpack.c.0.s8 %v1425
        %v1427 = vlaneseq
        %v1428 = vshrl.u32 %v1427, 7
        %v1429 = vsub.s32 %v1426, %v1428
        %v1430 = vrot.slane %v1416, %v1429
        %v1431 = vcombine.low %v1396, %v1404
        %v1432 = vcombine.high %v1396, %v1404
        %v1434 = vunpack.c.l.s4 1983009808
        %v1435 = vunpack.c.0.s8 %v1434
        %v1436 = vlaneseq
        %v1437 = vshrl.u32 %v1436, 7
        %v1438 = vsub.s32 %v1435, %v1437
        %v1439 = vrot.slane %v1431, %v1438
        %v1441 = vunpack.c.l.s4 1983009808
        %v1442 = vunpack.c.0.s8 %v1441
        %v1443 = vlaneseq
        %v1444 = vshrl.u32 %v1443, 7
        %v1445 = vsub.s32 %v1442, %v1444
        %v1446 = vrot.slane %v1432, %v1445
        %v1447 = vcombine.low %v1423, %v1439
        %v1448 = vcombine.high %v1423, %v1439
        %v1450 = vunpack.c.l.s4 1934713408
        %v1451 = vunpack.c.0.s8 %v1450
        %v1452 = vlaneseq
        %v1453 = vshrl.u32 %v1452, 7
        %v1454 = vsub.s32 %v1451, %v1453
        %v1455 = vrot.slane %v1447, %v1454
        %v1457 = vunpack.c.l.s4 1934713408
        %v1458 = vunpack.c.0.s8 %v1457
        %v1459 = vlaneseq
        %v1460 = vshrl.u32 %v1459, 7
        %v1461 = vsub.s32 %v1458, %v1460
        %v1462 = vrot.slane %v1448, %v1461
        %v1463 = vcombine.low %v1430, %v1446
        %v1464 = vcombine.high %v1430, %v1446
        %v1466 = vunpack.c.l.s4 1934713408
        %v1467 = vunpack.c.0.s8 %v1466
        %v1468 = vlaneseq
        %v1469 = vshrl.u32 %v1468, 7
        %v1470 = vsub.s32 %v1467, %v1469
        %v1471 = vrot.slane %v1463, %v1470
        %v1473 = vunpack.c.l.s4 1934713408
        %v1474 = vunpack.c.0.s8 %v1473
        %v1475 = vlaneseq
        %v1476 = vshrl.u32 %v1475, 7
        %v1477 = vsub.s32 %v1474, %v1476
        %v1478 = vrot.slane %v1464, %v1477
        %v1479 = vcombine.high %v1455, 0.0
        %v1480 = vcombine.high %v1462, 0.0
        %v1481 = vcombine.high %v1471, 0.0
        %v1482 = vcombine.high %v1478, 0.0
        %v1483 = vcombine.low %v1394, %v1402
        %v1484 = vcombine.high %v1394, %v1402
        %v1486 = vunpack.c.l.s4 1983009808
        %v1487 = vunpack.c.0.s8 %v1486
        %v1488 = vlaneseq
        %v1489 = vshrl.u32 %v1488, 7
        %v1490 = vsub.s32 %v1487, %v1489
        %v1491 = vrot.slane %v1483, %v1490
        %v1493 = vunpack.c.l.s4 1983009808
        %v1494 = vunpack.c.0.s8 %v1493
        %v1495 = vlaneseq
        %v1496 = vshrl.u32 %v1495, 7
        %v1497 = vsub.s32 %v1494, %v1496
        %v1498 = vrot.slane %v1484, %v1497
        %v1499 = vcombine.low %v1398, %v1406
        %v1500 = vcombine.high %v1398, %v1406
        %v1502 = vunpack.c.l.s4 1983009808
        %v1503 = vunpack.c.0.s8 %v1502
        %v1504 = vlaneseq
        %v1505 = vshrl.u32 %v1504, 7
        %v1506 = vsub.s32 %v1503, %v1505
        %v1507 = vrot.slane %v1499, %v1506
        %v1509 = vunpack.c.l.s4 1983009808
        %v1510 = vunpack.c.0.s8 %v1509
        %v1511 = vlaneseq
        %v1512 = vshrl.u32 %v1511, 7
        %v1513 = vsub.s32 %v1510, %v1512
        %v1514 = vrot.slane %v1500, %v1513
        %v1515 = vcombine.low %v1491, %v1507
        %v1516 = vcombine.high %v1491, %v1507
        %v1518 = vunpack.c.l.s4 1934713408
        %v1519 = vunpack.c.0.s8 %v1518
        %v1520 = vlaneseq
        %v1521 = vshrl.u32 %v1520, 7
        %v1522 = vsub.s32 %v1519, %v1521
        %v1523 = vrot.slane %v1515, %v1522
        %v1525 = vunpack.c.l.s4 1934713408
        %v1526 = vunpack.c.0.s8 %v1525
        %v1527 = vlaneseq
        %v1528 = vshrl.u32 %v1527, 7
        %v1529 = vsub.s32 %v1526, %v1528
        %v1530 = vrot.slane %v1516, %v1529
        %v1531 = vcombine.low %v1498, %v1514
        %v1532 = vcombine.high %v1498, %v1514
        %v1534 = vunpack.c.l.s4 1934713408
        %v1535 = vunpack.c.0.s8 %v1534
        %v1536 = vlaneseq
        %v1537 = vshrl.u32 %v1536, 7
        %v1538 = vsub.s32 %v1535, %v1537
        %v1539 = vrot.slane %v1531, %v1538
        %v1541 = vunpack.c.l.s4 1934713408
        %v1542 = vunpack.c.0.s8 %v1541
        %v1543 = vlaneseq
        %v1544 = vshrl.u32 %v1543, 7
        %v1545 = vsub.s32 %v1542, %v1544
        %v1546 = vrot.slane %v1532, %v1545
        %v1547 = vcombine.high %v1523, 0.0
        %v1548 = vcombine.high %v1530, 0.0
        %v1549 = vcombine.high %v1539, 0.0
        %v1550 = vcombine.high %v1546, 0.0
        %v1567 = vrot.slane %v1455, 1
        %v1568 = vrot.slane %v1479, 1
        %v1569 = vrot.slane %v1462, 1
        %v1570 = vrot.slane %v1480, 1
        %v1571 = vrot.slane %v1471, 1
        %v1572 = vrot.slane %v1481, 1
        %v1573 = vrot.slane %v1478, 1
        %v1574 = vrot.slane %v1482, 1
        %v1575 = vrot.slane %v1523, 1
        %v1576 = vrot.slane %v1547, 1
        %v1577 = vrot.slane %v1530, 1
        %v1578 = vrot.slane %v1548, 1
        %v1579 = vrot.slane %v1539, 1
        %v1580 = vrot.slane %v1549, 1
        %v1581 = vrot.slane %v1546, 1
        %v1582 = vrot.slane %v1550, 1
        %v1599 = vrot.slane %v1455, 2
        %v1600 = vrot.slane %v1479, 2
        %v1601 = vrot.slane %v1462, 2
        %v1602 = vrot.slane %v1480, 2
        %v1603 = vrot.slane %v1471, 2
        %v1604 = vrot.slane %v1481, 2
        %v1605 = vrot.slane %v1478, 2
        %v1606 = vrot.slane %v1482, 2
        %v1607 = vrot.slane %v1523, 2
        %v1608 = vrot.slane %v1547, 2
        %v1609 = vrot.slane %v1530, 2
        %v1610 = vrot.slane %v1548, 2
        %v1611 = vrot.slane %v1539, 2
        %v1612 = vrot.slane %v1549, 2
        %v1613 = vrot.slane %v1546, 2
        %v1614 = vrot.slane %v1550, 2
        %v1631 = vrot.slane %v1455, 3
        %v1632 = vrot.slane %v1479, 3
        %v1633 = vrot.slane %v1462, 3
        %v1634 = vrot.slane %v1480, 3
        %v1635 = vrot.slane %v1471, 3
        %v1636 = vrot.slane %v1481, 3
        %v1637 = vrot.slane %v1478, 3
        %v1638 = vrot.slane %v1482, 3
        %v1639 = vrot.slane %v1523, 3
        %v1640 = vrot.slane %v1547, 3
        %v1641 = vrot.slane %v1530, 3
        %v1642 = vrot.slane %v1548, 3
        %v1643 = vrot.slane %v1539, 3
        %v1644 = vrot.slane %v1549, 3
        %v1645 = vrot.slane %v1546, 3
        %v1646 = vrot.slane %v1550, 3
        %1663 = vrot.lane.b32.xlu0 %v1117, 64
        %v1664 = vpop.permute.xlu0 %1663
        %1665 = vrot.lane.b32.xlu0 %v1120, 64
        %v1666 = vpop.permute.xlu0 %1665
        %1667 = vrot.lane.b32.xlu0 %v1126, 64
        %v1668 = vpop.permute.xlu0 %1667
        %1669 = vrot.lane.b32.xlu0 %v1128, 64
        %v1670 = vpop.permute.xlu0 %1669
        %1671 = vrot.lane.b32.xlu0 %v1132, 64
        %v1672 = vpop.permute.xlu0 %1671
        %1673 = vrot.lane.b32.xlu0 %v1134, 64
        %v1674 = vpop.permute.xlu0 %1673
        %1675 = vrot.lane.b32.xlu0 %v1138, 64
        %v1676 = vpop.permute.xlu0 %1675
        %1677 = vrot.lane.b32.xlu0 %v1140, 64
        %v1678 = vpop.permute.xlu0 %1677
        %v1687 = vcombine.low %v1664, %v1672
        %v1688 = vcombine.high %v1664, %v1672
        %v1690 = vunpack.c.l.s4 1983009808
        %v1691 = vunpack.c.0.s8 %v1690
        %v1692 = vlaneseq
        %v1693 = vshrl.u32 %v1692, 7
        %v1694 = vsub.s32 %v1691, %v1693
        %v1695 = vrot.slane %v1687, %v1694
        %v1697 = vunpack.c.l.s4 1983009808
        %v1698 = vunpack.c.0.s8 %v1697
        %v1699 = vlaneseq
        %v1700 = vshrl.u32 %v1699, 7
        %v1701 = vsub.s32 %v1698, %v1700
        %v1702 = vrot.slane %v1688, %v1701
        %v1703 = vcombine.low %v1668, %v1676
        %v1704 = vcombine.high %v1668, %v1676
        %v1706 = vunpack.c.l.s4 1983009808
        %v1707 = vunpack.c.0.s8 %v1706
        %v1708 = vlaneseq
        %v1709 = vshrl.u32 %v1708, 7
        %v1710 = vsub.s32 %v1707, %v1709
        %v1711 = vrot.slane %v1703, %v1710
        %v1713 = vunpack.c.l.s4 1983009808
        %v1714 = vunpack.c.0.s8 %v1713
        %v1715 = vlaneseq
        %v1716 = vshrl.u32 %v1715, 7
        %v1717 = vsub.s32 %v1714, %v1716
        %v1718 = vrot.slane %v1704, %v1717
        %v1719 = vcombine.low %v1695, %v1711
        %v1720 = vcombine.high %v1695, %v1711
        %v1722 = vunpack.c.l.s4 1934713408
        %v1723 = vunpack.c.0.s8 %v1722
        %v1724 = vlaneseq
        %v1725 = vshrl.u32 %v1724, 7
        %v1726 = vsub.s32 %v1723, %v1725
        %v1727 = vrot.slane %v1719, %v1726
        %v1729 = vunpack.c.l.s4 1934713408
        %v1730 = vunpack.c.0.s8 %v1729
        %v1731 = vlaneseq
        %v1732 = vshrl.u32 %v1731, 7
        %v1733 = vsub.s32 %v1730, %v1732
        %v1734 = vrot.slane %v1720, %v1733
        %v1735 = vcombine.low %v1702, %v1718
        %v1736 = vcombine.high %v1702, %v1718
        %v1738 = vunpack.c.l.s4 1934713408
        %v1739 = vunpack.c.0.s8 %v1738
        %v1740 = vlaneseq
        %v1741 = vshrl.u32 %v1740, 7
        %v1742 = vsub.s32 %v1739, %v1741
        %v1743 = vrot.slane %v1735, %v1742
        %v1745 = vunpack.c.l.s4 1934713408
        %v1746 = vunpack.c.0.s8 %v1745
        %v1747 = vlaneseq
        %v1748 = vshrl.u32 %v1747, 7
        %v1749 = vsub.s32 %v1746, %v1748
        %v1750 = vrot.slane %v1736, %v1749
        %v1751 = vcombine.high %v1727, 0.0
        %v1752 = vcombine.high %v1734, 0.0
        %v1753 = vcombine.high %v1743, 0.0
        %v1754 = vcombine.high %v1750, 0.0
        %v1755 = vcombine.low %v1666, %v1674
        %v1756 = vcombine.high %v1666, %v1674
        %v1758 = vunpack.c.l.s4 1983009808
        %v1759 = vunpack.c.0.s8 %v1758
        %v1760 = vlaneseq
        %v1761 = vshrl.u32 %v1760, 7
        %v1762 = vsub.s32 %v1759, %v1761
        %v1763 = vrot.slane %v1755, %v1762
        %v1765 = vunpack.c.l.s4 1983009808
        %v1766 = vunpack.c.0.s8 %v1765
        %v1767 = vlaneseq
        %v1768 = vshrl.u32 %v1767, 7
        %v1769 = vsub.s32 %v1766, %v1768
        %v1770 = vrot.slane %v1756, %v1769
        %v1771 = vcombine.low %v1670, %v1678
        %v1772 = vcombine.high %v1670, %v1678
        %v1774 = vunpack.c.l.s4 1983009808
        %v1775 = vunpack.c.0.s8 %v1774
        %v1776 = vlaneseq
        %v1777 = vshrl.u32 %v1776, 7
        %v1778 = vsub.s32 %v1775, %v1777
        %v1779 = vrot.slane %v1771, %v1778
        %v1781 = vunpack.c.l.s4 1983009808
        %v1782 = vunpack.c.0.s8 %v1781
        %v1783 = vlaneseq
        %v1784 = vshrl.u32 %v1783, 7
        %v1785 = vsub.s32 %v1782, %v1784
        %v1786 = vrot.slane %v1772, %v1785
        %v1787 = vcombine.low %v1763, %v1779
        %v1788 = vcombine.high %v1763, %v1779
        %v1790 = vunpack.c.l.s4 1934713408
        %v1791 = vunpack.c.0.s8 %v1790
        %v1792 = vlaneseq
        %v1793 = vshrl.u32 %v1792, 7
        %v1794 = vsub.s32 %v1791, %v1793
        %v1795 = vrot.slane %v1787, %v1794
        %v1797 = vunpack.c.l.s4 1934713408
        %v1798 = vunpack.c.0.s8 %v1797
        %v1799 = vlaneseq
        %v1800 = vshrl.u32 %v1799, 7
        %v1801 = vsub.s32 %v1798, %v1800
        %v1802 = vrot.slane %v1788, %v1801
        %v1803 = vcombine.low %v1770, %v1786
        %v1804 = vcombine.high %v1770, %v1786
        %v1806 = vunpack.c.l.s4 1934713408
        %v1807 = vunpack.c.0.s8 %v1806
        %v1808 = vlaneseq
        %v1809 = vshrl.u32 %v1808, 7
        %v1810 = vsub.s32 %v1807, %v1809
        %v1811 = vrot.slane %v1803, %v1810
        %v1813 = vunpack.c.l.s4 1934713408
        %v1814 = vunpack.c.0.s8 %v1813
        %v1815 = vlaneseq
        %v1816 = vshrl.u32 %v1815, 7
        %v1817 = vsub.s32 %v1814, %v1816
        %v1818 = vrot.slane %v1804, %v1817
        %v1819 = vcombine.high %v1795, 0.0
        %v1820 = vcombine.high %v1802, 0.0
        %v1821 = vcombine.high %v1811, 0.0
        %v1822 = vcombine.high %v1818, 0.0
        %v1839 = vrot.slane %v1727, 1
        %v1840 = vrot.slane %v1751, 1
        %v1841 = vrot.slane %v1734, 1
        %v1842 = vrot.slane %v1752, 1
        %v1843 = vrot.slane %v1743, 1
        %v1844 = vrot.slane %v1753, 1
        %v1845 = vrot.slane %v1750, 1
        %v1846 = vrot.slane %v1754, 1
        %v1847 = vrot.slane %v1795, 1
        %v1848 = vrot.slane %v1819, 1
        %v1849 = vrot.slane %v1802, 1
        %v1850 = vrot.slane %v1820, 1
        %v1851 = vrot.slane %v1811, 1
        %v1852 = vrot.slane %v1821, 1
        %v1853 = vrot.slane %v1818, 1
        %v1854 = vrot.slane %v1822, 1
        %v1871 = vrot.slane %v1727, 2
        %v1872 = vrot.slane %v1751, 2
        %v1873 = vrot.slane %v1734, 2
        %v1874 = vrot.slane %v1752, 2
        %v1875 = vrot.slane %v1743, 2
        %v1876 = vrot.slane %v1753, 2
        %v1877 = vrot.slane %v1750, 2
        %v1878 = vrot.slane %v1754, 2
        %v1879 = vrot.slane %v1795, 2
        %v1880 = vrot.slane %v1819, 2
        %v1881 = vrot.slane %v1802, 2
        %v1882 = vrot.slane %v1820, 2
        %v1883 = vrot.slane %v1811, 2
        %v1884 = vrot.slane %v1821, 2
        %v1885 = vrot.slane %v1818, 2
        %v1886 = vrot.slane %v1822, 2
        %v1903 = vrot.slane %v1727, 3
        %v1904 = vrot.slane %v1751, 3
        %v1905 = vrot.slane %v1734, 3
        %v1906 = vrot.slane %v1752, 3
        %v1907 = vrot.slane %v1743, 3
        %v1908 = vrot.slane %v1753, 3
        %v1909 = vrot.slane %v1750, 3
        %v1910 = vrot.slane %v1754, 3
        %v1911 = vrot.slane %v1795, 3
        %v1912 = vrot.slane %v1819, 3
        %v1913 = vrot.slane %v1802, 3
        %v1914 = vrot.slane %v1820, 3
        %v1915 = vrot.slane %v1811, 3
        %v1916 = vrot.slane %v1821, 3
        %v1917 = vrot.slane %v1818, 3
        %v1918 = vrot.slane %v1822, 3
        %v1935 = vmax.f32 %v1183, -2.5
        %v1936 = vmax.f32 %v1207, -2.5
        %v1937 = vmax.f32 %v1190, -2.5
        %v1938 = vmax.f32 %v1208, -2.5
        %v1939 = vmax.f32 %v1199, -2.5
        %v1940 = vmax.f32 %v1209, -2.5
        %v1941 = vmax.f32 %v1206, -2.5
        %v1942 = vmax.f32 %v1210, -2.5
        %v1943 = vmax.f32 %v1295, -2.5
        %v1944 = vmax.f32 %v1296, -2.5
        %v1945 = vmax.f32 %v1297, -2.5
        %v1946 = vmax.f32 %v1298, -2.5
        %v1947 = vmax.f32 %v1299, -2.5
        %v1948 = vmax.f32 %v1300, -2.5
        %v1949 = vmax.f32 %v1301, -2.5
        %v1950 = vmax.f32 %v1302, -2.5
        %v1951 = vmax.f32 %v1327, -2.5
        %v1952 = vmax.f32 %v1328, -2.5
        %v1953 = vmax.f32 %v1329, -2.5
        %v1954 = vmax.f32 %v1330, -2.5
        %v1955 = vmax.f32 %v1331, -2.5
        %v1956 = vmax.f32 %v1332, -2.5
        %v1957 = vmax.f32 %v1333, -2.5
        %v1958 = vmax.f32 %v1334, -2.5
        %v1959 = vmax.f32 %v1359, -2.5
        %v1960 = vmax.f32 %v1360, -2.5
        %v1961 = vmax.f32 %v1361, -2.5
        %v1962 = vmax.f32 %v1362, -2.5
        %v1963 = vmax.f32 %v1363, -2.5
        %v1964 = vmax.f32 %v1364, -2.5
        %v1965 = vmax.f32 %v1365, -2.5
        %v1966 = vmax.f32 %v1366, -2.5
        %v1967 = vmax.f32 %v1251, -2.5
        %v1968 = vmax.f32 %v1275, -2.5
        %v1969 = vmax.f32 %v1258, -2.5
        %v1970 = vmax.f32 %v1276, -2.5
        %v1971 = vmax.f32 %v1267, -2.5
        %v1972 = vmax.f32 %v1277, -2.5
        %v1973 = vmax.f32 %v1274, -2.5
        %v1974 = vmax.f32 %v1278, -2.5
        %v1975 = vmax.f32 %v1303, -2.5
        %v1976 = vmax.f32 %v1304, -2.5
        %v1977 = vmax.f32 %v1305, -2.5
        %v1978 = vmax.f32 %v1306, -2.5
        %v1979 = vmax.f32 %v1307, -2.5
        %v1980 = vmax.f32 %v1308, -2.5
        %v1981 = vmax.f32 %v1309, -2.5
        %v1982 = vmax.f32 %v1310, -2.5
        %v1983 = vmax.f32 %v1335, -2.5
        %v1984 = vmax.f32 %v1336, -2.5
        %v1985 = vmax.f32 %v1337, -2.5
        %v1986 = vmax.f32 %v1338, -2.5
        %v1987 = vmax.f32 %v1339, -2.5
        %v1988 = vmax.f32 %v1340, -2.5
        %v1989 = vmax.f32 %v1341, -2.5
        %v1990 = vmax.f32 %v1342, -2.5
        %v1991 = vmax.f32 %v1367, -2.5
        %v1992 = vmax.f32 %v1368, -2.5
        %v1993 = vmax.f32 %v1369, -2.5
        %v1994 = vmax.f32 %v1370, -2.5
        %v1995 = vmax.f32 %v1371, -2.5
        %v1996 = vmax.f32 %v1372, -2.5
        %v1997 = vmax.f32 %v1373, -2.5
        %v1998 = vmax.f32 %v1374, -2.5
        %v1999 = vmin.f32 %v1935, 2.5
        %v2000 = vmin.f32 %v1936, 2.5
        %v2001 = vmin.f32 %v1937, 2.5
        %v2002 = vmin.f32 %v1938, 2.5
        %v2003 = vmin.f32 %v1939, 2.5
        %v2004 = vmin.f32 %v1940, 2.5
        %v2005 = vmin.f32 %v1941, 2.5
        %v2006 = vmin.f32 %v1942, 2.5
        %v2007 = vmin.f32 %v1943, 2.5
        %v2008 = vmin.f32 %v1944, 2.5
        %v2009 = vmin.f32 %v1945, 2.5
        %v2010 = vmin.f32 %v1946, 2.5
        %v2011 = vmin.f32 %v1947, 2.5
        %v2012 = vmin.f32 %v1948, 2.5
        %v2013 = vmin.f32 %v1949, 2.5
        %v2014 = vmin.f32 %v1950, 2.5
        %v2015 = vmin.f32 %v1951, 2.5
        %v2016 = vmin.f32 %v1952, 2.5
        %v2017 = vmin.f32 %v1953, 2.5
        %v2018 = vmin.f32 %v1954, 2.5
        %v2019 = vmin.f32 %v1955, 2.5
        %v2020 = vmin.f32 %v1956, 2.5
        %v2021 = vmin.f32 %v1957, 2.5
        %v2022 = vmin.f32 %v1958, 2.5
        %v2023 = vmin.f32 %v1959, 2.5
        %v2024 = vmin.f32 %v1960, 2.5
        %v2025 = vmin.f32 %v1961, 2.5
        %v2026 = vmin.f32 %v1962, 2.5
        %v2027 = vmin.f32 %v1963, 2.5
        %v2028 = vmin.f32 %v1964, 2.5
        %v2029 = vmin.f32 %v1965, 2.5
        %v2030 = vmin.f32 %v1966, 2.5
        %v2031 = vmin.f32 %v1967, 2.5
        %v2032 = vmin.f32 %v1968, 2.5
        %v2033 = vmin.f32 %v1969, 2.5
        %v2034 = vmin.f32 %v1970, 2.5
        %v2035 = vmin.f32 %v1971, 2.5
        %v2036 = vmin.f32 %v1972, 2.5
        %v2037 = vmin.f32 %v1973, 2.5
        %v2038 = vmin.f32 %v1974, 2.5
        %v2039 = vmin.f32 %v1975, 2.5
        %v2040 = vmin.f32 %v1976, 2.5
        %v2041 = vmin.f32 %v1977, 2.5
        %v2042 = vmin.f32 %v1978, 2.5
        %v2043 = vmin.f32 %v1979, 2.5
        %v2044 = vmin.f32 %v1980, 2.5
        %v2045 = vmin.f32 %v1981, 2.5
        %v2046 = vmin.f32 %v1982, 2.5
        %v2047 = vmin.f32 %v1983, 2.5
        %v2048 = vmin.f32 %v1984, 2.5
        %v2049 = vmin.f32 %v1985, 2.5
        %v2050 = vmin.f32 %v1986, 2.5
        %v2051 = vmin.f32 %v1987, 2.5
        %v2052 = vmin.f32 %v1988, 2.5
        %v2053 = vmin.f32 %v1989, 2.5
        %v2054 = vmin.f32 %v1990, 2.5
        %v2055 = vmin.f32 %v1991, 2.5
        %v2056 = vmin.f32 %v1992, 2.5
        %v2057 = vmin.f32 %v1993, 2.5
        %v2058 = vmin.f32 %v1994, 2.5
        %v2059 = vmin.f32 %v1995, 2.5
        %v2060 = vmin.f32 %v1996, 2.5
        %v2061 = vmin.f32 %v1997, 2.5
        %v2062 = vmin.f32 %v1998, 2.5
        %v2063 = vand.u32 2147483647, %v1999
        %v2064 = vand.u32 2147483647, %v2000
        %v2065 = vand.u32 2147483647, %v2001
        %v2066 = vand.u32 2147483647, %v2002
        %v2067 = vand.u32 2147483647, %v2003
        %v2068 = vand.u32 2147483647, %v2004
        %v2069 = vand.u32 2147483647, %v2005
        %v2070 = vand.u32 2147483647, %v2006
        %v2071 = vand.u32 2147483647, %v2007
        %v2072 = vand.u32 2147483647, %v2008
        %v2073 = vand.u32 2147483647, %v2009
        %v2074 = vand.u32 2147483647, %v2010
        %v2075 = vand.u32 2147483647, %v2011
        %v2076 = vand.u32 2147483647, %v2012
        %v2077 = vand.u32 2147483647, %v2013
        %v2078 = vand.u32 2147483647, %v2014
        %v2079 = vand.u32 2147483647, %v2015
        %v2080 = vand.u32 2147483647, %v2016
        %v2081 = vand.u32 2147483647, %v2017
        %v2082 = vand.u32 2147483647, %v2018
        %v2083 = vand.u32 2147483647, %v2019
        %v2084 = vand.u32 2147483647, %v2020
        %v2085 = vand.u32 2147483647, %v2021
        %v2086 = vand.u32 2147483647, %v2022
        %v2087 = vand.u32 2147483647, %v2023
        %v2088 = vand.u32 2147483647, %v2024
        %v2089 = vand.u32 2147483647, %v2025
        %v2090 = vand.u32 2147483647, %v2026
        %v2091 = vand.u32 2147483647, %v2027
        %v2092 = vand.u32 2147483647, %v2028
        %v2093 = vand.u32 2147483647, %v2029
        %v2094 = vand.u32 2147483647, %v2030
        %v2095 = vand.u32 2147483647, %v2031
        %v2096 = vand.u32 2147483647, %v2032
        %v2097 = vand.u32 2147483647, %v2033
        %v2098 = vand.u32 2147483647, %v2034
        %v2099 = vand.u32 2147483647, %v2035
        %v2100 = vand.u32 2147483647, %v2036
        %v2101 = vand.u32 2147483647, %v2037
        %v2102 = vand.u32 2147483647, %v2038
        %v2103 = vand.u32 2147483647, %v2039
        %v2104 = vand.u32 2147483647, %v2040
        %v2105 = vand.u32 2147483647, %v2041
        %v2106 = vand.u32 2147483647, %v2042
        %v2107 = vand.u32 2147483647, %v2043
        %v2108 = vand.u32 2147483647, %v2044
        %v2109 = vand.u32 2147483647, %v2045
        %v2110 = vand.u32 2147483647, %v2046
        %v2111 = vand.u32 2147483647, %v2047
        %v2112 = vand.u32 2147483647, %v2048
        %v2113 = vand.u32 2147483647, %v2049
        %v2114 = vand.u32 2147483647, %v2050
        %v2115 = vand.u32 2147483647, %v2051
        %v2116 = vand.u32 2147483647, %v2052
        %v2117 = vand.u32 2147483647, %v2053
        %v2118 = vand.u32 2147483647, %v2054
        %v2119 = vand.u32 2147483647, %v2055
        %v2120 = vand.u32 2147483647, %v2056
        %v2121 = vand.u32 2147483647, %v2057
        %v2122 = vand.u32 2147483647, %v2058
        %v2123 = vand.u32 2147483647, %v2059
        %v2124 = vand.u32 2147483647, %v2060
        %v2125 = vand.u32 2147483647, %v2061
        %v2126 = vand.u32 2147483647, %v2062
        %vm2127 = vcmask 57344
        %v2128 = vsel %vm2127, %v2063, -inf
        %v2129 = vsel %vm2127, %v2064, -inf
        %v2130 = vsel %vm2127, %v2065, -inf
        %v2131 = vsel %vm2127, %v2066, -inf
        %v2132 = vsel %vm2127, %v2067, -inf
        %v2133 = vmax.f32 %v2128, %v2132
        %v2134 = vsel %vm2127, %v2068, -inf
        %v2135 = vmax.f32 %v2129, %v2134
        %v2136 = vsel %vm2127, %v2069, -inf
        %v2137 = vmax.f32 %v2130, %v2136
        %v2138 = vsel %vm2127, %v2070, -inf
        %v2139 = vmax.f32 %v2131, %v2138
        %v2140 = vsel %vm2127, %v2071, -inf
        %v2141 = vmax.f32 %v2133, %v2140
        %v2142 = vsel %vm2127, %v2072, -inf
        %v2143 = vmax.f32 %v2135, %v2142
        %v2144 = vsel %vm2127, %v2073, -inf
        %v2145 = vmax.f32 %v2137, %v2144
        %v2146 = vsel %vm2127, %v2074, -inf
        %v2147 = vmax.f32 %v2139, %v2146
        %v2148 = vsel %vm2127, %v2075, -inf
        %v2149 = vmax.f32 %v2141, %v2148
        %v2150 = vsel %vm2127, %v2076, -inf
        %v2151 = vmax.f32 %v2143, %v2150
        %v2152 = vsel %vm2127, %v2077, -inf
        %v2153 = vmax.f32 %v2145, %v2152
        %v2154 = vsel %vm2127, %v2078, -inf
        %v2155 = vmax.f32 %v2147, %v2154
        %v2156 = vsel %vm2127, %v2079, -inf
        %v2157 = vmax.f32 %v2149, %v2156
        %v2158 = vsel %vm2127, %v2080, -inf
        %v2159 = vmax.f32 %v2151, %v2158
        %v2160 = vsel %vm2127, %v2081, -inf
        %v2161 = vmax.f32 %v2153, %v2160
        %v2162 = vsel %vm2127, %v2082, -inf
        %v2163 = vmax.f32 %v2155, %v2162
        %v2164 = vsel %vm2127, %v2083, -inf
        %v2165 = vmax.f32 %v2157, %v2164
        %v2166 = vsel %vm2127, %v2084, -inf
        %v2167 = vmax.f32 %v2159, %v2166
        %v2168 = vsel %vm2127, %v2085, -inf
        %v2169 = vmax.f32 %v2161, %v2168
        %v2170 = vsel %vm2127, %v2086, -inf
        %v2171 = vmax.f32 %v2163, %v2170
        %v2172 = vsel %vm2127, %v2087, -inf
        %v2173 = vmax.f32 %v2165, %v2172
        %v2174 = vsel %vm2127, %v2088, -inf
        %v2175 = vmax.f32 %v2167, %v2174
        %v2176 = vsel %vm2127, %v2089, -inf
        %v2177 = vmax.f32 %v2169, %v2176
        %v2178 = vsel %vm2127, %v2090, -inf
        %v2179 = vmax.f32 %v2171, %v2178
        %v2180 = vsel %vm2127, %v2091, -inf
        %v2181 = vmax.f32 %v2173, %v2180
        %v2182 = vsel %vm2127, %v2092, -inf
        %v2183 = vmax.f32 %v2175, %v2182
        %v2184 = vsel %vm2127, %v2093, -inf
        %v2185 = vmax.f32 %v2177, %v2184
        %v2186 = vsel %vm2127, %v2094, -inf
        %v2187 = vmax.f32 %v2179, %v2186
        %v2188 = vsel %vm2127, %v2095, -inf
        %v2189 = vmax.f32 %v2181, %v2188
        %v2190 = vsel %vm2127, %v2096, -inf
        %v2191 = vmax.f32 %v2183, %v2190
        %v2192 = vsel %vm2127, %v2097, -inf
        %v2193 = vmax.f32 %v2185, %v2192
        %v2194 = vsel %vm2127, %v2098, -inf
        %v2195 = vmax.f32 %v2187, %v2194
        %v2196 = vsel %vm2127, %v2099, -inf
        %v2197 = vmax.f32 %v2189, %v2196
        %v2198 = vsel %vm2127, %v2100, -inf
        %v2199 = vmax.f32 %v2191, %v2198
        %v2200 = vsel %vm2127, %v2101, -inf
        %v2201 = vmax.f32 %v2193, %v2200
        %v2202 = vsel %vm2127, %v2102, -inf
        %v2203 = vmax.f32 %v2195, %v2202
        %v2204 = vsel %vm2127, %v2103, -inf
        %v2205 = vmax.f32 %v2197, %v2204
        %v2206 = vsel %vm2127, %v2104, -inf
        %v2207 = vmax.f32 %v2199, %v2206
        %v2208 = vsel %vm2127, %v2105, -inf
        %v2209 = vmax.f32 %v2201, %v2208
        %v2210 = vsel %vm2127, %v2106, -inf
        %v2211 = vmax.f32 %v2203, %v2210
        %v2212 = vsel %vm2127, %v2107, -inf
        %v2213 = vmax.f32 %v2205, %v2212
        %v2214 = vsel %vm2127, %v2108, -inf
        %v2215 = vmax.f32 %v2207, %v2214
        %v2216 = vsel %vm2127, %v2109, -inf
        %v2217 = vmax.f32 %v2209, %v2216
        %v2218 = vsel %vm2127, %v2110, -inf
        %v2219 = vmax.f32 %v2211, %v2218
        %v2220 = vsel %vm2127, %v2111, -inf
        %v2221 = vmax.f32 %v2213, %v2220
        %v2222 = vsel %vm2127, %v2112, -inf
        %v2223 = vmax.f32 %v2215, %v2222
        %v2224 = vsel %vm2127, %v2113, -inf
        %v2225 = vmax.f32 %v2217, %v2224
        %v2226 = vsel %vm2127, %v2114, -inf
        %v2227 = vmax.f32 %v2219, %v2226
        %v2228 = vsel %vm2127, %v2115, -inf
        %v2229 = vmax.f32 %v2221, %v2228
        %v2230 = vsel %vm2127, %v2116, -inf
        %v2231 = vmax.f32 %v2223, %v2230
        %v2232 = vsel %vm2127, %v2117, -inf
        %v2233 = vmax.f32 %v2225, %v2232
        %v2234 = vsel %vm2127, %v2118, -inf
        %v2235 = vmax.f32 %v2227, %v2234
        %v2236 = vsel %vm2127, %v2119, -inf
        %v2237 = vmax.f32 %v2229, %v2236
        %v2238 = vsel %vm2127, %v2120, -inf
        %v2239 = vmax.f32 %v2231, %v2238
        %v2240 = vsel %vm2127, %v2121, -inf
        %v2241 = vmax.f32 %v2233, %v2240
        %v2242 = vsel %vm2127, %v2122, -inf
        %v2243 = vmax.f32 %v2235, %v2242
        %v2244 = vsel %vm2127, %v2123, -inf
        %v2245 = vmax.f32 %v2237, %v2244
        %v2246 = vsel %vm2127, %v2124, -inf
        %v2247 = vmax.f32 %v2239, %v2246
        %v2248 = vsel %vm2127, %v2125, -inf
        %v2249 = vmax.f32 %v2241, %v2248
        %v2250 = vsel %vm2127, %v2126, -inf
        %v2251 = vmax.f32 %v2243, %v2250
        %v2252 = vmax.f32 %v2245, %v2247
        %v2253 = vmax.f32 %v2249, %v2251
        %v2254 = vmax.f32 %v2252, %v2253
        %2255 = vmax.xlane.f32.xlu0 %v2254
        %v2256 = vpop.xlane.xlu0 %2255
        %s2257 = vtos %v2256
        %s2258 = smax.f32 %s2257, 1e-08
        %v2259 = vstv %s2258
        %v2260 = vrcp.pop %v2259
        %v2261 = vmul.f32 %v2260, 127.0
        %v2262 = vmul.f32 %v1999, %v2261
        %v2263 = vmul.f32 %v2000, %v2261
        %v2264 = vmul.f32 %v2001, %v2261
        %v2265 = vmul.f32 %v2002, %v2261
        %v2266 = vmul.f32 %v2003, %v2261
        %v2267 = vmul.f32 %v2004, %v2261
        %v2268 = vmul.f32 %v2005, %v2261
        %v2269 = vmul.f32 %v2006, %v2261
        %v2270 = vmul.f32 %v2007, %v2261
        %v2271 = vmul.f32 %v2008, %v2261
        %v2272 = vmul.f32 %v2009, %v2261
        %v2273 = vmul.f32 %v2010, %v2261
        %v2274 = vmul.f32 %v2011, %v2261
        %v2275 = vmul.f32 %v2012, %v2261
        %v2276 = vmul.f32 %v2013, %v2261
        %v2277 = vmul.f32 %v2014, %v2261
        %v2278 = vmul.f32 %v2015, %v2261
        %v2279 = vmul.f32 %v2016, %v2261
        %v2280 = vmul.f32 %v2017, %v2261
        %v2281 = vmul.f32 %v2018, %v2261
        %v2282 = vmul.f32 %v2019, %v2261
        %v2283 = vmul.f32 %v2020, %v2261
        %v2284 = vmul.f32 %v2021, %v2261
        %v2285 = vmul.f32 %v2022, %v2261
        %v2286 = vmul.f32 %v2023, %v2261
        %v2287 = vmul.f32 %v2024, %v2261
        %v2288 = vmul.f32 %v2025, %v2261
        %v2289 = vmul.f32 %v2026, %v2261
        %v2290 = vmul.f32 %v2027, %v2261
        %v2291 = vmul.f32 %v2028, %v2261
        %v2292 = vmul.f32 %v2029, %v2261
        %v2293 = vmul.f32 %v2030, %v2261
        %v2294 = vmul.f32 %v2031, %v2261
        %v2295 = vmul.f32 %v2032, %v2261
        %v2296 = vmul.f32 %v2033, %v2261
        %v2297 = vmul.f32 %v2034, %v2261
        %v2298 = vmul.f32 %v2035, %v2261
        %v2299 = vmul.f32 %v2036, %v2261
        %v2300 = vmul.f32 %v2037, %v2261
        %v2301 = vmul.f32 %v2038, %v2261
        %v2302 = vmul.f32 %v2039, %v2261
        %v2303 = vmul.f32 %v2040, %v2261
        %v2304 = vmul.f32 %v2041, %v2261
        %v2305 = vmul.f32 %v2042, %v2261
        %v2306 = vmul.f32 %v2043, %v2261
        %v2307 = vmul.f32 %v2044, %v2261
        %v2308 = vmul.f32 %v2045, %v2261
        %v2309 = vmul.f32 %v2046, %v2261
        %v2310 = vmul.f32 %v2047, %v2261
        %v2311 = vmul.f32 %v2048, %v2261
        %v2312 = vmul.f32 %v2049, %v2261
        %v2313 = vmul.f32 %v2050, %v2261
        %v2314 = vmul.f32 %v2051, %v2261
        %v2315 = vmul.f32 %v2052, %v2261
        %v2316 = vmul.f32 %v2053, %v2261
        %v2317 = vmul.f32 %v2054, %v2261
        %v2318 = vmul.f32 %v2055, %v2261
        %v2319 = vmul.f32 %v2056, %v2261
        %v2320 = vmul.f32 %v2057, %v2261
        %v2321 = vmul.f32 %v2058, %v2261
        %v2322 = vmul.f32 %v2059, %v2261
        %v2323 = vmul.f32 %v2060, %v2261
        %v2324 = vmul.f32 %v2061, %v2261
        %v2325 = vmul.f32 %v2062, %v2261
        %v2326 = vround.ne.pseudo %v2262
        %v2327 = vround.ne.pseudo %v2263
        %v2328 = vround.ne.pseudo %v2264
        %v2329 = vround.ne.pseudo %v2265
        %v2330 = vround.ne.pseudo %v2266
        %v2331 = vround.ne.pseudo %v2267
        %v2332 = vround.ne.pseudo %v2268
        %v2333 = vround.ne.pseudo %v2269
        %v2334 = vround.ne.pseudo %v2270
        %v2335 = vround.ne.pseudo %v2271
        %v2336 = vround.ne.pseudo %v2272
        %v2337 = vround.ne.pseudo %v2273
        %v2338 = vround.ne.pseudo %v2274
        %v2339 = vround.ne.pseudo %v2275
        %v2340 = vround.ne.pseudo %v2276
        %v2341 = vround.ne.pseudo %v2277
        %v2342 = vround.ne.pseudo %v2278
        %v2343 = vround.ne.pseudo %v2279
        %v2344 = vround.ne.pseudo %v2280
        %v2345 = vround.ne.pseudo %v2281
        %v2346 = vround.ne.pseudo %v2282
        %v2347 = vround.ne.pseudo %v2283
        %v2348 = vround.ne.pseudo %v2284
        %v2349 = vround.ne.pseudo %v2285
        %v2350 = vround.ne.pseudo %v2286
        %v2351 = vround.ne.pseudo %v2287
        %v2352 = vround.ne.pseudo %v2288
        %v2353 = vround.ne.pseudo %v2289
        %v2354 = vround.ne.pseudo %v2290
        %v2355 = vround.ne.pseudo %v2291
        %v2356 = vround.ne.pseudo %v2292
        %v2357 = vround.ne.pseudo %v2293
        %v2358 = vround.ne.pseudo %v2294
        %v2359 = vround.ne.pseudo %v2295
        %v2360 = vround.ne.pseudo %v2296
        %v2361 = vround.ne.pseudo %v2297
        %v2362 = vround.ne.pseudo %v2298
        %v2363 = vround.ne.pseudo %v2299
        %v2364 = vround.ne.pseudo %v2300
        %v2365 = vround.ne.pseudo %v2301
        %v2366 = vround.ne.pseudo %v2302
        %v2367 = vround.ne.pseudo %v2303
        %v2368 = vround.ne.pseudo %v2304
        %v2369 = vround.ne.pseudo %v2305
        %v2370 = vround.ne.pseudo %v2306
        %v2371 = vround.ne.pseudo %v2307
        %v2372 = vround.ne.pseudo %v2308
        %v2373 = vround.ne.pseudo %v2309
        %v2374 = vround.ne.pseudo %v2310
        %v2375 = vround.ne.pseudo %v2311
        %v2376 = vround.ne.pseudo %v2312
        %v2377 = vround.ne.pseudo %v2313
        %v2378 = vround.ne.pseudo %v2314
        %v2379 = vround.ne.pseudo %v2315
        %v2380 = vround.ne.pseudo %v2316
        %v2381 = vround.ne.pseudo %v2317
        %v2382 = vround.ne.pseudo %v2318
        %v2383 = vround.ne.pseudo %v2319
        %v2384 = vround.ne.pseudo %v2320
        %v2385 = vround.ne.pseudo %v2321
        %v2386 = vround.ne.pseudo %v2322
        %v2387 = vround.ne.pseudo %v2323
        %v2388 = vround.ne.pseudo %v2324
        %v2389 = vround.ne.pseudo %v2325
        %s2390 = smul.f32 %s2258, 0.007874016
        %v2391 = vstv %s2390
        %v2392 = vmul.f32 %v2326, %v2391
        %v2393 = vmul.f32 %v2327, %v2391
        %v2394 = vmul.f32 %v2328, %v2391
        %v2395 = vmul.f32 %v2329, %v2391
        %v2396 = vmul.f32 %v2330, %v2391
        %v2397 = vmul.f32 %v2331, %v2391
        %v2398 = vmul.f32 %v2332, %v2391
        %v2399 = vmul.f32 %v2333, %v2391
        %v2400 = vmul.f32 %v2334, %v2391
        %v2401 = vmul.f32 %v2335, %v2391
        %v2402 = vmul.f32 %v2336, %v2391
        %v2403 = vmul.f32 %v2337, %v2391
        %v2404 = vmul.f32 %v2338, %v2391
        %v2405 = vmul.f32 %v2339, %v2391
        %v2406 = vmul.f32 %v2340, %v2391
        %v2407 = vmul.f32 %v2341, %v2391
        %v2408 = vmul.f32 %v2342, %v2391
        %v2409 = vmul.f32 %v2343, %v2391
        %v2410 = vmul.f32 %v2344, %v2391
        %v2411 = vmul.f32 %v2345, %v2391
        %v2412 = vmul.f32 %v2346, %v2391
        %v2413 = vmul.f32 %v2347, %v2391
        %v2414 = vmul.f32 %v2348, %v2391
        %v2415 = vmul.f32 %v2349, %v2391
        %v2416 = vmul.f32 %v2350, %v2391
        %v2417 = vmul.f32 %v2351, %v2391
        %v2418 = vmul.f32 %v2352, %v2391
        %v2419 = vmul.f32 %v2353, %v2391
        %v2420 = vmul.f32 %v2354, %v2391
        %v2421 = vmul.f32 %v2355, %v2391
        %v2422 = vmul.f32 %v2356, %v2391
        %v2423 = vmul.f32 %v2357, %v2391
        %v2424 = vmul.f32 %v2358, %v2391
        %v2425 = vmul.f32 %v2359, %v2391
        %v2426 = vmul.f32 %v2360, %v2391
        %v2427 = vmul.f32 %v2361, %v2391
        %v2428 = vmul.f32 %v2362, %v2391
        %v2429 = vmul.f32 %v2363, %v2391
        %v2430 = vmul.f32 %v2364, %v2391
        %v2431 = vmul.f32 %v2365, %v2391
        %v2432 = vmul.f32 %v2366, %v2391
        %v2433 = vmul.f32 %v2367, %v2391
        %v2434 = vmul.f32 %v2368, %v2391
        %v2435 = vmul.f32 %v2369, %v2391
        %v2436 = vmul.f32 %v2370, %v2391
        %v2437 = vmul.f32 %v2371, %v2391
        %v2438 = vmul.f32 %v2372, %v2391
        %v2439 = vmul.f32 %v2373, %v2391
        %v2440 = vmul.f32 %v2374, %v2391
        %v2441 = vmul.f32 %v2375, %v2391
        %v2442 = vmul.f32 %v2376, %v2391
        %v2443 = vmul.f32 %v2377, %v2391
        %v2444 = vmul.f32 %v2378, %v2391
        %v2445 = vmul.f32 %v2379, %v2391
        %v2446 = vmul.f32 %v2380, %v2391
        %v2447 = vmul.f32 %v2381, %v2391
        %v2448 = vmul.f32 %v2382, %v2391
        %v2449 = vmul.f32 %v2383, %v2391
        %v2450 = vmul.f32 %v2384, %v2391
        %v2451 = vmul.f32 %v2385, %v2391
        %v2452 = vmul.f32 %v2386, %v2391
        %v2453 = vmul.f32 %v2387, %v2391
        %v2454 = vmul.f32 %v2388, %v2391
        %v2455 = vmul.f32 %v2389, %v2391
        %v2456 = vmax.f32 %v1455, -2.5
        %v2457 = vmax.f32 %v1479, -2.5
        %v2458 = vmax.f32 %v1462, -2.5
        %v2459 = vmax.f32 %v1480, -2.5
        %v2460 = vmax.f32 %v1471, -2.5
        %v2461 = vmax.f32 %v1481, -2.5
        %v2462 = vmax.f32 %v1478, -2.5
        %v2463 = vmax.f32 %v1482, -2.5
        %v2464 = vmax.f32 %v1567, -2.5
        %v2465 = vmax.f32 %v1568, -2.5
        %v2466 = vmax.f32 %v1569, -2.5
        %v2467 = vmax.f32 %v1570, -2.5
        %v2468 = vmax.f32 %v1571, -2.5
        %v2469 = vmax.f32 %v1572, -2.5
        %v2470 = vmax.f32 %v1573, -2.5
        %v2471 = vmax.f32 %v1574, -2.5
        %v2472 = vmax.f32 %v1599, -2.5
        %v2473 = vmax.f32 %v1600, -2.5
        %v2474 = vmax.f32 %v1601, -2.5
        %v2475 = vmax.f32 %v1602, -2.5
        %v2476 = vmax.f32 %v1603, -2.5
        %v2477 = vmax.f32 %v1604, -2.5
        %v2478 = vmax.f32 %v1605, -2.5
        %v2479 = vmax.f32 %v1606, -2.5
        %v2480 = vmax.f32 %v1631, -2.5
        %v2481 = vmax.f32 %v1632, -2.5
        %v2482 = vmax.f32 %v1633, -2.5
        %v2483 = vmax.f32 %v1634, -2.5
        %v2484 = vmax.f32 %v1635, -2.5
        %v2485 = vmax.f32 %v1636, -2.5
        %v2486 = vmax.f32 %v1637, -2.5
        %v2487 = vmax.f32 %v1638, -2.5
        %v2488 = vmax.f32 %v1523, -2.5
        %v2489 = vmax.f32 %v1547, -2.5
        %v2490 = vmax.f32 %v1530, -2.5
        %v2491 = vmax.f32 %v1548, -2.5
        %v2492 = vmax.f32 %v1539, -2.5
        %v2493 = vmax.f32 %v1549, -2.5
        %v2494 = vmax.f32 %v1546, -2.5
        %v2495 = vmax.f32 %v1550, -2.5
        %v2496 = vmax.f32 %v1575, -2.5
        %v2497 = vmax.f32 %v1576, -2.5
        %v2498 = vmax.f32 %v1577, -2.5
        %v2499 = vmax.f32 %v1578, -2.5
        %v2500 = vmax.f32 %v1579, -2.5
        %v2501 = vmax.f32 %v1580, -2.5
        %v2502 = vmax.f32 %v1581, -2.5
        %v2503 = vmax.f32 %v1582, -2.5
        %v2504 = vmax.f32 %v1607, -2.5
        %v2505 = vmax.f32 %v1608, -2.5
        %v2506 = vmax.f32 %v1609, -2.5
        %v2507 = vmax.f32 %v1610, -2.5
        %v2508 = vmax.f32 %v1611, -2.5
        %v2509 = vmax.f32 %v1612, -2.5
        %v2510 = vmax.f32 %v1613, -2.5
        %v2511 = vmax.f32 %v1614, -2.5
        %v2512 = vmax.f32 %v1639, -2.5
        %v2513 = vmax.f32 %v1640, -2.5
        %v2514 = vmax.f32 %v1641, -2.5
        %v2515 = vmax.f32 %v1642, -2.5
        %v2516 = vmax.f32 %v1643, -2.5
        %v2517 = vmax.f32 %v1644, -2.5
        %v2518 = vmax.f32 %v1645, -2.5
        %v2519 = vmax.f32 %v1646, -2.5
        %v2520 = vmin.f32 %v2456, 2.5
        %v2521 = vmin.f32 %v2457, 2.5
        %v2522 = vmin.f32 %v2458, 2.5
        %v2523 = vmin.f32 %v2459, 2.5
        %v2524 = vmin.f32 %v2460, 2.5
        %v2525 = vmin.f32 %v2461, 2.5
        %v2526 = vmin.f32 %v2462, 2.5
        %v2527 = vmin.f32 %v2463, 2.5
        %v2528 = vmin.f32 %v2464, 2.5
        %v2529 = vmin.f32 %v2465, 2.5
        %v2530 = vmin.f32 %v2466, 2.5
        %v2531 = vmin.f32 %v2467, 2.5
        %v2532 = vmin.f32 %v2468, 2.5
        %v2533 = vmin.f32 %v2469, 2.5
        %v2534 = vmin.f32 %v2470, 2.5
        %v2535 = vmin.f32 %v2471, 2.5
        %v2536 = vmin.f32 %v2472, 2.5
        %v2537 = vmin.f32 %v2473, 2.5
        %v2538 = vmin.f32 %v2474, 2.5
        %v2539 = vmin.f32 %v2475, 2.5
        %v2540 = vmin.f32 %v2476, 2.5
        %v2541 = vmin.f32 %v2477, 2.5
        %v2542 = vmin.f32 %v2478, 2.5
        %v2543 = vmin.f32 %v2479, 2.5
        %v2544 = vmin.f32 %v2480, 2.5
        %v2545 = vmin.f32 %v2481, 2.5
        %v2546 = vmin.f32 %v2482, 2.5
        %v2547 = vmin.f32 %v2483, 2.5
        %v2548 = vmin.f32 %v2484, 2.5
        %v2549 = vmin.f32 %v2485, 2.5
        %v2550 = vmin.f32 %v2486, 2.5
        %v2551 = vmin.f32 %v2487, 2.5
        %v2552 = vmin.f32 %v2488, 2.5
        %v2553 = vmin.f32 %v2489, 2.5
        %v2554 = vmin.f32 %v2490, 2.5
        %v2555 = vmin.f32 %v2491, 2.5
        %v2556 = vmin.f32 %v2492, 2.5
        %v2557 = vmin.f32 %v2493, 2.5
        %v2558 = vmin.f32 %v2494, 2.5
        %v2559 = vmin.f32 %v2495, 2.5
        %v2560 = vmin.f32 %v2496, 2.5
        %v2561 = vmin.f32 %v2497, 2.5
        %v2562 = vmin.f32 %v2498, 2.5
        %v2563 = vmin.f32 %v2499, 2.5
        %v2564 = vmin.f32 %v2500, 2.5
        %v2565 = vmin.f32 %v2501, 2.5
        %v2566 = vmin.f32 %v2502, 2.5
        %v2567 = vmin.f32 %v2503, 2.5
        %v2568 = vmin.f32 %v2504, 2.5
        %v2569 = vmin.f32 %v2505, 2.5
        %v2570 = vmin.f32 %v2506, 2.5
        %v2571 = vmin.f32 %v2507, 2.5
        %v2572 = vmin.f32 %v2508, 2.5
        %v2573 = vmin.f32 %v2509, 2.5
        %v2574 = vmin.f32 %v2510, 2.5
        %v2575 = vmin.f32 %v2511, 2.5
        %v2576 = vmin.f32 %v2512, 2.5
        %v2577 = vmin.f32 %v2513, 2.5
        %v2578 = vmin.f32 %v2514, 2.5
        %v2579 = vmin.f32 %v2515, 2.5
        %v2580 = vmin.f32 %v2516, 2.5
        %v2581 = vmin.f32 %v2517, 2.5
        %v2582 = vmin.f32 %v2518, 2.5
        %v2583 = vmin.f32 %v2519, 2.5
        %v2584 = vand.u32 2147483647, %v2520
        %v2585 = vand.u32 2147483647, %v2521
        %v2586 = vand.u32 2147483647, %v2522
        %v2587 = vand.u32 2147483647, %v2523
        %v2588 = vand.u32 2147483647, %v2524
        %v2589 = vand.u32 2147483647, %v2525
        %v2590 = vand.u32 2147483647, %v2526
        %v2591 = vand.u32 2147483647, %v2527
        %v2592 = vand.u32 2147483647, %v2528
        %v2593 = vand.u32 2147483647, %v2529
        %v2594 = vand.u32 2147483647, %v2530
        %v2595 = vand.u32 2147483647, %v2531
        %v2596 = vand.u32 2147483647, %v2532
        %v2597 = vand.u32 2147483647, %v2533
        %v2598 = vand.u32 2147483647, %v2534
        %v2599 = vand.u32 2147483647, %v2535
        %v2600 = vand.u32 2147483647, %v2536
        %v2601 = vand.u32 2147483647, %v2537
        %v2602 = vand.u32 2147483647, %v2538
        %v2603 = vand.u32 2147483647, %v2539
        %v2604 = vand.u32 2147483647, %v2540
        %v2605 = vand.u32 2147483647, %v2541
        %v2606 = vand.u32 2147483647, %v2542
        %v2607 = vand.u32 2147483647, %v2543
        %v2608 = vand.u32 2147483647, %v2544
        %v2609 = vand.u32 2147483647, %v2545
        %v2610 = vand.u32 2147483647, %v2546
        %v2611 = vand.u32 2147483647, %v2547
        %v2612 = vand.u32 2147483647, %v2548
        %v2613 = vand.u32 2147483647, %v2549
        %v2614 = vand.u32 2147483647, %v2550
        %v2615 = vand.u32 2147483647, %v2551
        %v2616 = vand.u32 2147483647, %v2552
        %v2617 = vand.u32 2147483647, %v2553
        %v2618 = vand.u32 2147483647, %v2554
        %v2619 = vand.u32 2147483647, %v2555
        %v2620 = vand.u32 2147483647, %v2556
        %v2621 = vand.u32 2147483647, %v2557
        %v2622 = vand.u32 2147483647, %v2558
        %v2623 = vand.u32 2147483647, %v2559
        %v2624 = vand.u32 2147483647, %v2560
        %v2625 = vand.u32 2147483647, %v2561
        %v2626 = vand.u32 2147483647, %v2562
        %v2627 = vand.u32 2147483647, %v2563
        %v2628 = vand.u32 2147483647, %v2564
        %v2629 = vand.u32 2147483647, %v2565
        %v2630 = vand.u32 2147483647, %v2566
        %v2631 = vand.u32 2147483647, %v2567
        %v2632 = vand.u32 2147483647, %v2568
        %v2633 = vand.u32 2147483647, %v2569
        %v2634 = vand.u32 2147483647, %v2570
        %v2635 = vand.u32 2147483647, %v2571
        %v2636 = vand.u32 2147483647, %v2572
        %v2637 = vand.u32 2147483647, %v2573
        %v2638 = vand.u32 2147483647, %v2574
        %v2639 = vand.u32 2147483647, %v2575
        %v2640 = vand.u32 2147483647, %v2576
        %v2641 = vand.u32 2147483647, %v2577
        %v2642 = vand.u32 2147483647, %v2578
        %v2643 = vand.u32 2147483647, %v2579
        %v2644 = vand.u32 2147483647, %v2580
        %v2645 = vand.u32 2147483647, %v2581
        %v2646 = vand.u32 2147483647, %v2582
        %v2647 = vand.u32 2147483647, %v2583
        %v2648 = vsel %vm2127, %v2584, -inf
        %v2649 = vsel %vm2127, %v2585, -inf
        %v2650 = vsel %vm2127, %v2586, -inf
        %v2651 = vsel %vm2127, %v2587, -inf
        %v2652 = vsel %vm2127, %v2588, -inf
        %v2653 = vmax.f32 %v2648, %v2652
        %v2654 = vsel %vm2127, %v2589, -inf
        %v2655 = vmax.f32 %v2649, %v2654
        %v2656 = vsel %vm2127, %v2590, -inf
        %v2657 = vmax.f32 %v2650, %v2656
        %v2658 = vsel %vm2127, %v2591, -inf
        %v2659 = vmax.f32 %v2651, %v2658
        %v2660 = vsel %vm2127, %v2592, -inf
        %v2661 = vmax.f32 %v2653, %v2660
        %v2662 = vsel %vm2127, %v2593, -inf
        %v2663 = vmax.f32 %v2655, %v2662
        %v2664 = vsel %vm2127, %v2594, -inf
        %v2665 = vmax.f32 %v2657, %v2664
        %v2666 = vsel %vm2127, %v2595, -inf
        %v2667 = vmax.f32 %v2659, %v2666
        %v2668 = vsel %vm2127, %v2596, -inf
        %v2669 = vmax.f32 %v2661, %v2668
        %v2670 = vsel %vm2127, %v2597, -inf
        %v2671 = vmax.f32 %v2663, %v2670
        %v2672 = vsel %vm2127, %v2598, -inf
        %v2673 = vmax.f32 %v2665, %v2672
        %v2674 = vsel %vm2127, %v2599, -inf
        %v2675 = vmax.f32 %v2667, %v2674
        %v2676 = vsel %vm2127, %v2600, -inf
        %v2677 = vmax.f32 %v2669, %v2676
        %v2678 = vsel %vm2127, %v2601, -inf
        %v2679 = vmax.f32 %v2671, %v2678
        %v2680 = vsel %vm2127, %v2602, -inf
        %v2681 = vmax.f32 %v2673, %v2680
        %v2682 = vsel %vm2127, %v2603, -inf
        %v2683 = vmax.f32 %v2675, %v2682
        %v2684 = vsel %vm2127, %v2604, -inf
        %v2685 = vmax.f32 %v2677, %v2684
        %v2686 = vsel %vm2127, %v2605, -inf
        %v2687 = vmax.f32 %v2679, %v2686
        %v2688 = vsel %vm2127, %v2606, -inf
        %v2689 = vmax.f32 %v2681, %v2688
        %v2690 = vsel %vm2127, %v2607, -inf
        %v2691 = vmax.f32 %v2683, %v2690
        %v2692 = vsel %vm2127, %v2608, -inf
        %v2693 = vmax.f32 %v2685, %v2692
        %v2694 = vsel %vm2127, %v2609, -inf
        %v2695 = vmax.f32 %v2687, %v2694
        %v2696 = vsel %vm2127, %v2610, -inf
        %v2697 = vmax.f32 %v2689, %v2696
        %v2698 = vsel %vm2127, %v2611, -inf
        %v2699 = vmax.f32 %v2691, %v2698
        %v2700 = vsel %vm2127, %v2612, -inf
        %v2701 = vmax.f32 %v2693, %v2700
        %v2702 = vsel %vm2127, %v2613, -inf
        %v2703 = vmax.f32 %v2695, %v2702
        %v2704 = vsel %vm2127, %v2614, -inf
        %v2705 = vmax.f32 %v2697, %v2704
        %v2706 = vsel %vm2127, %v2615, -inf
        %v2707 = vmax.f32 %v2699, %v2706
        %v2708 = vsel %vm2127, %v2616, -inf
        %v2709 = vmax.f32 %v2701, %v2708
        %v2710 = vsel %vm2127, %v2617, -inf
        %v2711 = vmax.f32 %v2703, %v2710
        %v2712 = vsel %vm2127, %v2618, -inf
        %v2713 = vmax.f32 %v2705, %v2712
        %v2714 = vsel %vm2127, %v2619, -inf
        %v2715 = vmax.f32 %v2707, %v2714
        %v2716 = vsel %vm2127, %v2620, -inf
        %v2717 = vmax.f32 %v2709, %v2716
        %v2718 = vsel %vm2127, %v2621, -inf
        %v2719 = vmax.f32 %v2711, %v2718
        %v2720 = vsel %vm2127, %v2622, -inf
        %v2721 = vmax.f32 %v2713, %v2720
        %v2722 = vsel %vm2127, %v2623, -inf
        %v2723 = vmax.f32 %v2715, %v2722
        %v2724 = vsel %vm2127, %v2624, -inf
        %v2725 = vmax.f32 %v2717, %v2724
        %v2726 = vsel %vm2127, %v2625, -inf
        %v2727 = vmax.f32 %v2719, %v2726
        %v2728 = vsel %vm2127, %v2626, -inf
        %v2729 = vmax.f32 %v2721, %v2728
        %v2730 = vsel %vm2127, %v2627, -inf
        %v2731 = vmax.f32 %v2723, %v2730
        %v2732 = vsel %vm2127, %v2628, -inf
        %v2733 = vmax.f32 %v2725, %v2732
        %v2734 = vsel %vm2127, %v2629, -inf
        %v2735 = vmax.f32 %v2727, %v2734
        %v2736 = vsel %vm2127, %v2630, -inf
        %v2737 = vmax.f32 %v2729, %v2736
        %v2738 = vsel %vm2127, %v2631, -inf
        %v2739 = vmax.f32 %v2731, %v2738
        %v2740 = vsel %vm2127, %v2632, -inf
        %v2741 = vmax.f32 %v2733, %v2740
        %v2742 = vsel %vm2127, %v2633, -inf
        %v2743 = vmax.f32 %v2735, %v2742
        %v2744 = vsel %vm2127, %v2634, -inf
        %v2745 = vmax.f32 %v2737, %v2744
        %v2746 = vsel %vm2127, %v2635, -inf
        %v2747 = vmax.f32 %v2739, %v2746
        %v2748 = vsel %vm2127, %v2636, -inf
        %v2749 = vmax.f32 %v2741, %v2748
        %v2750 = vsel %vm2127, %v2637, -inf
        %v2751 = vmax.f32 %v2743, %v2750
        %v2752 = vsel %vm2127, %v2638, -inf
        %v2753 = vmax.f32 %v2745, %v2752
        %v2754 = vsel %vm2127, %v2639, -inf
        %v2755 = vmax.f32 %v2747, %v2754
        %v2756 = vsel %vm2127, %v2640, -inf
        %v2757 = vmax.f32 %v2749, %v2756
        %v2758 = vsel %vm2127, %v2641, -inf
        %v2759 = vmax.f32 %v2751, %v2758
        %v2760 = vsel %vm2127, %v2642, -inf
        %v2761 = vmax.f32 %v2753, %v2760
        %v2762 = vsel %vm2127, %v2643, -inf
        %v2763 = vmax.f32 %v2755, %v2762
        %v2764 = vsel %vm2127, %v2644, -inf
        %v2765 = vmax.f32 %v2757, %v2764
        %v2766 = vsel %vm2127, %v2645, -inf
        %v2767 = vmax.f32 %v2759, %v2766
        %v2768 = vsel %vm2127, %v2646, -inf
        %v2769 = vmax.f32 %v2761, %v2768
        %v2770 = vsel %vm2127, %v2647, -inf
        %v2771 = vmax.f32 %v2763, %v2770
        %v2772 = vmax.f32 %v2765, %v2767
        %v2773 = vmax.f32 %v2769, %v2771
        %v2774 = vmax.f32 %v2772, %v2773
        %2775 = vmax.xlane.f32.xlu0 %v2774
        %v2776 = vpop.xlane.xlu0 %2775
        %s2777 = vtos %v2776
        %s2778 = smax.f32 %s2777, 1e-08
        %v2779 = vstv %s2778
        %v2780 = vrcp.pop %v2779
        %v2781 = vmul.f32 %v2780, 127.0
        %v2782 = vmul.f32 %v2520, %v2781
        %v2783 = vmul.f32 %v2521, %v2781
        %v2784 = vmul.f32 %v2522, %v2781
        %v2785 = vmul.f32 %v2523, %v2781
        %v2786 = vmul.f32 %v2524, %v2781
        %v2787 = vmul.f32 %v2525, %v2781
        %v2788 = vmul.f32 %v2526, %v2781
        %v2789 = vmul.f32 %v2527, %v2781
        %v2790 = vmul.f32 %v2528, %v2781
        %v2791 = vmul.f32 %v2529, %v2781
        %v2792 = vmul.f32 %v2530, %v2781
        %v2793 = vmul.f32 %v2531, %v2781
        %v2794 = vmul.f32 %v2532, %v2781
        %v2795 = vmul.f32 %v2533, %v2781
        %v2796 = vmul.f32 %v2534, %v2781
        %v2797 = vmul.f32 %v2535, %v2781
        %v2798 = vmul.f32 %v2536, %v2781
        %v2799 = vmul.f32 %v2537, %v2781
        %v2800 = vmul.f32 %v2538, %v2781
        %v2801 = vmul.f32 %v2539, %v2781
        %v2802 = vmul.f32 %v2540, %v2781
        %v2803 = vmul.f32 %v2541, %v2781
        %v2804 = vmul.f32 %v2542, %v2781
        %v2805 = vmul.f32 %v2543, %v2781
        %v2806 = vmul.f32 %v2544, %v2781
        %v2807 = vmul.f32 %v2545, %v2781
        %v2808 = vmul.f32 %v2546, %v2781
        %v2809 = vmul.f32 %v2547, %v2781
        %v2810 = vmul.f32 %v2548, %v2781
        %v2811 = vmul.f32 %v2549, %v2781
        %v2812 = vmul.f32 %v2550, %v2781
        %v2813 = vmul.f32 %v2551, %v2781
        %v2814 = vmul.f32 %v2552, %v2781
        %v2815 = vmul.f32 %v2553, %v2781
        %v2816 = vmul.f32 %v2554, %v2781
        %v2817 = vmul.f32 %v2555, %v2781
        %v2818 = vmul.f32 %v2556, %v2781
        %v2819 = vmul.f32 %v2557, %v2781
        %v2820 = vmul.f32 %v2558, %v2781
        %v2821 = vmul.f32 %v2559, %v2781
        %v2822 = vmul.f32 %v2560, %v2781
        %v2823 = vmul.f32 %v2561, %v2781
        %v2824 = vmul.f32 %v2562, %v2781
        %v2825 = vmul.f32 %v2563, %v2781
        %v2826 = vmul.f32 %v2564, %v2781
        %v2827 = vmul.f32 %v2565, %v2781
        %v2828 = vmul.f32 %v2566, %v2781
        %v2829 = vmul.f32 %v2567, %v2781
        %v2830 = vmul.f32 %v2568, %v2781
        %v2831 = vmul.f32 %v2569, %v2781
        %v2832 = vmul.f32 %v2570, %v2781
        %v2833 = vmul.f32 %v2571, %v2781
        %v2834 = vmul.f32 %v2572, %v2781
        %v2835 = vmul.f32 %v2573, %v2781
        %v2836 = vmul.f32 %v2574, %v2781
        %v2837 = vmul.f32 %v2575, %v2781
        %v2838 = vmul.f32 %v2576, %v2781
        %v2839 = vmul.f32 %v2577, %v2781
        %v2840 = vmul.f32 %v2578, %v2781
        %v2841 = vmul.f32 %v2579, %v2781
        %v2842 = vmul.f32 %v2580, %v2781
        %v2843 = vmul.f32 %v2581, %v2781
        %v2844 = vmul.f32 %v2582, %v2781
        %v2845 = vmul.f32 %v2583, %v2781
        %v2846 = vround.ne.pseudo %v2782
        %v2847 = vround.ne.pseudo %v2783
        %v2848 = vround.ne.pseudo %v2784
        %v2849 = vround.ne.pseudo %v2785
        %v2850 = vround.ne.pseudo %v2786
        %v2851 = vround.ne.pseudo %v2787
        %v2852 = vround.ne.pseudo %v2788
        %v2853 = vround.ne.pseudo %v2789
        %v2854 = vround.ne.pseudo %v2790
        %v2855 = vround.ne.pseudo %v2791
        %v2856 = vround.ne.pseudo %v2792
        %v2857 = vround.ne.pseudo %v2793
        %v2858 = vround.ne.pseudo %v2794
        %v2859 = vround.ne.pseudo %v2795
        %v2860 = vround.ne.pseudo %v2796
        %v2861 = vround.ne.pseudo %v2797
        %v2862 = vround.ne.pseudo %v2798
        %v2863 = vround.ne.pseudo %v2799
        %v2864 = vround.ne.pseudo %v2800
        %v2865 = vround.ne.pseudo %v2801
        %v2866 = vround.ne.pseudo %v2802
        %v2867 = vround.ne.pseudo %v2803
        %v2868 = vround.ne.pseudo %v2804
        %v2869 = vround.ne.pseudo %v2805
        %v2870 = vround.ne.pseudo %v2806
        %v2871 = vround.ne.pseudo %v2807
        %v2872 = vround.ne.pseudo %v2808
        %v2873 = vround.ne.pseudo %v2809
        %v2874 = vround.ne.pseudo %v2810
        %v2875 = vround.ne.pseudo %v2811
        %v2876 = vround.ne.pseudo %v2812
        %v2877 = vround.ne.pseudo %v2813
        %v2878 = vround.ne.pseudo %v2814
        %v2879 = vround.ne.pseudo %v2815
        %v2880 = vround.ne.pseudo %v2816
        %v2881 = vround.ne.pseudo %v2817
        %v2882 = vround.ne.pseudo %v2818
        %v2883 = vround.ne.pseudo %v2819
        %v2884 = vround.ne.pseudo %v2820
        %v2885 = vround.ne.pseudo %v2821
        %v2886 = vround.ne.pseudo %v2822
        %v2887 = vround.ne.pseudo %v2823
        %v2888 = vround.ne.pseudo %v2824
        %v2889 = vround.ne.pseudo %v2825
        %v2890 = vround.ne.pseudo %v2826
        %v2891 = vround.ne.pseudo %v2827
        %v2892 = vround.ne.pseudo %v2828
        %v2893 = vround.ne.pseudo %v2829
        %v2894 = vround.ne.pseudo %v2830
        %v2895 = vround.ne.pseudo %v2831
        %v2896 = vround.ne.pseudo %v2832
        %v2897 = vround.ne.pseudo %v2833
        %v2898 = vround.ne.pseudo %v2834
        %v2899 = vround.ne.pseudo %v2835
        %v2900 = vround.ne.pseudo %v2836
        %v2901 = vround.ne.pseudo %v2837
        %v2902 = vround.ne.pseudo %v2838
        %v2903 = vround.ne.pseudo %v2839
        %v2904 = vround.ne.pseudo %v2840
        %v2905 = vround.ne.pseudo %v2841
        %v2906 = vround.ne.pseudo %v2842
        %v2907 = vround.ne.pseudo %v2843
        %v2908 = vround.ne.pseudo %v2844
        %v2909 = vround.ne.pseudo %v2845
        %s2910 = smul.f32 %s2778, 0.007874016
        %v2911 = vstv %s2910
        %v2912 = vmul.f32 %v2846, %v2911
        %v2913 = vmul.f32 %v2847, %v2911
        %v2914 = vmul.f32 %v2848, %v2911
        %v2915 = vmul.f32 %v2849, %v2911
        %v2916 = vmul.f32 %v2850, %v2911
        %v2917 = vmul.f32 %v2851, %v2911
        %v2918 = vmul.f32 %v2852, %v2911
        %v2919 = vmul.f32 %v2853, %v2911
        %v2920 = vmul.f32 %v2854, %v2911
        %v2921 = vmul.f32 %v2855, %v2911
        %v2922 = vmul.f32 %v2856, %v2911
        %v2923 = vmul.f32 %v2857, %v2911
        %v2924 = vmul.f32 %v2858, %v2911
        %v2925 = vmul.f32 %v2859, %v2911
        %v2926 = vmul.f32 %v2860, %v2911
        %v2927 = vmul.f32 %v2861, %v2911
        %v2928 = vmul.f32 %v2862, %v2911
        %v2929 = vmul.f32 %v2863, %v2911
        %v2930 = vmul.f32 %v2864, %v2911
        %v2931 = vmul.f32 %v2865, %v2911
        %v2932 = vmul.f32 %v2866, %v2911
        %v2933 = vmul.f32 %v2867, %v2911
        %v2934 = vmul.f32 %v2868, %v2911
        %v2935 = vmul.f32 %v2869, %v2911
        %v2936 = vmul.f32 %v2870, %v2911
        %v2937 = vmul.f32 %v2871, %v2911
        %v2938 = vmul.f32 %v2872, %v2911
        %v2939 = vmul.f32 %v2873, %v2911
        %v2940 = vmul.f32 %v2874, %v2911
        %v2941 = vmul.f32 %v2875, %v2911
        %v2942 = vmul.f32 %v2876, %v2911
        %v2943 = vmul.f32 %v2877, %v2911
        %v2944 = vmul.f32 %v2878, %v2911
        %v2945 = vmul.f32 %v2879, %v2911
        %v2946 = vmul.f32 %v2880, %v2911
        %v2947 = vmul.f32 %v2881, %v2911
        %v2948 = vmul.f32 %v2882, %v2911
        %v2949 = vmul.f32 %v2883, %v2911
        %v2950 = vmul.f32 %v2884, %v2911
        %v2951 = vmul.f32 %v2885, %v2911
        %v2952 = vmul.f32 %v2886, %v2911
        %v2953 = vmul.f32 %v2887, %v2911
        %v2954 = vmul.f32 %v2888, %v2911
        %v2955 = vmul.f32 %v2889, %v2911
        %v2956 = vmul.f32 %v2890, %v2911
        %v2957 = vmul.f32 %v2891, %v2911
        %v2958 = vmul.f32 %v2892, %v2911
        %v2959 = vmul.f32 %v2893, %v2911
        %v2960 = vmul.f32 %v2894, %v2911
        %v2961 = vmul.f32 %v2895, %v2911
        %v2962 = vmul.f32 %v2896, %v2911
        %v2963 = vmul.f32 %v2897, %v2911
        %v2964 = vmul.f32 %v2898, %v2911
        %v2965 = vmul.f32 %v2899, %v2911
        %v2966 = vmul.f32 %v2900, %v2911
        %v2967 = vmul.f32 %v2901, %v2911
        %v2968 = vmul.f32 %v2902, %v2911
        %v2969 = vmul.f32 %v2903, %v2911
        %v2970 = vmul.f32 %v2904, %v2911
        %v2971 = vmul.f32 %v2905, %v2911
        %v2972 = vmul.f32 %v2906, %v2911
        %v2973 = vmul.f32 %v2907, %v2911
        %v2974 = vmul.f32 %v2908, %v2911
        %v2975 = vmul.f32 %v2909, %v2911
        %v2976 = vpack.c.bf16 %v2392, %v2392
        %v2977 = vpack.c.bf16 %v2393, %v2393
        %v2978 = vpack.c.bf16 %v2394, %v2394
        %v2979 = vpack.c.bf16 %v2395, %v2395
        %v2980 = vpack.c.bf16 %v2396, %v2396
        %v2981 = vpack.c.bf16 %v2397, %v2397
        %v2982 = vpack.c.bf16 %v2398, %v2398
        %v2983 = vpack.c.bf16 %v2399, %v2399
        %v2984 = vpack.c.bf16 %v2400, %v2400
        %v2985 = vpack.c.bf16 %v2401, %v2401
        %v2986 = vpack.c.bf16 %v2402, %v2402
        %v2987 = vpack.c.bf16 %v2403, %v2403
        %v2988 = vpack.c.bf16 %v2404, %v2404
        %v2989 = vpack.c.bf16 %v2405, %v2405
        %v2990 = vpack.c.bf16 %v2406, %v2406
        %v2991 = vpack.c.bf16 %v2407, %v2407
        %v2992 = vpack.c.bf16 %v2408, %v2408
        %v2993 = vpack.c.bf16 %v2409, %v2409
        %v2994 = vpack.c.bf16 %v2410, %v2410
        %v2995 = vpack.c.bf16 %v2411, %v2411
        %v2996 = vpack.c.bf16 %v2412, %v2412
        %v2997 = vpack.c.bf16 %v2413, %v2413
        %v2998 = vpack.c.bf16 %v2414, %v2414
        %v2999 = vpack.c.bf16 %v2415, %v2415
        %v3000 = vpack.c.bf16 %v2416, %v2416
        %v3001 = vpack.c.bf16 %v2417, %v2417
        %v3002 = vpack.c.bf16 %v2418, %v2418
        %v3003 = vpack.c.bf16 %v2419, %v2419
        %v3004 = vpack.c.bf16 %v2420, %v2420
        %v3005 = vpack.c.bf16 %v2421, %v2421
        %v3006 = vpack.c.bf16 %v2422, %v2422
        %v3007 = vpack.c.bf16 %v2423, %v2423
        %v3008 = vpack.c.bf16 %v2424, %v2424
        %v3009 = vpack.c.bf16 %v2425, %v2425
        %v3010 = vpack.c.bf16 %v2426, %v2426
        %v3011 = vpack.c.bf16 %v2427, %v2427
        %v3012 = vpack.c.bf16 %v2428, %v2428
        %v3013 = vpack.c.bf16 %v2429, %v2429
        %v3014 = vpack.c.bf16 %v2430, %v2430
        %v3015 = vpack.c.bf16 %v2431, %v2431
        %v3016 = vpack.c.bf16 %v2432, %v2432
        %v3017 = vpack.c.bf16 %v2433, %v2433
        %v3018 = vpack.c.bf16 %v2434, %v2434
        %v3019 = vpack.c.bf16 %v2435, %v2435
        %v3020 = vpack.c.bf16 %v2436, %v2436
        %v3021 = vpack.c.bf16 %v2437, %v2437
        %v3022 = vpack.c.bf16 %v2438, %v2438
        %v3023 = vpack.c.bf16 %v2439, %v2439
        %v3024 = vpack.c.bf16 %v2440, %v2440
        %v3025 = vpack.c.bf16 %v2441, %v2441
        %v3026 = vpack.c.bf16 %v2442, %v2442
        %v3027 = vpack.c.bf16 %v2443, %v2443
        %v3028 = vpack.c.bf16 %v2444, %v2444
        %v3029 = vpack.c.bf16 %v2445, %v2445
        %v3030 = vpack.c.bf16 %v2446, %v2446
        %v3031 = vpack.c.bf16 %v2447, %v2447
        %v3032 = vpack.c.bf16 %v2448, %v2448
        %v3033 = vpack.c.bf16 %v2449, %v2449
        %v3034 = vpack.c.bf16 %v2450, %v2450
        %v3035 = vpack.c.bf16 %v2451, %v2451
        %v3036 = vpack.c.bf16 %v2452, %v2452
        %v3037 = vpack.c.bf16 %v2453, %v2453
        %v3038 = vpack.c.bf16 %v2454, %v2454
        %v3039 = vpack.c.bf16 %v2455, %v2455
        %v3040 = vpack.c.bf16 %v2912, %v2912
        %v3041 = vpack.c.bf16 %v2913, %v2913
        %v3042 = vpack.c.bf16 %v2914, %v2914
        %v3043 = vpack.c.bf16 %v2915, %v2915
        %v3044 = vpack.c.bf16 %v2916, %v2916
        %v3045 = vpack.c.bf16 %v2917, %v2917
        %v3046 = vpack.c.bf16 %v2918, %v2918
        %v3047 = vpack.c.bf16 %v2919, %v2919
        %v3048 = vpack.c.bf16 %v2920, %v2920
        %v3049 = vpack.c.bf16 %v2921, %v2921
        %v3050 = vpack.c.bf16 %v2922, %v2922
        %v3051 = vpack.c.bf16 %v2923, %v2923
        %v3052 = vpack.c.bf16 %v2924, %v2924
        %v3053 = vpack.c.bf16 %v2925, %v2925
        %v3054 = vpack.c.bf16 %v2926, %v2926
        %v3055 = vpack.c.bf16 %v2927, %v2927
        %v3056 = vpack.c.bf16 %v2928, %v2928
        %v3057 = vpack.c.bf16 %v2929, %v2929
        %v3058 = vpack.c.bf16 %v2930, %v2930
        %v3059 = vpack.c.bf16 %v2931, %v2931
        %v3060 = vpack.c.bf16 %v2932, %v2932
        %v3061 = vpack.c.bf16 %v2933, %v2933
        %v3062 = vpack.c.bf16 %v2934, %v2934
        %v3063 = vpack.c.bf16 %v2935, %v2935
        %v3064 = vpack.c.bf16 %v2936, %v2936
        %v3065 = vpack.c.bf16 %v2937, %v2937
        %v3066 = vpack.c.bf16 %v2938, %v2938
        %v3067 = vpack.c.bf16 %v2939, %v2939
        %v3068 = vpack.c.bf16 %v2940, %v2940
        %v3069 = vpack.c.bf16 %v2941, %v2941
        %v3070 = vpack.c.bf16 %v2942, %v2942
        %v3071 = vpack.c.bf16 %v2943, %v2943
        %v3072 = vpack.c.bf16 %v2944, %v2944
        %v3073 = vpack.c.bf16 %v2945, %v2945
        %v3074 = vpack.c.bf16 %v2946, %v2946
        %v3075 = vpack.c.bf16 %v2947, %v2947
        %v3076 = vpack.c.bf16 %v2948, %v2948
        %v3077 = vpack.c.bf16 %v2949, %v2949
        %v3078 = vpack.c.bf16 %v2950, %v2950
        %v3079 = vpack.c.bf16 %v2951, %v2951
        %v3080 = vpack.c.bf16 %v2952, %v2952
        %v3081 = vpack.c.bf16 %v2953, %v2953
        %v3082 = vpack.c.bf16 %v2954, %v2954
        %v3083 = vpack.c.bf16 %v2955, %v2955
        %v3084 = vpack.c.bf16 %v2956, %v2956
        %v3085 = vpack.c.bf16 %v2957, %v2957
        %v3086 = vpack.c.bf16 %v2958, %v2958
        %v3087 = vpack.c.bf16 %v2959, %v2959
        %v3088 = vpack.c.bf16 %v2960, %v2960
        %v3089 = vpack.c.bf16 %v2961, %v2961
        %v3090 = vpack.c.bf16 %v2962, %v2962
        %v3091 = vpack.c.bf16 %v2963, %v2963
        %v3092 = vpack.c.bf16 %v2964, %v2964
        %v3093 = vpack.c.bf16 %v2965, %v2965
        %v3094 = vpack.c.bf16 %v2966, %v2966
        %v3095 = vpack.c.bf16 %v2967, %v2967
        %v3096 = vpack.c.bf16 %v2968, %v2968
        %v3097 = vpack.c.bf16 %v2969, %v2969
        %v3098 = vpack.c.bf16 %v2970, %v2970
        %v3099 = vpack.c.bf16 %v2971, %v2971
        %v3100 = vpack.c.bf16 %v2972, %v2972
        %v3101 = vpack.c.bf16 %v2973, %v2973
        %v3102 = vpack.c.bf16 %v2974, %v2974
        %v3103 = vpack.c.bf16 %v2975, %v2975
        %v3112 = vunpack.c.l.b16 %v2976
        %v3113 = vunpack.c.l.b16 %v2977
        %v3114 = vunpack.c.l.b16 %v2978
        %v3115 = vunpack.c.l.b16 %v2979
        %v3116 = vunpack.c.l.b16 %v2980
        %v3117 = vunpack.c.l.b16 %v2981
        %v3118 = vunpack.c.l.b16 %v2982
        %v3119 = vunpack.c.l.b16 %v2983
        %v3120 = vrot.slane %v3113, 7
        %vm3121 = vcmask 1041409
        %v3122 = vsel %vm3121, %v3120, %v3112
        %v3123 = vrot.slane %v3114, 6
        %vm3124 = vcmask 1042434
        %v3125 = vsel %vm3124, %v3123, %v3122
        %v3126 = vrot.slane %v3115, 5
        %vm3127 = vcmask 1043459
        %v3128 = vsel %vm3127, %v3126, %v3125
        %v3129 = vrot.slane %v3116, 4
        %vm3130 = vcmask 1044484
        %v3131 = vsel %vm3130, %v3129, %v3128
        %v3132 = vrot.slane %v3117, 3
        %vm3133 = vcmask 1045509
        %v3134 = vsel %vm3133, %v3132, %v3131
        %v3135 = vrot.slane %v3118, 2
        %vm3136 = vcmask 1046534
        %v3137 = vsel %vm3136, %v3135, %v3134
        %v3138 = vrot.slane %v3119, 1
        %vm3139 = vcmask 1047559
        %v3140 = vsel %vm3139, %v3138, %v3137
        %v3141 = vpack.c.b16 %v3140, %v3140
        %v3150 = vunpack.c.l.b16 %v3040
        %v3151 = vunpack.c.l.b16 %v3041
        %v3152 = vunpack.c.l.b16 %v3042
        %v3153 = vunpack.c.l.b16 %v3043
        %v3154 = vunpack.c.l.b16 %v3044
        %v3155 = vunpack.c.l.b16 %v3045
        %v3156 = vunpack.c.l.b16 %v3046
        %v3157 = vunpack.c.l.b16 %v3047
        %v3158 = vrot.slane %v3151, 7
        %v3159 = vsel %vm3121, %v3158, %v3150
        %v3160 = vrot.slane %v3152, 6
        %v3161 = vsel %vm3124, %v3160, %v3159
        %v3162 = vrot.slane %v3153, 5
        %v3163 = vsel %vm3127, %v3162, %v3161
        %v3164 = vrot.slane %v3154, 4
        %v3165 = vsel %vm3130, %v3164, %v3163
        %v3166 = vrot.slane %v3155, 3
        %v3167 = vsel %vm3133, %v3166, %v3165
        %v3168 = vrot.slane %v3156, 2
        %v3169 = vsel %vm3136, %v3168, %v3167
        %v3170 = vrot.slane %v3157, 1
        %v3171 = vsel %vm3139, %v3170, %v3169
        %v3172 = vpack.c.b16 %v3171, %v3171
        %vm3173 = vcmask 64512
        %v3175 = vsel %vm3173, %v3141, 0
        %v3178 = vsel %vm3173, %v3172, 0
        %3180 = vmatprep.subr.bf16.mxu0 0
        %3181 = vmatpush1.bf16.xpose.msra.mxu0 %v3178
        %3182 = vmatprep.subr.bf16.mxu0 0
        %3183 = vmatpush1.bf16.xpose.msra.mxu0 0
        %3184 = vmatprep.subr.bf16.mxu0 0
        %3185 = vmatpush1.bf16.xpose.msra.mxu0 0
        %3186 = vmatprep.subr.bf16.mxu0 0
        %3187 = vmatpush1.bf16.xpose.msra.mxu0 0
        %3188 = vmatprep.subr.bf16.mxu0 0
        %3189 = vmatpush1.bf16.xpose.msra.mxu0 0
        %3190 = vmatprep.subr.bf16.mxu0 0
        %3191 = vmatpush1.bf16.xpose.msra.mxu0 0
        %3192 = vmatprep.subr.bf16.mxu0 0
        %3193 = vmatpush1.bf16.xpose.msra.mxu0 0
        %3194 = vmatprep.subr.bf16.mxu0 0
        %3195 = vmatpush1.bf16.xpose.msra.mxu0 0
        %3196 = vmatprep.subr.bf16.mxu0 0
        %3197 = vmatpush1.bf16.xpose.msra.mxu0 0
        %3198 = vmatprep.subr.bf16.mxu0 0
        %3199 = vmatpush1.bf16.xpose.msra.mxu0 0
        %3200 = vmatprep.subr.bf16.mxu0 0
        %3201 = vmatpush1.bf16.xpose.msra.mxu0 0
        %3202 = vmatprep.subr.bf16.mxu0 0
        %3203 = vmatpush1.bf16.xpose.msra.mxu0 0
        %3204 = vmatprep.subr.bf16.mxu0 0
        %3205 = vmatpush1.bf16.xpose.msra.mxu0 0
        %3206 = vmatprep.subr.bf16.mxu0 0
        %3207 = vmatpush1.bf16.xpose.msra.mxu0 0
        %3208 = vmatprep.subr.bf16.mxu0 0
        %3209 = vmatpush1.bf16.xpose.msra.mxu0 0
        %3210 = vmatprep.subr.bf16.mxu0 0
        %3211 = vmatpush1.bf16.xpose.msra.mxu0 0
        %3212 = vmatprep.mubr.bf16.mxu0 0
        %3213 = vmatmul.mubr.bf16.gmra.mrb[0].mxu0 %v3175
        %v3214 = vpop.f32.mrb[0].mxu0
        %v3215 = vadd.f32 0.0, %v3214
        %v3216 = vpop.f32.mrb[0].mxu0
        %v3217 = vpop.f32.mrb[0].mxu0
        %v3218 = vpop.f32.mrb[0].mxu0
        %3219 = vdwg.mxu0
        %v3228 = vunpack.c.l.b16 %v2984
        %v3229 = vunpack.c.l.b16 %v2985
        %v3230 = vunpack.c.l.b16 %v2986
        %v3231 = vunpack.c.l.b16 %v2987
        %v3232 = vunpack.c.l.b16 %v2988
        %v3233 = vunpack.c.l.b16 %v2989
        %v3234 = vunpack.c.l.b16 %v2990
        %v3235 = vunpack.c.l.b16 %v2991
        %v3236 = vrot.slane %v3229, 7
        %v3237 = vsel %vm3121, %v3236, %v3228
        %v3238 = vrot.slane %v3230, 6
        %v3239 = vsel %vm3124, %v3238, %v3237
        %v3240 = vrot.slane %v3231, 5
        %v3241 = vsel %vm3127, %v3240, %v3239
        %v3242 = vrot.slane %v3232, 4
        %v3243 = vsel %vm3130, %v3242, %v3241
        %v3244 = vrot.slane %v3233, 3
        %v3245 = vsel %vm3133, %v3244, %v3243
        %v3246 = vrot.slane %v3234, 2
        %v3247 = vsel %vm3136, %v3246, %v3245
        %v3248 = vrot.slane %v3235, 1
        %v3249 = vsel %vm3139, %v3248, %v3247
        %v3250 = vpack.c.b16 %v3249, %v3249
        %v3259 = vunpack.c.l.b16 %v3048
        %v3260 = vunpack.c.l.b16 %v3049
        %v3261 = vunpack.c.l.b16 %v3050
        %v3262 = vunpack.c.l.b16 %v3051
        %v3263 = vunpack.c.l.b16 %v3052
        %v3264 = vunpack.c.l.b16 %v3053
        %v3265 = vunpack.c.l.b16 %v3054
        %v3266 = vunpack.c.l.b16 %v3055
        %v3267 = vrot.slane %v3260, 7
        %v3268 = vsel %vm3121, %v3267, %v3259
        %v3269 = vrot.slane %v3261, 6
        %v3270 = vsel %vm3124, %v3269, %v3268
        %v3271 = vrot.slane %v3262, 5
        %v3272 = vsel %vm3127, %v3271, %v3270
        %v3273 = vrot.slane %v3263, 4
        %v3274 = vsel %vm3130, %v3273, %v3272
        %v3275 = vrot.slane %v3264, 3
        %v3276 = vsel %vm3133, %v3275, %v3274
        %v3277 = vrot.slane %v3265, 2
        %v3278 = vsel %vm3136, %v3277, %v3276
        %v3279 = vrot.slane %v3266, 1
        %v3280 = vsel %vm3139, %v3279, %v3278
        %v3281 = vpack.c.b16 %v3280, %v3280
        %v3283 = vsel %vm3173, %v3250, 0
        %v3286 = vsel %vm3173, %v3281, 0
        %3288 = vmatprep.subr.bf16.mxu0 0
        %3289 = vmatpush1.bf16.xpose.msra.mxu0 %v3286
        %3290 = vmatprep.subr.bf16.mxu0 0
        %3291 = vmatpush1.bf16.xpose.msra.mxu0 0
        %3292 = vmatprep.subr.bf16.mxu0 0
        %3293 = vmatpush1.bf16.xpose.msra.mxu0 0
        %3294 = vmatprep.subr.bf16.mxu0 0
        %3295 = vmatpush1.bf16.xpose.msra.mxu0 0
        %3296 = vmatprep.subr.bf16.mxu0 0
        %3297 = vmatpush1.bf16.xpose.msra.mxu0 0
        %3298 = vmatprep.subr.bf16.mxu0 0
        %3299 = vmatpush1.bf16.xpose.msra.mxu0 0
        %3300 = vmatprep.subr.bf16.mxu0 0
        %3301 = vmatpush1.bf16.xpose.msra.mxu0 0
        %3302 = vmatprep.subr.bf16.mxu0 0
        %3303 = vmatpush1.bf16.xpose.msra.mxu0 0
        %3304 = vmatprep.subr.bf16.mxu0 0
        %3305 = vmatpush1.bf16.xpose.msra.mxu0 0
        %3306 = vmatprep.subr.bf16.mxu0 0
        %3307 = vmatpush1.bf16.xpose.msra.mxu0 0
        %3308 = vmatprep.subr.bf16.mxu0 0
        %3309 = vmatpush1.bf16.xpose.msra.mxu0 0
        %3310 = vmatprep.subr.bf16.mxu0 0
        %3311 = vmatpush1.bf16.xpose.msra.mxu0 0
        %3312 = vmatprep.subr.bf16.mxu0 0
        %3313 = vmatpush1.bf16.xpose.msra.mxu0 0
        %3314 = vmatprep.subr.bf16.mxu0 0
        %3315 = vmatpush1.bf16.xpose.msra.mxu0 0
        %3316 = vmatprep.subr.bf16.mxu0 0
        %3317 = vmatpush1.bf16.xpose.msra.mxu0 0
        %3318 = vmatprep.subr.bf16.mxu0 0
        %3319 = vmatpush1.bf16.xpose.msra.mxu0 0
        %3320 = vmatprep.mubr.bf16.mxu0 0
        %3321 = vmatmul.mubr.bf16.gmra.mrb[0].mxu0 %v3283
        %v3322 = vpop.f32.mrb[0].mxu0
        %v3323 = vadd.f32 0.0, %v3322
        %v3324 = vpop.f32.mrb[0].mxu0
        %v3325 = vpop.f32.mrb[0].mxu0
        %v3326 = vpop.f32.mrb[0].mxu0
        %3327 = vdwg.mxu0
        %v3336 = vunpack.c.l.b16 %v2992
        %v3337 = vunpack.c.l.b16 %v2993
        %v3338 = vunpack.c.l.b16 %v2994
        %v3339 = vunpack.c.l.b16 %v2995
        %v3340 = vunpack.c.l.b16 %v2996
        %v3341 = vunpack.c.l.b16 %v2997
        %v3342 = vunpack.c.l.b16 %v2998
        %v3343 = vunpack.c.l.b16 %v2999
        %v3344 = vrot.slane %v3337, 7
        %v3345 = vsel %vm3121, %v3344, %v3336
        %v3346 = vrot.slane %v3338, 6
        %v3347 = vsel %vm3124, %v3346, %v3345
        %v3348 = vrot.slane %v3339, 5
        %v3349 = vsel %vm3127, %v3348, %v3347
        %v3350 = vrot.slane %v3340, 4
        %v3351 = vsel %vm3130, %v3350, %v3349
        %v3352 = vrot.slane %v3341, 3
        %v3353 = vsel %vm3133, %v3352, %v3351
        %v3354 = vrot.slane %v3342, 2
        %v3355 = vsel %vm3136, %v3354, %v3353
        %v3356 = vrot.slane %v3343, 1
        %v3357 = vsel %vm3139, %v3356, %v3355
        %v3358 = vpack.c.b16 %v3357, %v3357
        %v3367 = vunpack.c.l.b16 %v3056
        %v3368 = vunpack.c.l.b16 %v3057
        %v3369 = vunpack.c.l.b16 %v3058
        %v3370 = vunpack.c.l.b16 %v3059
        %v3371 = vunpack.c.l.b16 %v3060
        %v3372 = vunpack.c.l.b16 %v3061
        %v3373 = vunpack.c.l.b16 %v3062
        %v3374 = vunpack.c.l.b16 %v3063
        %v3375 = vrot.slane %v3368, 7
        %v3376 = vsel %vm3121, %v3375, %v3367
        %v3377 = vrot.slane %v3369, 6
        %v3378 = vsel %vm3124, %v3377, %v3376
        %v3379 = vrot.slane %v3370, 5
        %v3380 = vsel %vm3127, %v3379, %v3378
        %v3381 = vrot.slane %v3371, 4
        %v3382 = vsel %vm3130, %v3381, %v3380
        %v3383 = vrot.slane %v3372, 3
        %v3384 = vsel %vm3133, %v3383, %v3382
        %v3385 = vrot.slane %v3373, 2
        %v3386 = vsel %vm3136, %v3385, %v3384
        %v3387 = vrot.slane %v3374, 1
        %v3388 = vsel %vm3139, %v3387, %v3386
        %v3389 = vpack.c.b16 %v3388, %v3388
        %v3391 = vsel %vm3173, %v3358, 0
        %v3394 = vsel %vm3173, %v3389, 0
        %3396 = vmatprep.subr.bf16.mxu0 0
        %3397 = vmatpush1.bf16.xpose.msra.mxu0 %v3394
        %3398 = vmatprep.subr.bf16.mxu0 0
        %3399 = vmatpush1.bf16.xpose.msra.mxu0 0
        %3400 = vmatprep.subr.bf16.mxu0 0
        %3401 = vmatpush1.bf16.xpose.msra.mxu0 0
        %3402 = vmatprep.subr.bf16.mxu0 0
        %3403 = vmatpush1.bf16.xpose.msra.mxu0 0
        %3404 = vmatprep.subr.bf16.mxu0 0
        %3405 = vmatpush1.bf16.xpose.msra.mxu0 0
        %3406 = vmatprep.subr.bf16.mxu0 0
        %3407 = vmatpush1.bf16.xpose.msra.mxu0 0
        %3408 = vmatprep.subr.bf16.mxu0 0
        %3409 = vmatpush1.bf16.xpose.msra.mxu0 0
        %3410 = vmatprep.subr.bf16.mxu0 0
        %3411 = vmatpush1.bf16.xpose.msra.mxu0 0
        %3412 = vmatprep.subr.bf16.mxu0 0
        %3413 = vmatpush1.bf16.xpose.msra.mxu0 0
        %3414 = vmatprep.subr.bf16.mxu0 0
        %3415 = vmatpush1.bf16.xpose.msra.mxu0 0
        %3416 = vmatprep.subr.bf16.mxu0 0
        %3417 = vmatpush1.bf16.xpose.msra.mxu0 0
        %3418 = vmatprep.subr.bf16.mxu0 0
        %3419 = vmatpush1.bf16.xpose.msra.mxu0 0
        %3420 = vmatprep.subr.bf16.mxu0 0
        %3421 = vmatpush1.bf16.xpose.msra.mxu0 0
        %3422 = vmatprep.subr.bf16.mxu0 0
        %3423 = vmatpush1.bf16.xpose.msra.mxu0 0
        %3424 = vmatprep.subr.bf16.mxu0 0
        %3425 = vmatpush1.bf16.xpose.msra.mxu0 0
        %3426 = vmatprep.subr.bf16.mxu0 0
        %3427 = vmatpush1.bf16.xpose.msra.mxu0 0
        %3428 = vmatprep.mubr.bf16.mxu0 0
        %3429 = vmatmul.mubr.bf16.gmra.mrb[0].mxu0 %v3391
        %v3430 = vpop.f32.mrb[0].mxu0
        %v3431 = vadd.f32 0.0, %v3430
        %v3432 = vpop.f32.mrb[0].mxu0
        %v3433 = vpop.f32.mrb[0].mxu0
        %v3434 = vpop.f32.mrb[0].mxu0
        %3435 = vdwg.mxu0
        %v3444 = vunpack.c.l.b16 %v3000
        %v3445 = vunpack.c.l.b16 %v3001
        %v3446 = vunpack.c.l.b16 %v3002
        %v3447 = vunpack.c.l.b16 %v3003
        %v3448 = vunpack.c.l.b16 %v3004
        %v3449 = vunpack.c.l.b16 %v3005
        %v3450 = vunpack.c.l.b16 %v3006
        %v3451 = vunpack.c.l.b16 %v3007
        %v3452 = vrot.slane %v3445, 7
        %v3453 = vsel %vm3121, %v3452, %v3444
        %v3454 = vrot.slane %v3446, 6
        %v3455 = vsel %vm3124, %v3454, %v3453
        %v3456 = vrot.slane %v3447, 5
        %v3457 = vsel %vm3127, %v3456, %v3455
        %v3458 = vrot.slane %v3448, 4
        %v3459 = vsel %vm3130, %v3458, %v3457
        %v3460 = vrot.slane %v3449, 3
        %v3461 = vsel %vm3133, %v3460, %v3459
        %v3462 = vrot.slane %v3450, 2
        %v3463 = vsel %vm3136, %v3462, %v3461
        %v3464 = vrot.slane %v3451, 1
        %v3465 = vsel %vm3139, %v3464, %v3463
        %v3466 = vpack.c.b16 %v3465, %v3465
        %v3475 = vunpack.c.l.b16 %v3064
        %v3476 = vunpack.c.l.b16 %v3065
        %v3477 = vunpack.c.l.b16 %v3066
        %v3478 = vunpack.c.l.b16 %v3067
        %v3479 = vunpack.c.l.b16 %v3068
        %v3480 = vunpack.c.l.b16 %v3069
        %v3481 = vunpack.c.l.b16 %v3070
        %v3482 = vunpack.c.l.b16 %v3071
        %v3483 = vrot.slane %v3476, 7
        %v3484 = vsel %vm3121, %v3483, %v3475
        %v3485 = vrot.slane %v3477, 6
        %v3486 = vsel %vm3124, %v3485, %v3484
        %v3487 = vrot.slane %v3478, 5
        %v3488 = vsel %vm3127, %v3487, %v3486
        %v3489 = vrot.slane %v3479, 4
        %v3490 = vsel %vm3130, %v3489, %v3488
        %v3491 = vrot.slane %v3480, 3
        %v3492 = vsel %vm3133, %v3491, %v3490
        %v3493 = vrot.slane %v3481, 2
        %v3494 = vsel %vm3136, %v3493, %v3492
        %v3495 = vrot.slane %v3482, 1
        %v3496 = vsel %vm3139, %v3495, %v3494
        %v3497 = vpack.c.b16 %v3496, %v3496
        %v3499 = vsel %vm3173, %v3466, 0
        %v3502 = vsel %vm3173, %v3497, 0
        %3504 = vmatprep.subr.bf16.mxu0 0
        %3505 = vmatpush1.bf16.xpose.msra.mxu0 %v3502
        %3506 = vmatprep.subr.bf16.mxu0 0
        %3507 = vmatpush1.bf16.xpose.msra.mxu0 0
        %3508 = vmatprep.subr.bf16.mxu0 0
        %3509 = vmatpush1.bf16.xpose.msra.mxu0 0
        %3510 = vmatprep.subr.bf16.mxu0 0
        %3511 = vmatpush1.bf16.xpose.msra.mxu0 0
        %3512 = vmatprep.subr.bf16.mxu0 0
        %3513 = vmatpush1.bf16.xpose.msra.mxu0 0
        %3514 = vmatprep.subr.bf16.mxu0 0
        %3515 = vmatpush1.bf16.xpose.msra.mxu0 0
        %3516 = vmatprep.subr.bf16.mxu0 0
        %3517 = vmatpush1.bf16.xpose.msra.mxu0 0
        %3518 = vmatprep.subr.bf16.mxu0 0
        %3519 = vmatpush1.bf16.xpose.msra.mxu0 0
        %3520 = vmatprep.subr.bf16.mxu0 0
        %3521 = vmatpush1.bf16.xpose.msra.mxu0 0
        %3522 = vmatprep.subr.bf16.mxu0 0
        %3523 = vmatpush1.bf16.xpose.msra.mxu0 0
        %3524 = vmatprep.subr.bf16.mxu0 0
        %3525 = vmatpush1.bf16.xpose.msra.mxu0 0
        %3526 = vmatprep.subr.bf16.mxu0 0
        %3527 = vmatpush1.bf16.xpose.msra.mxu0 0
        %3528 = vmatprep.subr.bf16.mxu0 0
        %3529 = vmatpush1.bf16.xpose.msra.mxu0 0
        %3530 = vmatprep.subr.bf16.mxu0 0
        %3531 = vmatpush1.bf16.xpose.msra.mxu0 0
        %3532 = vmatprep.subr.bf16.mxu0 0
        %3533 = vmatpush1.bf16.xpose.msra.mxu0 0
        %3534 = vmatprep.subr.bf16.mxu0 0
        %3535 = vmatpush1.bf16.xpose.msra.mxu0 0
        %3536 = vmatprep.mubr.bf16.mxu0 0
        %3537 = vmatmul.mubr.bf16.gmra.mrb[0].mxu0 %v3499
        %v3538 = vpop.f32.mrb[0].mxu0
        %v3539 = vadd.f32 0.0, %v3538
        %v3540 = vpop.f32.mrb[0].mxu0
        %v3541 = vpop.f32.mrb[0].mxu0
        %v3542 = vpop.f32.mrb[0].mxu0
        %3543 = vdwg.mxu0
        %v3552 = vunpack.c.l.b16 %v3008
        %v3553 = vunpack.c.l.b16 %v3009
        %v3554 = vunpack.c.l.b16 %v3010
        %v3555 = vunpack.c.l.b16 %v3011
        %v3556 = vunpack.c.l.b16 %v3012
        %v3557 = vunpack.c.l.b16 %v3013
        %v3558 = vunpack.c.l.b16 %v3014
        %v3559 = vunpack.c.l.b16 %v3015
        %v3560 = vrot.slane %v3553, 7
        %v3561 = vsel %vm3121, %v3560, %v3552
        %v3562 = vrot.slane %v3554, 6
        %v3563 = vsel %vm3124, %v3562, %v3561
        %v3564 = vrot.slane %v3555, 5
        %v3565 = vsel %vm3127, %v3564, %v3563
        %v3566 = vrot.slane %v3556, 4
        %v3567 = vsel %vm3130, %v3566, %v3565
        %v3568 = vrot.slane %v3557, 3
        %v3569 = vsel %vm3133, %v3568, %v3567
        %v3570 = vrot.slane %v3558, 2
        %v3571 = vsel %vm3136, %v3570, %v3569
        %v3572 = vrot.slane %v3559, 1
        %v3573 = vsel %vm3139, %v3572, %v3571
        %v3574 = vpack.c.b16 %v3573, %v3573
        %v3583 = vunpack.c.l.b16 %v3072
        %v3584 = vunpack.c.l.b16 %v3073
        %v3585 = vunpack.c.l.b16 %v3074
        %v3586 = vunpack.c.l.b16 %v3075
        %v3587 = vunpack.c.l.b16 %v3076
        %v3588 = vunpack.c.l.b16 %v3077
        %v3589 = vunpack.c.l.b16 %v3078
        %v3590 = vunpack.c.l.b16 %v3079
        %v3591 = vrot.slane %v3584, 7
        %v3592 = vsel %vm3121, %v3591, %v3583
        %v3593 = vrot.slane %v3585, 6
        %v3594 = vsel %vm3124, %v3593, %v3592
        %v3595 = vrot.slane %v3586, 5
        %v3596 = vsel %vm3127, %v3595, %v3594
        %v3597 = vrot.slane %v3587, 4
        %v3598 = vsel %vm3130, %v3597, %v3596
        %v3599 = vrot.slane %v3588, 3
        %v3600 = vsel %vm3133, %v3599, %v3598
        %v3601 = vrot.slane %v3589, 2
        %v3602 = vsel %vm3136, %v3601, %v3600
        %v3603 = vrot.slane %v3590, 1
        %v3604 = vsel %vm3139, %v3603, %v3602
        %v3605 = vpack.c.b16 %v3604, %v3604
        %v3607 = vsel %vm3173, %v3574, 0
        %v3610 = vsel %vm3173, %v3605, 0
        %3612 = vmatprep.subr.bf16.mxu0 0
        %3613 = vmatpush1.bf16.xpose.msra.mxu0 %v3610
        %3614 = vmatprep.subr.bf16.mxu0 0
        %3615 = vmatpush1.bf16.xpose.msra.mxu0 0
        %3616 = vmatprep.subr.bf16.mxu0 0
        %3617 = vmatpush1.bf16.xpose.msra.mxu0 0
        %3618 = vmatprep.subr.bf16.mxu0 0
        %3619 = vmatpush1.bf16.xpose.msra.mxu0 0
        %3620 = vmatprep.subr.bf16.mxu0 0
        %3621 = vmatpush1.bf16.xpose.msra.mxu0 0
        %3622 = vmatprep.subr.bf16.mxu0 0
        %3623 = vmatpush1.bf16.xpose.msra.mxu0 0
        %3624 = vmatprep.subr.bf16.mxu0 0
        %3625 = vmatpush1.bf16.xpose.msra.mxu0 0
        %3626 = vmatprep.subr.bf16.mxu0 0
        %3627 = vmatpush1.bf16.xpose.msra.mxu0 0
        %3628 = vmatprep.subr.bf16.mxu0 0
        %3629 = vmatpush1.bf16.xpose.msra.mxu0 0
        %3630 = vmatprep.subr.bf16.mxu0 0
        %3631 = vmatpush1.bf16.xpose.msra.mxu0 0
        %3632 = vmatprep.subr.bf16.mxu0 0
        %3633 = vmatpush1.bf16.xpose.msra.mxu0 0
        %3634 = vmatprep.subr.bf16.mxu0 0
        %3635 = vmatpush1.bf16.xpose.msra.mxu0 0
        %3636 = vmatprep.subr.bf16.mxu0 0
        %3637 = vmatpush1.bf16.xpose.msra.mxu0 0
        %3638 = vmatprep.subr.bf16.mxu0 0
        %3639 = vmatpush1.bf16.xpose.msra.mxu0 0
        %3640 = vmatprep.subr.bf16.mxu0 0
        %3641 = vmatpush1.bf16.xpose.msra.mxu0 0
        %3642 = vmatprep.subr.bf16.mxu0 0
        %3643 = vmatpush1.bf16.xpose.msra.mxu0 0
        %3644 = vmatprep.mubr.bf16.mxu0 0
        %3645 = vmatmul.mubr.bf16.gmra.mrb[0].mxu0 %v3607
        %v3646 = vpop.f32.mrb[0].mxu0
        %v3647 = vadd.f32 0.0, %v3646
        %v3648 = vpop.f32.mrb[0].mxu0
        %v3649 = vpop.f32.mrb[0].mxu0
        %v3650 = vpop.f32.mrb[0].mxu0
        %3651 = vdwg.mxu0
        %v3660 = vunpack.c.l.b16 %v3016
        %v3661 = vunpack.c.l.b16 %v3017
        %v3662 = vunpack.c.l.b16 %v3018
        %v3663 = vunpack.c.l.b16 %v3019
        %v3664 = vunpack.c.l.b16 %v3020
        %v3665 = vunpack.c.l.b16 %v3021
        %v3666 = vunpack.c.l.b16 %v3022
        %v3667 = vunpack.c.l.b16 %v3023
        %v3668 = vrot.slane %v3661, 7
        %v3669 = vsel %vm3121, %v3668, %v3660
        %v3670 = vrot.slane %v3662, 6
        %v3671 = vsel %vm3124, %v3670, %v3669
        %v3672 = vrot.slane %v3663, 5
        %v3673 = vsel %vm3127, %v3672, %v3671
        %v3674 = vrot.slane %v3664, 4
        %v3675 = vsel %vm3130, %v3674, %v3673
        %v3676 = vrot.slane %v3665, 3
        %v3677 = vsel %vm3133, %v3676, %v3675
        %v3678 = vrot.slane %v3666, 2
        %v3679 = vsel %vm3136, %v3678, %v3677
        %v3680 = vrot.slane %v3667, 1
        %v3681 = vsel %vm3139, %v3680, %v3679
        %v3682 = vpack.c.b16 %v3681, %v3681
        %v3691 = vunpack.c.l.b16 %v3080
        %v3692 = vunpack.c.l.b16 %v3081
        %v3693 = vunpack.c.l.b16 %v3082
        %v3694 = vunpack.c.l.b16 %v3083
        %v3695 = vunpack.c.l.b16 %v3084
        %v3696 = vunpack.c.l.b16 %v3085
        %v3697 = vunpack.c.l.b16 %v3086
        %v3698 = vunpack.c.l.b16 %v3087
        %v3699 = vrot.slane %v3692, 7
        %v3700 = vsel %vm3121, %v3699, %v3691
        %v3701 = vrot.slane %v3693, 6
        %v3702 = vsel %vm3124, %v3701, %v3700
        %v3703 = vrot.slane %v3694, 5
        %v3704 = vsel %vm3127, %v3703, %v3702
        %v3705 = vrot.slane %v3695, 4
        %v3706 = vsel %vm3130, %v3705, %v3704
        %v3707 = vrot.slane %v3696, 3
        %v3708 = vsel %vm3133, %v3707, %v3706
        %v3709 = vrot.slane %v3697, 2
        %v3710 = vsel %vm3136, %v3709, %v3708
        %v3711 = vrot.slane %v3698, 1
        %v3712 = vsel %vm3139, %v3711, %v3710
        %v3713 = vpack.c.b16 %v3712, %v3712
        %v3715 = vsel %vm3173, %v3682, 0
        %v3718 = vsel %vm3173, %v3713, 0
        %3720 = vmatprep.subr.bf16.mxu0 0
        %3721 = vmatpush1.bf16.xpose.msra.mxu0 %v3718
        %3722 = vmatprep.subr.bf16.mxu0 0
        %3723 = vmatpush1.bf16.xpose.msra.mxu0 0
        %3724 = vmatprep.subr.bf16.mxu0 0
        %3725 = vmatpush1.bf16.xpose.msra.mxu0 0
        %3726 = vmatprep.subr.bf16.mxu0 0
        %3727 = vmatpush1.bf16.xpose.msra.mxu0 0
        %3728 = vmatprep.subr.bf16.mxu0 0
        %3729 = vmatpush1.bf16.xpose.msra.mxu0 0
        %3730 = vmatprep.subr.bf16.mxu0 0
        %3731 = vmatpush1.bf16.xpose.msra.mxu0 0
        %3732 = vmatprep.subr.bf16.mxu0 0
        %3733 = vmatpush1.bf16.xpose.msra.mxu0 0
        %3734 = vmatprep.subr.bf16.mxu0 0
        %3735 = vmatpush1.bf16.xpose.msra.mxu0 0
        %3736 = vmatprep.subr.bf16.mxu0 0
        %3737 = vmatpush1.bf16.xpose.msra.mxu0 0
        %3738 = vmatprep.subr.bf16.mxu0 0
        %3739 = vmatpush1.bf16.xpose.msra.mxu0 0
        %3740 = vmatprep.subr.bf16.mxu0 0
        %3741 = vmatpush1.bf16.xpose.msra.mxu0 0
        %3742 = vmatprep.subr.bf16.mxu0 0
        %3743 = vmatpush1.bf16.xpose.msra.mxu0 0
        %3744 = vmatprep.subr.bf16.mxu0 0
        %3745 = vmatpush1.bf16.xpose.msra.mxu0 0
        %3746 = vmatprep.subr.bf16.mxu0 0
        %3747 = vmatpush1.bf16.xpose.msra.mxu0 0
        %3748 = vmatprep.subr.bf16.mxu0 0
        %3749 = vmatpush1.bf16.xpose.msra.mxu0 0
        %3750 = vmatprep.subr.bf16.mxu0 0
        %3751 = vmatpush1.bf16.xpose.msra.mxu0 0
        %3752 = vmatprep.mubr.bf16.mxu0 0
        %3753 = vmatmul.mubr.bf16.gmra.mrb[0].mxu0 %v3715
        %v3754 = vpop.f32.mrb[0].mxu0
        %v3755 = vadd.f32 0.0, %v3754
        %v3756 = vpop.f32.mrb[0].mxu0
        %v3757 = vpop.f32.mrb[0].mxu0
        %v3758 = vpop.f32.mrb[0].mxu0
        %3759 = vdwg.mxu0
        %v3768 = vunpack.c.l.b16 %v3024
        %v3769 = vunpack.c.l.b16 %v3025
        %v3770 = vunpack.c.l.b16 %v3026
        %v3771 = vunpack.c.l.b16 %v3027
        %v3772 = vunpack.c.l.b16 %v3028
        %v3773 = vunpack.c.l.b16 %v3029
        %v3774 = vunpack.c.l.b16 %v3030
        %v3775 = vunpack.c.l.b16 %v3031
        %v3776 = vrot.slane %v3769, 7
        %v3777 = vsel %vm3121, %v3776, %v3768
        %v3778 = vrot.slane %v3770, 6
        %v3779 = vsel %vm3124, %v3778, %v3777
        %v3780 = vrot.slane %v3771, 5
        %v3781 = vsel %vm3127, %v3780, %v3779
        %v3782 = vrot.slane %v3772, 4
        %v3783 = vsel %vm3130, %v3782, %v3781
        %v3784 = vrot.slane %v3773, 3
        %v3785 = vsel %vm3133, %v3784, %v3783
        %v3786 = vrot.slane %v3774, 2
        %v3787 = vsel %vm3136, %v3786, %v3785
        %v3788 = vrot.slane %v3775, 1
        %v3789 = vsel %vm3139, %v3788, %v3787
        %v3790 = vpack.c.b16 %v3789, %v3789
        %v3799 = vunpack.c.l.b16 %v3088
        %v3800 = vunpack.c.l.b16 %v3089
        %v3801 = vunpack.c.l.b16 %v3090
        %v3802 = vunpack.c.l.b16 %v3091
        %v3803 = vunpack.c.l.b16 %v3092
        %v3804 = vunpack.c.l.b16 %v3093
        %v3805 = vunpack.c.l.b16 %v3094
        %v3806 = vunpack.c.l.b16 %v3095
        %v3807 = vrot.slane %v3800, 7
        %v3808 = vsel %vm3121, %v3807, %v3799
        %v3809 = vrot.slane %v3801, 6
        %v3810 = vsel %vm3124, %v3809, %v3808
        %v3811 = vrot.slane %v3802, 5
        %v3812 = vsel %vm3127, %v3811, %v3810
        %v3813 = vrot.slane %v3803, 4
        %v3814 = vsel %vm3130, %v3813, %v3812
        %v3815 = vrot.slane %v3804, 3
        %v3816 = vsel %vm3133, %v3815, %v3814
        %v3817 = vrot.slane %v3805, 2
        %v3818 = vsel %vm3136, %v3817, %v3816
        %v3819 = vrot.slane %v3806, 1
        %v3820 = vsel %vm3139, %v3819, %v3818
        %v3821 = vpack.c.b16 %v3820, %v3820
        %v3823 = vsel %vm3173, %v3790, 0
        %v3826 = vsel %vm3173, %v3821, 0
        %3828 = vmatprep.subr.bf16.mxu0 0
        %3829 = vmatpush1.bf16.xpose.msra.mxu0 %v3826
        %3830 = vmatprep.subr.bf16.mxu0 0
        %3831 = vmatpush1.bf16.xpose.msra.mxu0 0
        %3832 = vmatprep.subr.bf16.mxu0 0
        %3833 = vmatpush1.bf16.xpose.msra.mxu0 0
        %3834 = vmatprep.subr.bf16.mxu0 0
        %3835 = vmatpush1.bf16.xpose.msra.mxu0 0
        %3836 = vmatprep.subr.bf16.mxu0 0
        %3837 = vmatpush1.bf16.xpose.msra.mxu0 0
        %3838 = vmatprep.subr.bf16.mxu0 0
        %3839 = vmatpush1.bf16.xpose.msra.mxu0 0
        %3840 = vmatprep.subr.bf16.mxu0 0
        %3841 = vmatpush1.bf16.xpose.msra.mxu0 0
        %3842 = vmatprep.subr.bf16.mxu0 0
        %3843 = vmatpush1.bf16.xpose.msra.mxu0 0
        %3844 = vmatprep.subr.bf16.mxu0 0
        %3845 = vmatpush1.bf16.xpose.msra.mxu0 0
        %3846 = vmatprep.subr.bf16.mxu0 0
        %3847 = vmatpush1.bf16.xpose.msra.mxu0 0
        %3848 = vmatprep.subr.bf16.mxu0 0
        %3849 = vmatpush1.bf16.xpose.msra.mxu0 0
        %3850 = vmatprep.subr.bf16.mxu0 0
        %3851 = vmatpush1.bf16.xpose.msra.mxu0 0
        %3852 = vmatprep.subr.bf16.mxu0 0
        %3853 = vmatpush1.bf16.xpose.msra.mxu0 0
        %3854 = vmatprep.subr.bf16.mxu0 0
        %3855 = vmatpush1.bf16.xpose.msra.mxu0 0
        %3856 = vmatprep.subr.bf16.mxu0 0
        %3857 = vmatpush1.bf16.xpose.msra.mxu0 0
        %3858 = vmatprep.subr.bf16.mxu0 0
        %3859 = vmatpush1.bf16.xpose.msra.mxu0 0
        %3860 = vmatprep.mubr.bf16.mxu0 0
        %3861 = vmatmul.mubr.bf16.gmra.mrb[0].mxu0 %v3823
        %v3862 = vpop.f32.mrb[0].mxu0
        %v3863 = vadd.f32 0.0, %v3862
        %v3864 = vpop.f32.mrb[0].mxu0
        %v3865 = vpop.f32.mrb[0].mxu0
        %v3866 = vpop.f32.mrb[0].mxu0
        %3867 = vdwg.mxu0
        %v3876 = vunpack.c.l.b16 %v3032
        %v3877 = vunpack.c.l.b16 %v3033
        %v3878 = vunpack.c.l.b16 %v3034
        %v3879 = vunpack.c.l.b16 %v3035
        %v3880 = vunpack.c.l.b16 %v3036
        %v3881 = vunpack.c.l.b16 %v3037
        %v3882 = vunpack.c.l.b16 %v3038
        %v3883 = vunpack.c.l.b16 %v3039
        %v3884 = vrot.slane %v3877, 7
        %v3885 = vsel %vm3121, %v3884, %v3876
        %v3886 = vrot.slane %v3878, 6
        %v3887 = vsel %vm3124, %v3886, %v3885
        %v3888 = vrot.slane %v3879, 5
        %v3889 = vsel %vm3127, %v3888, %v3887
        %v3890 = vrot.slane %v3880, 4
        %v3891 = vsel %vm3130, %v3890, %v3889
        %v3892 = vrot.slane %v3881, 3
        %v3893 = vsel %vm3133, %v3892, %v3891
        %v3894 = vrot.slane %v3882, 2
        %v3895 = vsel %vm3136, %v3894, %v3893
        %v3896 = vrot.slane %v3883, 1
        %v3897 = vsel %vm3139, %v3896, %v3895
        %v3898 = vpack.c.b16 %v3897, %v3897
        %v3907 = vunpack.c.l.b16 %v3096
        %v3908 = vunpack.c.l.b16 %v3097
        %v3909 = vunpack.c.l.b16 %v3098
        %v3910 = vunpack.c.l.b16 %v3099
        %v3911 = vunpack.c.l.b16 %v3100
        %v3912 = vunpack.c.l.b16 %v3101
        %v3913 = vunpack.c.l.b16 %v3102
        %v3914 = vunpack.c.l.b16 %v3103
        %v3915 = vrot.slane %v3908, 7
        %v3916 = vsel %vm3121, %v3915, %v3907
        %v3917 = vrot.slane %v3909, 6
        %v3918 = vsel %vm3124, %v3917, %v3916
        %v3919 = vrot.slane %v3910, 5
        %v3920 = vsel %vm3127, %v3919, %v3918
        %v3921 = vrot.slane %v3911, 4
        %v3922 = vsel %vm3130, %v3921, %v3920
        %v3923 = vrot.slane %v3912, 3
        %v3924 = vsel %vm3133, %v3923, %v3922
        %v3925 = vrot.slane %v3913, 2
        %v3926 = vsel %vm3136, %v3925, %v3924
        %v3927 = vrot.slane %v3914, 1
        %v3928 = vsel %vm3139, %v3927, %v3926
        %v3929 = vpack.c.b16 %v3928, %v3928
        %v3931 = vsel %vm3173, %v3898, 0
        %v3934 = vsel %vm3173, %v3929, 0
        %3936 = vmatprep.subr.bf16.mxu0 0
        %3937 = vmatpush1.bf16.xpose.msra.mxu0 %v3934
        %3938 = vmatprep.subr.bf16.mxu0 0
        %3939 = vmatpush1.bf16.xpose.msra.mxu0 0
        %3940 = vmatprep.subr.bf16.mxu0 0
        %3941 = vmatpush1.bf16.xpose.msra.mxu0 0
        %3942 = vmatprep.subr.bf16.mxu0 0
        %3943 = vmatpush1.bf16.xpose.msra.mxu0 0
        %3944 = vmatprep.subr.bf16.mxu0 0
        %3945 = vmatpush1.bf16.xpose.msra.mxu0 0
        %3946 = vmatprep.subr.bf16.mxu0 0
        %3947 = vmatpush1.bf16.xpose.msra.mxu0 0
        %3948 = vmatprep.subr.bf16.mxu0 0
        %3949 = vmatpush1.bf16.xpose.msra.mxu0 0
        %3950 = vmatprep.subr.bf16.mxu0 0
        %3951 = vmatpush1.bf16.xpose.msra.mxu0 0
        %3952 = vmatprep.subr.bf16.mxu0 0
        %3953 = vmatpush1.bf16.xpose.msra.mxu0 0
        %3954 = vmatprep.subr.bf16.mxu0 0
        %3955 = vmatpush1.bf16.xpose.msra.mxu0 0
        %3956 = vmatprep.subr.bf16.mxu0 0
        %3957 = vmatpush1.bf16.xpose.msra.mxu0 0
        %3958 = vmatprep.subr.bf16.mxu0 0
        %3959 = vmatpush1.bf16.xpose.msra.mxu0 0
        %3960 = vmatprep.subr.bf16.mxu0 0
        %3961 = vmatpush1.bf16.xpose.msra.mxu0 0
        %3962 = vmatprep.subr.bf16.mxu0 0
        %3963 = vmatpush1.bf16.xpose.msra.mxu0 0
        %3964 = vmatprep.subr.bf16.mxu0 0
        %3965 = vmatpush1.bf16.xpose.msra.mxu0 0
        %3966 = vmatprep.subr.bf16.mxu0 0
        %3967 = vmatpush1.bf16.xpose.msra.mxu0 0
        %3968 = vmatprep.mubr.bf16.mxu0 0
        %3969 = vmatmul.mubr.bf16.gmra.mrb[0].mxu0 %v3931
        %v3970 = vpop.f32.mrb[0].mxu0
        %v3971 = vadd.f32 0.0, %v3970
        %v3972 = vpop.f32.mrb[0].mxu0
        %v3973 = vpop.f32.mrb[0].mxu0
        %v3974 = vpop.f32.mrb[0].mxu0
        %3975 = vdwg.mxu0
        %v3976 = vmul.f32 %v3215, 0.35355338
        %v3977 = vmul.f32 %v3323, 0.35355338
        %v3978 = vmul.f32 %v3431, 0.35355338
        %v3979 = vmul.f32 %v3539, 0.35355338
        %v3980 = vmul.f32 %v3647, 0.35355338
        %v3981 = vmul.f32 %v3755, 0.35355338
        %v3982 = vmul.f32 %v3863, 0.35355338
        %v3983 = vmul.f32 %v3971, 0.35355338
        %v3986 = vunpack.c.l.s4 1966171168
        %v3987 = vunpack.c.0.s8 %v3986
        %v3988 = vlaneseq
        %v3989 = vshrl.u32 %v3988, 7
        %v3990 = vsub.s32 %v3987, %v3989
        %v3991 = vrot.slane %v1053, %v3990
        %v3992 = vcombine.high %v3991, %v3991
        %v3994 = vunpack.c.l.s4 1966171168
        %v3995 = vunpack.c.0.s8 %v3994
        %v3996 = vlaneseq
        %v3997 = vshrl.u32 %v3996, 7
        %v3998 = vsub.s32 %v3995, %v3997
        %v3999 = vrot.slane %v3991, %v3998
        %v4001 = vunpack.c.l.s4 1966171168
        %v4002 = vunpack.c.0.s8 %v4001
        %v4003 = vlaneseq
        %v4004 = vshrl.u32 %v4003, 7
        %v4005 = vsub.s32 %v4002, %v4004
        %v4006 = vrot.slane %v3992, %v4005
        %v4007 = vlaneseq
        %v4008 = vshrl.u32 %v4007, 7
        %v4009 = vsub.s32 0, %v4008
        %v4010 = vrot.slane %v3999, %v4009
        %v4011 = vlaneseq
        %v4012 = vshrl.u32 %v4011, 7
        %v4013 = vsub.s32 0, %v4012
        %v4014 = vrot.slane %v4006, %v4013
        %v4017 = vadd.f32 %v3976, %v4010
        %v4018 = vadd.f32 %v3977, %v4010
        %v4019 = vadd.f32 %v3978, %v4010
        %v4020 = vadd.f32 %v3979, %v4010
        %v4021 = vadd.f32 %v3980, %v4014
        %v4022 = vadd.f32 %v3981, %v4014
        %v4023 = vadd.f32 %v3982, %v4014
        %v4024 = vadd.f32 %v3983, %v4014
        %4025 = vst.msk [vmem:[%s973] sm:$0xff] %vm3173, %v4017
        %4026 = vst.msk [vmem:[%s973 + $0x8] sm:$0xff] %vm3173, %v4018
        %4027 = vst.msk [vmem:[%s973 + $0x10] sm:$0xff] %vm3173, %v4019
        %4028 = vst.msk [vmem:[%s973 + $0x18] sm:$0xff] %vm3173, %v4020
        %4029 = vst.msk [vmem:[%s973 + $0x20] sm:$0xff] %vm3173, %v4021
        %4030 = vst.msk [vmem:[%s973 + $0x28] sm:$0xff] %vm3173, %v4022
        %4031 = vst.msk [vmem:[%s973 + $0x30] sm:$0xff] %vm3173, %v4023
        %4032 = vst.msk [vmem:[%s973 + $0x38] sm:$0xff] %vm3173, %v4024
        %v4033 = vsel %vm3173, %v4017, -inf
        %4034 = vmax.xlane.f32.xlu0 %v4033
        %v4035 = vpop.xlane.xlu0 %4034
        %v4036 = vsel %vm3173, %v4018, -inf
        %4037 = vmax.xlane.f32.xlu0 %v4036
        %v4038 = vpop.xlane.xlu0 %4037
        %v4039 = vsel %vm3173, %v4019, -inf
        %4040 = vmax.xlane.f32.xlu0 %v4039
        %v4041 = vpop.xlane.xlu0 %4040
        %v4042 = vsel %vm3173, %v4020, -inf
        %4043 = vmax.xlane.f32.xlu0 %v4042
        %v4044 = vpop.xlane.xlu0 %4043
        %v4045 = vsel %vm3173, %v4021, -inf
        %4046 = vmax.xlane.f32.xlu0 %v4045
        %v4047 = vpop.xlane.xlu0 %4046
        %v4048 = vsel %vm3173, %v4022, -inf
        %4049 = vmax.xlane.f32.xlu0 %v4048
        %v4050 = vpop.xlane.xlu0 %4049
        %v4051 = vsel %vm3173, %v4023, -inf
        %4052 = vmax.xlane.f32.xlu0 %v4051
        %v4053 = vpop.xlane.xlu0 %4052
        %v4054 = vsel %vm3173, %v4024, -inf
        %4055 = vmax.xlane.f32.xlu0 %v4054
        %v4056 = vpop.xlane.xlu0 %4055
        %v4057 = vsub.f32 %v4017, %v4035
        %v4058 = vsub.f32 %v4018, %v4038
        %v4059 = vsub.f32 %v4019, %v4041
        %v4060 = vsub.f32 %v4020, %v4044
        %v4061 = vsub.f32 %v4021, %v4047
        %v4062 = vsub.f32 %v4022, %v4050
        %v4063 = vsub.f32 %v4023, %v4053
        %v4064 = vsub.f32 %v4024, %v4056
        %v4065 = vmul.f32 %v4057, 1.442695
        %v4066 = vpow.pop %v4065
        %v4067 = vmul.f32 %v4058, 1.442695
        %v4068 = vpow.pop %v4067
        %v4069 = vmul.f32 %v4059, 1.442695
        %v4070 = vpow.pop %v4069
        %v4071 = vmul.f32 %v4060, 1.442695
        %v4072 = vpow.pop %v4071
        %v4073 = vmul.f32 %v4061, 1.442695
        %v4074 = vpow.pop %v4073
        %v4075 = vmul.f32 %v4062, 1.442695
        %v4076 = vpow.pop %v4075
        %v4077 = vmul.f32 %v4063, 1.442695
        %v4078 = vpow.pop %v4077
        %v4079 = vmul.f32 %v4064, 1.442695
        %v4080 = vpow.pop %v4079
        %v4081 = vsel %vm3173, %v4066, 0.0
        %4082 = vadd.xlane.f32.xlu0 %v4081
        %v4083 = vpop.xlane.xlu0 %4082
        %v4084 = vsel %vm3173, %v4068, 0.0
        %4085 = vadd.xlane.f32.xlu0 %v4084
        %v4086 = vpop.xlane.xlu0 %4085
        %v4087 = vsel %vm3173, %v4070, 0.0
        %4088 = vadd.xlane.f32.xlu0 %v4087
        %v4089 = vpop.xlane.xlu0 %4088
        %v4090 = vsel %vm3173, %v4072, 0.0
        %4091 = vadd.xlane.f32.xlu0 %v4090
        %v4092 = vpop.xlane.xlu0 %4091
        %v4093 = vsel %vm3173, %v4074, 0.0
        %4094 = vadd.xlane.f32.xlu0 %v4093
        %v4095 = vpop.xlane.xlu0 %4094
        %v4096 = vsel %vm3173, %v4076, 0.0
        %4097 = vadd.xlane.f32.xlu0 %v4096
        %v4098 = vpop.xlane.xlu0 %4097
        %v4099 = vsel %vm3173, %v4078, 0.0
        %4100 = vadd.xlane.f32.xlu0 %v4099
        %v4101 = vpop.xlane.xlu0 %4100
        %v4102 = vsel %vm3173, %v4080, 0.0
        %4103 = vadd.xlane.f32.xlu0 %v4102
        %v4104 = vpop.xlane.xlu0 %4103
        %v4105 = vrcp.pop %v4083
        %v4106 = vrcp.pop %v4086
        %v4107 = vrcp.pop %v4089
        %v4108 = vrcp.pop %v4092
        %v4109 = vrcp.pop %v4095
        %v4110 = vrcp.pop %v4098
        %v4111 = vrcp.pop %v4101
        %v4112 = vrcp.pop %v4104
        %v4113 = vmul.f32 %v4066, %v4105
        %v4114 = vmul.f32 %v4068, %v4106
        %v4115 = vmul.f32 %v4070, %v4107
        %v4116 = vmul.f32 %v4072, %v4108
        %v4117 = vmul.f32 %v4074, %v4109
        %v4118 = vmul.f32 %v4076, %v4110
        %v4119 = vmul.f32 %v4078, %v4111
        %v4120 = vmul.f32 %v4080, %v4112
        %4121 = vst.msk [vmem:[%s978] sm:$0xff] %vm3173, %v4113
        %4122 = vst.msk [vmem:[%s978 + $0x8] sm:$0xff] %vm3173, %v4114
        %4123 = vst.msk [vmem:[%s978 + $0x10] sm:$0xff] %vm3173, %v4115
        %4124 = vst.msk [vmem:[%s978 + $0x18] sm:$0xff] %vm3173, %v4116
        %4125 = vst.msk [vmem:[%s978 + $0x20] sm:$0xff] %vm3173, %v4117
        %4126 = vst.msk [vmem:[%s978 + $0x28] sm:$0xff] %vm3173, %v4118
        %4127 = vst.msk [vmem:[%s978 + $0x30] sm:$0xff] %vm3173, %v4119
        %4128 = vst.msk [vmem:[%s978 + $0x38] sm:$0xff] %vm3173, %v4120
        %v4129 = vmax.f32 %v4113, -2.5
        %v4130 = vmax.f32 %v4114, -2.5
        %v4131 = vmax.f32 %v4115, -2.5
        %v4132 = vmax.f32 %v4116, -2.5
        %v4133 = vmax.f32 %v4117, -2.5
        %v4134 = vmax.f32 %v4118, -2.5
        %v4135 = vmax.f32 %v4119, -2.5
        %v4136 = vmax.f32 %v4120, -2.5
        %v4137 = vmin.f32 %v4129, 2.5
        %v4138 = vmin.f32 %v4130, 2.5
        %v4139 = vmin.f32 %v4131, 2.5
        %v4140 = vmin.f32 %v4132, 2.5
        %v4141 = vmin.f32 %v4133, 2.5
        %v4142 = vmin.f32 %v4134, 2.5
        %v4143 = vmin.f32 %v4135, 2.5
        %v4144 = vmin.f32 %v4136, 2.5
        %v4145 = vand.u32 2147483647, %v4137
        %v4146 = vand.u32 2147483647, %v4138
        %v4147 = vand.u32 2147483647, %v4139
        %v4148 = vand.u32 2147483647, %v4140
        %v4149 = vand.u32 2147483647, %v4141
        %v4150 = vand.u32 2147483647, %v4142
        %v4151 = vand.u32 2147483647, %v4143
        %v4152 = vand.u32 2147483647, %v4144
        %v4153 = vsel %vm3173, %v4145, -inf
        %v4154 = vsel %vm3173, %v4146, -inf
        %v4155 = vsel %vm3173, %v4147, -inf
        %v4156 = vsel %vm3173, %v4148, -inf
        %v4157 = vsel %vm3173, %v4149, -inf
        %v4158 = vmax.f32 %v4153, %v4157
        %v4159 = vsel %vm3173, %v4150, -inf
        %v4160 = vmax.f32 %v4154, %v4159
        %v4161 = vsel %vm3173, %v4151, -inf
        %v4162 = vmax.f32 %v4155, %v4161
        %v4163 = vsel %vm3173, %v4152, -inf
        %v4164 = vmax.f32 %v4156, %v4163
        %v4165 = vmax.f32 %v4158, %v4160
        %v4166 = vmax.f32 %v4162, %v4164
        %v4167 = vmax.f32 %v4165, %v4166
        %4168 = vmax.xlane.f32.xlu0 %v4167
        %v4169 = vpop.xlane.xlu0 %4168
        %v4170 = vrot.slane %v4169, 4
        %v4171 = vmax.f32 %v4169, %v4170
        %v4172 = vrot.slane %v4171, 2
        %v4173 = vmax.f32 %v4171, %v4172
        %v4174 = vrot.slane %v4173, 1
        %v4175 = vmax.f32 %v4173, %v4174
        %s4176 = vtos %v4175
        %s4177 = smax.f32 %s4176, 1e-08
        %v4178 = vstv %s4177
        %v4179 = vrcp.pop %v4178
        %v4180 = vmul.f32 %v4179, 127.0
        %v4181 = vmul.f32 %v4137, %v4180
        %v4182 = vmul.f32 %v4138, %v4180
        %v4183 = vmul.f32 %v4139, %v4180
        %v4184 = vmul.f32 %v4140, %v4180
        %v4185 = vmul.f32 %v4141, %v4180
        %v4186 = vmul.f32 %v4142, %v4180
        %v4187 = vmul.f32 %v4143, %v4180
        %v4188 = vmul.f32 %v4144, %v4180
        %v4189 = vround.ne.pseudo %v4181
        %v4190 = vround.ne.pseudo %v4182
        %v4191 = vround.ne.pseudo %v4183
        %v4192 = vround.ne.pseudo %v4184
        %v4193 = vround.ne.pseudo %v4185
        %v4194 = vround.ne.pseudo %v4186
        %v4195 = vround.ne.pseudo %v4187
        %v4196 = vround.ne.pseudo %v4188
        %s4197 = smul.f32 %s4177, 0.007874016
        %v4198 = vstv %s4197
        %v4199 = vmul.f32 %v4189, %v4198
        %v4200 = vmul.f32 %v4190, %v4198
        %v4201 = vmul.f32 %v4191, %v4198
        %v4202 = vmul.f32 %v4192, %v4198
        %v4203 = vmul.f32 %v4193, %v4198
        %v4204 = vmul.f32 %v4194, %v4198
        %v4205 = vmul.f32 %v4195, %v4198
        %v4206 = vmul.f32 %v4196, %v4198
        %v4207 = vmax.f32 %v1727, -2.5
        %v4208 = vmax.f32 %v1751, -2.5
        %v4209 = vmax.f32 %v1734, -2.5
        %v4210 = vmax.f32 %v1752, -2.5
        %v4211 = vmax.f32 %v1743, -2.5
        %v4212 = vmax.f32 %v1753, -2.5
        %v4213 = vmax.f32 %v1750, -2.5
        %v4214 = vmax.f32 %v1754, -2.5
        %v4215 = vmax.f32 %v1839, -2.5
        %v4216 = vmax.f32 %v1840, -2.5
        %v4217 = vmax.f32 %v1841, -2.5
        %v4218 = vmax.f32 %v1842, -2.5
        %v4219 = vmax.f32 %v1843, -2.5
        %v4220 = vmax.f32 %v1844, -2.5
        %v4221 = vmax.f32 %v1845, -2.5
        %v4222 = vmax.f32 %v1846, -2.5
        %v4223 = vmax.f32 %v1871, -2.5
        %v4224 = vmax.f32 %v1872, -2.5
        %v4225 = vmax.f32 %v1873, -2.5
        %v4226 = vmax.f32 %v1874, -2.5
        %v4227 = vmax.f32 %v1875, -2.5
        %v4228 = vmax.f32 %v1876, -2.5
        %v4229 = vmax.f32 %v1877, -2.5
        %v4230 = vmax.f32 %v1878, -2.5
        %v4231 = vmax.f32 %v1903, -2.5
        %v4232 = vmax.f32 %v1904, -2.5
        %v4233 = vmax.f32 %v1905, -2.5
        %v4234 = vmax.f32 %v1906, -2.5
        %v4235 = vmax.f32 %v1907, -2.5
        %v4236 = vmax.f32 %v1908, -2.5
        %v4237 = vmax.f32 %v1909, -2.5
        %v4238 = vmax.f32 %v1910, -2.5
        %v4239 = vmax.f32 %v1795, -2.5
        %v4240 = vmax.f32 %v1819, -2.5
        %v4241 = vmax.f32 %v1802, -2.5
        %v4242 = vmax.f32 %v1820, -2.5
        %v4243 = vmax.f32 %v1811, -2.5
        %v4244 = vmax.f32 %v1821, -2.5
        %v4245 = vmax.f32 %v1818, -2.5
        %v4246 = vmax.f32 %v1822, -2.5
        %v4247 = vmax.f32 %v1847, -2.5
        %v4248 = vmax.f32 %v1848, -2.5
        %v4249 = vmax.f32 %v1849, -2.5
        %v4250 = vmax.f32 %v1850, -2.5
        %v4251 = vmax.f32 %v1851, -2.5
        %v4252 = vmax.f32 %v1852, -2.5
        %v4253 = vmax.f32 %v1853, -2.5
        %v4254 = vmax.f32 %v1854, -2.5
        %v4255 = vmax.f32 %v1879, -2.5
        %v4256 = vmax.f32 %v1880, -2.5
        %v4257 = vmax.f32 %v1881, -2.5
        %v4258 = vmax.f32 %v1882, -2.5
        %v4259 = vmax.f32 %v1883, -2.5
        %v4260 = vmax.f32 %v1884, -2.5
        %v4261 = vmax.f32 %v1885, -2.5
        %v4262 = vmax.f32 %v1886, -2.5
        %v4263 = vmax.f32 %v1911, -2.5
        %v4264 = vmax.f32 %v1912, -2.5
        %v4265 = vmax.f32 %v1913, -2.5
        %v4266 = vmax.f32 %v1914, -2.5
        %v4267 = vmax.f32 %v1915, -2.5
        %v4268 = vmax.f32 %v1916, -2.5
        %v4269 = vmax.f32 %v1917, -2.5
        %v4270 = vmax.f32 %v1918, -2.5
        %v4271 = vmin.f32 %v4207, 2.5
        %v4272 = vmin.f32 %v4208, 2.5
        %v4273 = vmin.f32 %v4209, 2.5
        %v4274 = vmin.f32 %v4210, 2.5
        %v4275 = vmin.f32 %v4211, 2.5
        %v4276 = vmin.f32 %v4212, 2.5
        %v4277 = vmin.f32 %v4213, 2.5
        %v4278 = vmin.f32 %v4214, 2.5
        %v4279 = vmin.f32 %v4215, 2.5
        %v4280 = vmin.f32 %v4216, 2.5
        %v4281 = vmin.f32 %v4217, 2.5
        %v4282 = vmin.f32 %v4218, 2.5
        %v4283 = vmin.f32 %v4219, 2.5
        %v4284 = vmin.f32 %v4220, 2.5
        %v4285 = vmin.f32 %v4221, 2.5
        %v4286 = vmin.f32 %v4222, 2.5
        %v4287 = vmin.f32 %v4223, 2.5
        %v4288 = vmin.f32 %v4224, 2.5
        %v4289 = vmin.f32 %v4225, 2.5
        %v4290 = vmin.f32 %v4226, 2.5
        %v4291 = vmin.f32 %v4227, 2.5
        %v4292 = vmin.f32 %v4228, 2.5
        %v4293 = vmin.f32 %v4229, 2.5
        %v4294 = vmin.f32 %v4230, 2.5
        %v4295 = vmin.f32 %v4231, 2.5
        %v4296 = vmin.f32 %v4232, 2.5
        %v4297 = vmin.f32 %v4233, 2.5
        %v4298 = vmin.f32 %v4234, 2.5
        %v4299 = vmin.f32 %v4235, 2.5
        %v4300 = vmin.f32 %v4236, 2.5
        %v4301 = vmin.f32 %v4237, 2.5
        %v4302 = vmin.f32 %v4238, 2.5
        %v4303 = vmin.f32 %v4239, 2.5
        %v4304 = vmin.f32 %v4240, 2.5
        %v4305 = vmin.f32 %v4241, 2.5
        %v4306 = vmin.f32 %v4242, 2.5
        %v4307 = vmin.f32 %v4243, 2.5
        %v4308 = vmin.f32 %v4244, 2.5
        %v4309 = vmin.f32 %v4245, 2.5
        %v4310 = vmin.f32 %v4246, 2.5
        %v4311 = vmin.f32 %v4247, 2.5
        %v4312 = vmin.f32 %v4248, 2.5
        %v4313 = vmin.f32 %v4249, 2.5
        %v4314 = vmin.f32 %v4250, 2.5
        %v4315 = vmin.f32 %v4251, 2.5
        %v4316 = vmin.f32 %v4252, 2.5
        %v4317 = vmin.f32 %v4253, 2.5
        %v4318 = vmin.f32 %v4254, 2.5
        %v4319 = vmin.f32 %v4255, 2.5
        %v4320 = vmin.f32 %v4256, 2.5
        %v4321 = vmin.f32 %v4257, 2.5
        %v4322 = vmin.f32 %v4258, 2.5
        %v4323 = vmin.f32 %v4259, 2.5
        %v4324 = vmin.f32 %v4260, 2.5
        %v4325 = vmin.f32 %v4261, 2.5
        %v4326 = vmin.f32 %v4262, 2.5
        %v4327 = vmin.f32 %v4263, 2.5
        %v4328 = vmin.f32 %v4264, 2.5
        %v4329 = vmin.f32 %v4265, 2.5
        %v4330 = vmin.f32 %v4266, 2.5
        %v4331 = vmin.f32 %v4267, 2.5
        %v4332 = vmin.f32 %v4268, 2.5
        %v4333 = vmin.f32 %v4269, 2.5
        %v4334 = vmin.f32 %v4270, 2.5
        %v4335 = vand.u32 2147483647, %v4271
        %v4336 = vand.u32 2147483647, %v4272
        %v4337 = vand.u32 2147483647, %v4273
        %v4338 = vand.u32 2147483647, %v4274
        %v4339 = vand.u32 2147483647, %v4275
        %v4340 = vand.u32 2147483647, %v4276
        %v4341 = vand.u32 2147483647, %v4277
        %v4342 = vand.u32 2147483647, %v4278
        %v4343 = vand.u32 2147483647, %v4279
        %v4344 = vand.u32 2147483647, %v4280
        %v4345 = vand.u32 2147483647, %v4281
        %v4346 = vand.u32 2147483647, %v4282
        %v4347 = vand.u32 2147483647, %v4283
        %v4348 = vand.u32 2147483647, %v4284
        %v4349 = vand.u32 2147483647, %v4285
        %v4350 = vand.u32 2147483647, %v4286
        %v4351 = vand.u32 2147483647, %v4287
        %v4352 = vand.u32 2147483647, %v4288
        %v4353 = vand.u32 2147483647, %v4289
        %v4354 = vand.u32 2147483647, %v4290
        %v4355 = vand.u32 2147483647, %v4291
        %v4356 = vand.u32 2147483647, %v4292
        %v4357 = vand.u32 2147483647, %v4293
        %v4358 = vand.u32 2147483647, %v4294
        %v4359 = vand.u32 2147483647, %v4295
        %v4360 = vand.u32 2147483647, %v4296
        %v4361 = vand.u32 2147483647, %v4297
        %v4362 = vand.u32 2147483647, %v4298
        %v4363 = vand.u32 2147483647, %v4299
        %v4364 = vand.u32 2147483647, %v4300
        %v4365 = vand.u32 2147483647, %v4301
        %v4366 = vand.u32 2147483647, %v4302
        %v4367 = vand.u32 2147483647, %v4303
        %v4368 = vand.u32 2147483647, %v4304
        %v4369 = vand.u32 2147483647, %v4305
        %v4370 = vand.u32 2147483647, %v4306
        %v4371 = vand.u32 2147483647, %v4307
        %v4372 = vand.u32 2147483647, %v4308
        %v4373 = vand.u32 2147483647, %v4309
        %v4374 = vand.u32 2147483647, %v4310
        %v4375 = vand.u32 2147483647, %v4311
        %v4376 = vand.u32 2147483647, %v4312
        %v4377 = vand.u32 2147483647, %v4313
        %v4378 = vand.u32 2147483647, %v4314
        %v4379 = vand.u32 2147483647, %v4315
        %v4380 = vand.u32 2147483647, %v4316
        %v4381 = vand.u32 2147483647, %v4317
        %v4382 = vand.u32 2147483647, %v4318
        %v4383 = vand.u32 2147483647, %v4319
        %v4384 = vand.u32 2147483647, %v4320
        %v4385 = vand.u32 2147483647, %v4321
        %v4386 = vand.u32 2147483647, %v4322
        %v4387 = vand.u32 2147483647, %v4323
        %v4388 = vand.u32 2147483647, %v4324
        %v4389 = vand.u32 2147483647, %v4325
        %v4390 = vand.u32 2147483647, %v4326
        %v4391 = vand.u32 2147483647, %v4327
        %v4392 = vand.u32 2147483647, %v4328
        %v4393 = vand.u32 2147483647, %v4329
        %v4394 = vand.u32 2147483647, %v4330
        %v4395 = vand.u32 2147483647, %v4331
        %v4396 = vand.u32 2147483647, %v4332
        %v4397 = vand.u32 2147483647, %v4333
        %v4398 = vand.u32 2147483647, %v4334
        %v4399 = vsel %vm2127, %v4335, -inf
        %v4400 = vsel %vm2127, %v4336, -inf
        %v4401 = vsel %vm2127, %v4337, -inf
        %v4402 = vsel %vm2127, %v4338, -inf
        %v4403 = vsel %vm2127, %v4339, -inf
        %v4404 = vmax.f32 %v4399, %v4403
        %v4405 = vsel %vm2127, %v4340, -inf
        %v4406 = vmax.f32 %v4400, %v4405
        %v4407 = vsel %vm2127, %v4341, -inf
        %v4408 = vmax.f32 %v4401, %v4407
        %v4409 = vsel %vm2127, %v4342, -inf
        %v4410 = vmax.f32 %v4402, %v4409
        %v4411 = vsel %vm2127, %v4343, -inf
        %v4412 = vmax.f32 %v4404, %v4411
        %v4413 = vsel %vm2127, %v4344, -inf
        %v4414 = vmax.f32 %v4406, %v4413
        %v4415 = vsel %vm2127, %v4345, -inf
        %v4416 = vmax.f32 %v4408, %v4415
        %v4417 = vsel %vm2127, %v4346, -inf
        %v4418 = vmax.f32 %v4410, %v4417
        %v4419 = vsel %vm2127, %v4347, -inf
        %v4420 = vmax.f32 %v4412, %v4419
        %v4421 = vsel %vm2127, %v4348, -inf
        %v4422 = vmax.f32 %v4414, %v4421
        %v4423 = vsel %vm2127, %v4349, -inf
        %v4424 = vmax.f32 %v4416, %v4423
        %v4425 = vsel %vm2127, %v4350, -inf
        %v4426 = vmax.f32 %v4418, %v4425
        %v4427 = vsel %vm2127, %v4351, -inf
        %v4428 = vmax.f32 %v4420, %v4427
        %v4429 = vsel %vm2127, %v4352, -inf
        %v4430 = vmax.f32 %v4422, %v4429
        %v4431 = vsel %vm2127, %v4353, -inf
        %v4432 = vmax.f32 %v4424, %v4431
        %v4433 = vsel %vm2127, %v4354, -inf
        %v4434 = vmax.f32 %v4426, %v4433
        %v4435 = vsel %vm2127, %v4355, -inf
        %v4436 = vmax.f32 %v4428, %v4435
        %v4437 = vsel %vm2127, %v4356, -inf
        %v4438 = vmax.f32 %v4430, %v4437
        %v4439 = vsel %vm2127, %v4357, -inf
        %v4440 = vmax.f32 %v4432, %v4439
        %v4441 = vsel %vm2127, %v4358, -inf
        %v4442 = vmax.f32 %v4434, %v4441
        %v4443 = vsel %vm2127, %v4359, -inf
        %v4444 = vmax.f32 %v4436, %v4443
        %v4445 = vsel %vm2127, %v4360, -inf
        %v4446 = vmax.f32 %v4438, %v4445
        %v4447 = vsel %vm2127, %v4361, -inf
        %v4448 = vmax.f32 %v4440, %v4447
        %v4449 = vsel %vm2127, %v4362, -inf
        %v4450 = vmax.f32 %v4442, %v4449
        %v4451 = vsel %vm2127, %v4363, -inf
        %v4452 = vmax.f32 %v4444, %v4451
        %v4453 = vsel %vm2127, %v4364, -inf
        %v4454 = vmax.f32 %v4446, %v4453
        %v4455 = vsel %vm2127, %v4365, -inf
        %v4456 = vmax.f32 %v4448, %v4455
        %v4457 = vsel %vm2127, %v4366, -inf
        %v4458 = vmax.f32 %v4450, %v4457
        %v4459 = vsel %vm2127, %v4367, -inf
        %v4460 = vmax.f32 %v4452, %v4459
        %v4461 = vsel %vm2127, %v4368, -inf
        %v4462 = vmax.f32 %v4454, %v4461
        %v4463 = vsel %vm2127, %v4369, -inf
        %v4464 = vmax.f32 %v4456, %v4463
        %v4465 = vsel %vm2127, %v4370, -inf
        %v4466 = vmax.f32 %v4458, %v4465
        %v4467 = vsel %vm2127, %v4371, -inf
        %v4468 = vmax.f32 %v4460, %v4467
        %v4469 = vsel %vm2127, %v4372, -inf
        %v4470 = vmax.f32 %v4462, %v4469
        %v4471 = vsel %vm2127, %v4373, -inf
        %v4472 = vmax.f32 %v4464, %v4471
        %v4473 = vsel %vm2127, %v4374, -inf
        %v4474 = vmax.f32 %v4466, %v4473
        %v4475 = vsel %vm2127, %v4375, -inf
        %v4476 = vmax.f32 %v4468, %v4475
        %v4477 = vsel %vm2127, %v4376, -inf
        %v4478 = vmax.f32 %v4470, %v4477
        %v4479 = vsel %vm2127, %v4377, -inf
        %v4480 = vmax.f32 %v4472, %v4479
        %v4481 = vsel %vm2127, %v4378, -inf
        %v4482 = vmax.f32 %v4474, %v4481
        %v4483 = vsel %vm2127, %v4379, -inf
        %v4484 = vmax.f32 %v4476, %v4483
        %v4485 = vsel %vm2127, %v4380, -inf
        %v4486 = vmax.f32 %v4478, %v4485
        %v4487 = vsel %vm2127, %v4381, -inf
        %v4488 = vmax.f32 %v4480, %v4487
        %v4489 = vsel %vm2127, %v4382, -inf
        %v4490 = vmax.f32 %v4482, %v4489
        %v4491 = vsel %vm2127, %v4383, -inf
        %v4492 = vmax.f32 %v4484, %v4491
        %v4493 = vsel %vm2127, %v4384, -inf
        %v4494 = vmax.f32 %v4486, %v4493
        %v4495 = vsel %vm2127, %v4385, -inf
        %v4496 = vmax.f32 %v4488, %v4495
        %v4497 = vsel %vm2127, %v4386, -inf
        %v4498 = vmax.f32 %v4490, %v4497
        %v4499 = vsel %vm2127, %v4387, -inf
        %v4500 = vmax.f32 %v4492, %v4499
        %v4501 = vsel %vm2127, %v4388, -inf
        %v4502 = vmax.f32 %v4494, %v4501
        %v4503 = vsel %vm2127, %v4389, -inf
        %v4504 = vmax.f32 %v4496, %v4503
        %v4505 = vsel %vm2127, %v4390, -inf
        %v4506 = vmax.f32 %v4498, %v4505
        %v4507 = vsel %vm2127, %v4391, -inf
        %v4508 = vmax.f32 %v4500, %v4507
        %v4509 = vsel %vm2127, %v4392, -inf
        %v4510 = vmax.f32 %v4502, %v4509
        %v4511 = vsel %vm2127, %v4393, -inf
        %v4512 = vmax.f32 %v4504, %v4511
        %v4513 = vsel %vm2127, %v4394, -inf
        %v4514 = vmax.f32 %v4506, %v4513
        %v4515 = vsel %vm2127, %v4395, -inf
        %v4516 = vmax.f32 %v4508, %v4515
        %v4517 = vsel %vm2127, %v4396, -inf
        %v4518 = vmax.f32 %v4510, %v4517
        %v4519 = vsel %vm2127, %v4397, -inf
        %v4520 = vmax.f32 %v4512, %v4519
        %v4521 = vsel %vm2127, %v4398, -inf
        %v4522 = vmax.f32 %v4514, %v4521
        %v4523 = vmax.f32 %v4516, %v4518
        %v4524 = vmax.f32 %v4520, %v4522
        %v4525 = vmax.f32 %v4523, %v4524
        %4526 = vmax.xlane.f32.xlu0 %v4525
        %v4527 = vpop.xlane.xlu0 %4526
        %s4528 = vtos %v4527
        %s4529 = smax.f32 %s4528, 1e-08
        %v4530 = vstv %s4529
        %v4531 = vrcp.pop %v4530
        %v4532 = vmul.f32 %v4531, 127.0
        %v4533 = vmul.f32 %v4271, %v4532
        %v4534 = vmul.f32 %v4272, %v4532
        %v4535 = vmul.f32 %v4273, %v4532
        %v4536 = vmul.f32 %v4274, %v4532
        %v4537 = vmul.f32 %v4275, %v4532
        %v4538 = vmul.f32 %v4276, %v4532
        %v4539 = vmul.f32 %v4277, %v4532
        %v4540 = vmul.f32 %v4278, %v4532
        %v4541 = vmul.f32 %v4279, %v4532
        %v4542 = vmul.f32 %v4280, %v4532
        %v4543 = vmul.f32 %v4281, %v4532
        %v4544 = vmul.f32 %v4282, %v4532
        %v4545 = vmul.f32 %v4283, %v4532
        %v4546 = vmul.f32 %v4284, %v4532
        %v4547 = vmul.f32 %v4285, %v4532
        %v4548 = vmul.f32 %v4286, %v4532
        %v4549 = vmul.f32 %v4287, %v4532
        %v4550 = vmul.f32 %v4288, %v4532
        %v4551 = vmul.f32 %v4289, %v4532
        %v4552 = vmul.f32 %v4290, %v4532
        %v4553 = vmul.f32 %v4291, %v4532
        %v4554 = vmul.f32 %v4292, %v4532
        %v4555 = vmul.f32 %v4293, %v4532
        %v4556 = vmul.f32 %v4294, %v4532
        %v4557 = vmul.f32 %v4295, %v4532
        %v4558 = vmul.f32 %v4296, %v4532
        %v4559 = vmul.f32 %v4297, %v4532
        %v4560 = vmul.f32 %v4298, %v4532
        %v4561 = vmul.f32 %v4299, %v4532
        %v4562 = vmul.f32 %v4300, %v4532
        %v4563 = vmul.f32 %v4301, %v4532
        %v4564 = vmul.f32 %v4302, %v4532
        %v4565 = vmul.f32 %v4303, %v4532
        %v4566 = vmul.f32 %v4304, %v4532
        %v4567 = vmul.f32 %v4305, %v4532
        %v4568 = vmul.f32 %v4306, %v4532
        %v4569 = vmul.f32 %v4307, %v4532
        %v4570 = vmul.f32 %v4308, %v4532
        %v4571 = vmul.f32 %v4309, %v4532
        %v4572 = vmul.f32 %v4310, %v4532
        %v4573 = vmul.f32 %v4311, %v4532
        %v4574 = vmul.f32 %v4312, %v4532
        %v4575 = vmul.f32 %v4313, %v4532
        %v4576 = vmul.f32 %v4314, %v4532
        %v4577 = vmul.f32 %v4315, %v4532
        %v4578 = vmul.f32 %v4316, %v4532
        %v4579 = vmul.f32 %v4317, %v4532
        %v4580 = vmul.f32 %v4318, %v4532
        %v4581 = vmul.f32 %v4319, %v4532
        %v4582 = vmul.f32 %v4320, %v4532
        %v4583 = vmul.f32 %v4321, %v4532
        %v4584 = vmul.f32 %v4322, %v4532
        %v4585 = vmul.f32 %v4323, %v4532
        %v4586 = vmul.f32 %v4324, %v4532
        %v4587 = vmul.f32 %v4325, %v4532
        %v4588 = vmul.f32 %v4326, %v4532
        %v4589 = vmul.f32 %v4327, %v4532
        %v4590 = vmul.f32 %v4328, %v4532
        %v4591 = vmul.f32 %v4329, %v4532
        %v4592 = vmul.f32 %v4330, %v4532
        %v4593 = vmul.f32 %v4331, %v4532
        %v4594 = vmul.f32 %v4332, %v4532
        %v4595 = vmul.f32 %v4333, %v4532
        %v4596 = vmul.f32 %v4334, %v4532
        %v4597 = vround.ne.pseudo %v4533
        %v4598 = vround.ne.pseudo %v4534
        %v4599 = vround.ne.pseudo %v4535
        %v4600 = vround.ne.pseudo %v4536
        %v4601 = vround.ne.pseudo %v4537
        %v4602 = vround.ne.pseudo %v4538
        %v4603 = vround.ne.pseudo %v4539
        %v4604 = vround.ne.pseudo %v4540
        %v4605 = vround.ne.pseudo %v4541
        %v4606 = vround.ne.pseudo %v4542
        %v4607 = vround.ne.pseudo %v4543
        %v4608 = vround.ne.pseudo %v4544
        %v4609 = vround.ne.pseudo %v4545
        %v4610 = vround.ne.pseudo %v4546
        %v4611 = vround.ne.pseudo %v4547
        %v4612 = vround.ne.pseudo %v4548
        %v4613 = vround.ne.pseudo %v4549
        %v4614 = vround.ne.pseudo %v4550
        %v4615 = vround.ne.pseudo %v4551
        %v4616 = vround.ne.pseudo %v4552
        %v4617 = vround.ne.pseudo %v4553
        %v4618 = vround.ne.pseudo %v4554
        %v4619 = vround.ne.pseudo %v4555
        %v4620 = vround.ne.pseudo %v4556
        %v4621 = vround.ne.pseudo %v4557
        %v4622 = vround.ne.pseudo %v4558
        %v4623 = vround.ne.pseudo %v4559
        %v4624 = vround.ne.pseudo %v4560
        %v4625 = vround.ne.pseudo %v4561
        %v4626 = vround.ne.pseudo %v4562
        %v4627 = vround.ne.pseudo %v4563
        %v4628 = vround.ne.pseudo %v4564
        %v4629 = vround.ne.pseudo %v4565
        %v4630 = vround.ne.pseudo %v4566
        %v4631 = vround.ne.pseudo %v4567
        %v4632 = vround.ne.pseudo %v4568
        %v4633 = vround.ne.pseudo %v4569
        %v4634 = vround.ne.pseudo %v4570
        %v4635 = vround.ne.pseudo %v4571
        %v4636 = vround.ne.pseudo %v4572
        %v4637 = vround.ne.pseudo %v4573
        %v4638 = vround.ne.pseudo %v4574
        %v4639 = vround.ne.pseudo %v4575
        %v4640 = vround.ne.pseudo %v4576
        %v4641 = vround.ne.pseudo %v4577
        %v4642 = vround.ne.pseudo %v4578
        %v4643 = vround.ne.pseudo %v4579
        %v4644 = vround.ne.pseudo %v4580
        %v4645 = vround.ne.pseudo %v4581
        %v4646 = vround.ne.pseudo %v4582
        %v4647 = vround.ne.pseudo %v4583
        %v4648 = vround.ne.pseudo %v4584
        %v4649 = vround.ne.pseudo %v4585
        %v4650 = vround.ne.pseudo %v4586
        %v4651 = vround.ne.pseudo %v4587
        %v4652 = vround.ne.pseudo %v4588
        %v4653 = vround.ne.pseudo %v4589
        %v4654 = vround.ne.pseudo %v4590
        %v4655 = vround.ne.pseudo %v4591
        %v4656 = vround.ne.pseudo %v4592
        %v4657 = vround.ne.pseudo %v4593
        %v4658 = vround.ne.pseudo %v4594
        %v4659 = vround.ne.pseudo %v4595
        %v4660 = vround.ne.pseudo %v4596
        %s4661 = smul.f32 %s4529, 0.007874016
        %v4662 = vstv %s4661
        %v4663 = vmul.f32 %v4597, %v4662
        %v4664 = vmul.f32 %v4598, %v4662
        %v4665 = vmul.f32 %v4599, %v4662
        %v4666 = vmul.f32 %v4600, %v4662
        %v4667 = vmul.f32 %v4601, %v4662
        %v4668 = vmul.f32 %v4602, %v4662
        %v4669 = vmul.f32 %v4603, %v4662
        %v4670 = vmul.f32 %v4604, %v4662
        %v4671 = vmul.f32 %v4605, %v4662
        %v4672 = vmul.f32 %v4606, %v4662
        %v4673 = vmul.f32 %v4607, %v4662
        %v4674 = vmul.f32 %v4608, %v4662
        %v4675 = vmul.f32 %v4609, %v4662
        %v4676 = vmul.f32 %v4610, %v4662
        %v4677 = vmul.f32 %v4611, %v4662
        %v4678 = vmul.f32 %v4612, %v4662
        %v4679 = vmul.f32 %v4613, %v4662
        %v4680 = vmul.f32 %v4614, %v4662
        %v4681 = vmul.f32 %v4615, %v4662
        %v4682 = vmul.f32 %v4616, %v4662
        %v4683 = vmul.f32 %v4617, %v4662
        %v4684 = vmul.f32 %v4618, %v4662
        %v4685 = vmul.f32 %v4619, %v4662
        %v4686 = vmul.f32 %v4620, %v4662
        %v4687 = vmul.f32 %v4621, %v4662
        %v4688 = vmul.f32 %v4622, %v4662
        %v4689 = vmul.f32 %v4623, %v4662
        %v4690 = vmul.f32 %v4624, %v4662
        %v4691 = vmul.f32 %v4625, %v4662
        %v4692 = vmul.f32 %v4626, %v4662
        %v4693 = vmul.f32 %v4627, %v4662
        %v4694 = vmul.f32 %v4628, %v4662
        %v4695 = vmul.f32 %v4629, %v4662
        %v4696 = vmul.f32 %v4630, %v4662
        %v4697 = vmul.f32 %v4631, %v4662
        %v4698 = vmul.f32 %v4632, %v4662
        %v4699 = vmul.f32 %v4633, %v4662
        %v4700 = vmul.f32 %v4634, %v4662
        %v4701 = vmul.f32 %v4635, %v4662
        %v4702 = vmul.f32 %v4636, %v4662
        %v4703 = vmul.f32 %v4637, %v4662
        %v4704 = vmul.f32 %v4638, %v4662
        %v4705 = vmul.f32 %v4639, %v4662
        %v4706 = vmul.f32 %v4640, %v4662
        %v4707 = vmul.f32 %v4641, %v4662
        %v4708 = vmul.f32 %v4642, %v4662
        %v4709 = vmul.f32 %v4643, %v4662
        %v4710 = vmul.f32 %v4644, %v4662
        %v4711 = vmul.f32 %v4645, %v4662
        %v4712 = vmul.f32 %v4646, %v4662
        %v4713 = vmul.f32 %v4647, %v4662
        %v4714 = vmul.f32 %v4648, %v4662
        %v4715 = vmul.f32 %v4649, %v4662
        %v4716 = vmul.f32 %v4650, %v4662
        %v4717 = vmul.f32 %v4651, %v4662
        %v4718 = vmul.f32 %v4652, %v4662
        %v4719 = vmul.f32 %v4653, %v4662
        %v4720 = vmul.f32 %v4654, %v4662
        %v4721 = vmul.f32 %v4655, %v4662
        %v4722 = vmul.f32 %v4656, %v4662
        %v4723 = vmul.f32 %v4657, %v4662
        %v4724 = vmul.f32 %v4658, %v4662
        %v4725 = vmul.f32 %v4659, %v4662
        %v4726 = vmul.f32 %v4660, %v4662
        %v4727 = vpack.c.bf16 %v4199, %v4199
        %v4728 = vpack.c.bf16 %v4200, %v4200
        %v4729 = vpack.c.bf16 %v4201, %v4201
        %v4730 = vpack.c.bf16 %v4202, %v4202
        %v4731 = vpack.c.bf16 %v4203, %v4203
        %v4732 = vpack.c.bf16 %v4204, %v4204
        %v4733 = vpack.c.bf16 %v4205, %v4205
        %v4734 = vpack.c.bf16 %v4206, %v4206
        %v4735 = vpack.c.bf16 %v4663, %v4663
        %v4736 = vpack.c.bf16 %v4664, %v4664
        %v4737 = vpack.c.bf16 %v4665, %v4665
        %v4738 = vpack.c.bf16 %v4666, %v4666
        %v4739 = vpack.c.bf16 %v4667, %v4667
        %v4740 = vpack.c.bf16 %v4668, %v4668
        %v4741 = vpack.c.bf16 %v4669, %v4669
        %v4742 = vpack.c.bf16 %v4670, %v4670
        %v4743 = vpack.c.bf16 %v4671, %v4671
        %v4744 = vpack.c.bf16 %v4672, %v4672
        %v4745 = vpack.c.bf16 %v4673, %v4673
        %v4746 = vpack.c.bf16 %v4674, %v4674
        %v4747 = vpack.c.bf16 %v4675, %v4675
        %v4748 = vpack.c.bf16 %v4676, %v4676
        %v4749 = vpack.c.bf16 %v4677, %v4677
        %v4750 = vpack.c.bf16 %v4678, %v4678
        %v4751 = vpack.c.bf16 %v4679, %v4679
        %v4752 = vpack.c.bf16 %v4680, %v4680
        %v4753 = vpack.c.bf16 %v4681, %v4681
        %v4754 = vpack.c.bf16 %v4682, %v4682
        %v4755 = vpack.c.bf16 %v4683, %v4683
        %v4756 = vpack.c.bf16 %v4684, %v4684
        %v4757 = vpack.c.bf16 %v4685, %v4685
        %v4758 = vpack.c.bf16 %v4686, %v4686
        %v4759 = vpack.c.bf16 %v4687, %v4687
        %v4760 = vpack.c.bf16 %v4688, %v4688
        %v4761 = vpack.c.bf16 %v4689, %v4689
        %v4762 = vpack.c.bf16 %v4690, %v4690
        %v4763 = vpack.c.bf16 %v4691, %v4691
        %v4764 = vpack.c.bf16 %v4692, %v4692
        %v4765 = vpack.c.bf16 %v4693, %v4693
        %v4766 = vpack.c.bf16 %v4694, %v4694
        %v4767 = vpack.c.bf16 %v4695, %v4695
        %v4768 = vpack.c.bf16 %v4696, %v4696
        %v4769 = vpack.c.bf16 %v4697, %v4697
        %v4770 = vpack.c.bf16 %v4698, %v4698
        %v4771 = vpack.c.bf16 %v4699, %v4699
        %v4772 = vpack.c.bf16 %v4700, %v4700
        %v4773 = vpack.c.bf16 %v4701, %v4701
        %v4774 = vpack.c.bf16 %v4702, %v4702
        %v4775 = vpack.c.bf16 %v4703, %v4703
        %v4776 = vpack.c.bf16 %v4704, %v4704
        %v4777 = vpack.c.bf16 %v4705, %v4705
        %v4778 = vpack.c.bf16 %v4706, %v4706
        %v4779 = vpack.c.bf16 %v4707, %v4707
        %v4780 = vpack.c.bf16 %v4708, %v4708
        %v4781 = vpack.c.bf16 %v4709, %v4709
        %v4782 = vpack.c.bf16 %v4710, %v4710
        %v4783 = vpack.c.bf16 %v4711, %v4711
        %v4784 = vpack.c.bf16 %v4712, %v4712
        %v4785 = vpack.c.bf16 %v4713, %v4713
        %v4786 = vpack.c.bf16 %v4714, %v4714
        %v4787 = vpack.c.bf16 %v4715, %v4715
        %v4788 = vpack.c.bf16 %v4716, %v4716
        %v4789 = vpack.c.bf16 %v4717, %v4717
        %v4790 = vpack.c.bf16 %v4718, %v4718
        %v4791 = vpack.c.bf16 %v4719, %v4719
        %v4792 = vpack.c.bf16 %v4720, %v4720
        %v4793 = vpack.c.bf16 %v4721, %v4721
        %v4794 = vpack.c.bf16 %v4722, %v4722
        %v4795 = vpack.c.bf16 %v4723, %v4723
        %v4796 = vpack.c.bf16 %v4724, %v4724
        %v4797 = vpack.c.bf16 %v4725, %v4725
        %v4798 = vpack.c.bf16 %v4726, %v4726
        %v4807 = vunpack.c.l.b16 %v4735
        %v4808 = vunpack.c.l.b16 %v4736
        %v4809 = vunpack.c.l.b16 %v4737
        %v4810 = vunpack.c.l.b16 %v4738
        %v4811 = vunpack.c.l.b16 %v4739
        %v4812 = vunpack.c.l.b16 %v4740
        %v4813 = vunpack.c.l.b16 %v4741
        %v4814 = vunpack.c.l.b16 %v4742
        %v4815 = vrot.slane %v4808, 7
        %v4816 = vsel %vm3121, %v4815, %v4807
        %v4817 = vrot.slane %v4809, 6
        %v4818 = vsel %vm3124, %v4817, %v4816
        %v4819 = vrot.slane %v4810, 5
        %v4820 = vsel %vm3127, %v4819, %v4818
        %v4821 = vrot.slane %v4811, 4
        %v4822 = vsel %vm3130, %v4821, %v4820
        %v4823 = vrot.slane %v4812, 3
        %v4824 = vsel %vm3133, %v4823, %v4822
        %v4825 = vrot.slane %v4813, 2
        %v4826 = vsel %vm3136, %v4825, %v4824
        %v4827 = vrot.slane %v4814, 1
        %v4828 = vsel %vm3139, %v4827, %v4826
        %v4829 = vpack.c.b16 %v4828, %v4828
        %v4831 = vsel %vm3173, %v4727, 0
        %vm4833 = vcmask 1043456
        %v4835 = vsel %vm4833, %v4829, 0
        %4837 = vmatprep.subr.bf16.mxu0 0
        %4838 = vmatpush1.bf16.msra.mxu0 %v4835
        %4839 = vmatprep.subr.bf16.mxu0 0
        %4840 = vmatpush1.bf16.msra.mxu0 0
        %4841 = vmatprep.subr.bf16.mxu0 0
        %4842 = vmatpush1.bf16.msra.mxu0 0
        %4843 = vmatprep.subr.bf16.mxu0 0
        %4844 = vmatpush1.bf16.msra.mxu0 0
        %4845 = vmatprep.subr.bf16.mxu0 0
        %4846 = vmatpush1.bf16.msra.mxu0 0
        %4847 = vmatprep.subr.bf16.mxu0 0
        %4848 = vmatpush1.bf16.msra.mxu0 0
        %4849 = vmatprep.subr.bf16.mxu0 0
        %4850 = vmatpush1.bf16.msra.mxu0 0
        %4851 = vmatprep.subr.bf16.mxu0 0
        %4852 = vmatpush1.bf16.msra.mxu0 0
        %4853 = vmatprep.subr.bf16.mxu0 0
        %4854 = vmatpush1.bf16.msra.mxu0 0
        %4855 = vmatprep.subr.bf16.mxu0 0
        %4856 = vmatpush1.bf16.msra.mxu0 0
        %4857 = vmatprep.subr.bf16.mxu0 0
        %4858 = vmatpush1.bf16.msra.mxu0 0
        %4859 = vmatprep.subr.bf16.mxu0 0
        %4860 = vmatpush1.bf16.msra.mxu0 0
        %4861 = vmatprep.subr.bf16.mxu0 0
        %4862 = vmatpush1.bf16.msra.mxu0 0
        %4863 = vmatprep.subr.bf16.mxu0 0
        %4864 = vmatpush1.bf16.msra.mxu0 0
        %4865 = vmatprep.subr.bf16.mxu0 0
        %4866 = vmatpush1.bf16.msra.mxu0 0
        %4867 = vmatprep.subr.bf16.mxu0 0
        %4868 = vmatpush1.bf16.msra.mxu0 0
        %4869 = vmatprep.mubr.bf16.mxu0 0
        %4870 = vmatmul.mubr.bf16.gmra.mrb[0].mxu0 %v4831
        %v4871 = vpop.f32.mrb[0].mxu0
        %v4872 = vadd.f32 0.0, %v4871
        %v4873 = vpop.f32.mrb[0].mxu0
        %v4874 = vpop.f32.mrb[0].mxu0
        %v4875 = vpop.f32.mrb[0].mxu0
        %4876 = vdwg.mxu0
        %v4885 = vunpack.c.l.b16 %v4743
        %v4886 = vunpack.c.l.b16 %v4744
        %v4887 = vunpack.c.l.b16 %v4745
        %v4888 = vunpack.c.l.b16 %v4746
        %v4889 = vunpack.c.l.b16 %v4747
        %v4890 = vunpack.c.l.b16 %v4748
        %v4891 = vunpack.c.l.b16 %v4749
        %v4892 = vunpack.c.l.b16 %v4750
        %v4893 = vrot.slane %v4886, 7
        %v4894 = vsel %vm3121, %v4893, %v4885
        %v4895 = vrot.slane %v4887, 6
        %v4896 = vsel %vm3124, %v4895, %v4894
        %v4897 = vrot.slane %v4888, 5
        %v4898 = vsel %vm3127, %v4897, %v4896
        %v4899 = vrot.slane %v4889, 4
        %v4900 = vsel %vm3130, %v4899, %v4898
        %v4901 = vrot.slane %v4890, 3
        %v4902 = vsel %vm3133, %v4901, %v4900
        %v4903 = vrot.slane %v4891, 2
        %v4904 = vsel %vm3136, %v4903, %v4902
        %v4905 = vrot.slane %v4892, 1
        %v4906 = vsel %vm3139, %v4905, %v4904
        %v4907 = vpack.c.b16 %v4906, %v4906
        %v4909 = vsel %vm3173, %v4728, 0
        %v4912 = vsel %vm4833, %v4907, 0
        %4914 = vmatprep.subr.bf16.mxu0 0
        %4915 = vmatpush1.bf16.msra.mxu0 %v4912
        %4916 = vmatprep.subr.bf16.mxu0 0
        %4917 = vmatpush1.bf16.msra.mxu0 0
        %4918 = vmatprep.subr.bf16.mxu0 0
        %4919 = vmatpush1.bf16.msra.mxu0 0
        %4920 = vmatprep.subr.bf16.mxu0 0
        %4921 = vmatpush1.bf16.msra.mxu0 0
        %4922 = vmatprep.subr.bf16.mxu0 0
        %4923 = vmatpush1.bf16.msra.mxu0 0
        %4924 = vmatprep.subr.bf16.mxu0 0
        %4925 = vmatpush1.bf16.msra.mxu0 0
        %4926 = vmatprep.subr.bf16.mxu0 0
        %4927 = vmatpush1.bf16.msra.mxu0 0
        %4928 = vmatprep.subr.bf16.mxu0 0
        %4929 = vmatpush1.bf16.msra.mxu0 0
        %4930 = vmatprep.subr.bf16.mxu0 0
        %4931 = vmatpush1.bf16.msra.mxu0 0
        %4932 = vmatprep.subr.bf16.mxu0 0
        %4933 = vmatpush1.bf16.msra.mxu0 0
        %4934 = vmatprep.subr.bf16.mxu0 0
        %4935 = vmatpush1.bf16.msra.mxu0 0
        %4936 = vmatprep.subr.bf16.mxu0 0
        %4937 = vmatpush1.bf16.msra.mxu0 0
        %4938 = vmatprep.subr.bf16.mxu0 0
        %4939 = vmatpush1.bf16.msra.mxu0 0
        %4940 = vmatprep.subr.bf16.mxu0 0
        %4941 = vmatpush1.bf16.msra.mxu0 0
        %4942 = vmatprep.subr.bf16.mxu0 0
        %4943 = vmatpush1.bf16.msra.mxu0 0
        %4944 = vmatprep.subr.bf16.mxu0 0
        %4945 = vmatpush1.bf16.msra.mxu0 0
        %4946 = vmatprep.mubr.bf16.mxu0 0
        %4947 = vmatmul.mubr.bf16.gmra.mrb[0].mxu0 %v4909
        %v4948 = vpop.f32.mrb[0].mxu0
        %v4949 = vadd.f32 0.0, %v4948
        %v4950 = vpop.f32.mrb[0].mxu0
        %v4951 = vpop.f32.mrb[0].mxu0
        %v4952 = vpop.f32.mrb[0].mxu0
        %4953 = vdwg.mxu0
        %v4962 = vunpack.c.l.b16 %v4751
        %v4963 = vunpack.c.l.b16 %v4752
        %v4964 = vunpack.c.l.b16 %v4753
        %v4965 = vunpack.c.l.b16 %v4754
        %v4966 = vunpack.c.l.b16 %v4755
        %v4967 = vunpack.c.l.b16 %v4756
        %v4968 = vunpack.c.l.b16 %v4757
        %v4969 = vunpack.c.l.b16 %v4758
        %v4970 = vrot.slane %v4963, 7
        %v4971 = vsel %vm3121, %v4970, %v4962
        %v4972 = vrot.slane %v4964, 6
        %v4973 = vsel %vm3124, %v4972, %v4971
        %v4974 = vrot.slane %v4965, 5
        %v4975 = vsel %vm3127, %v4974, %v4973
        %v4976 = vrot.slane %v4966, 4
        %v4977 = vsel %vm3130, %v4976, %v4975
        %v4978 = vrot.slane %v4967, 3
        %v4979 = vsel %vm3133, %v4978, %v4977
        %v4980 = vrot.slane %v4968, 2
        %v4981 = vsel %vm3136, %v4980, %v4979
        %v4982 = vrot.slane %v4969, 1
        %v4983 = vsel %vm3139, %v4982, %v4981
        %v4984 = vpack.c.b16 %v4983, %v4983
        %v4986 = vsel %vm3173, %v4729, 0
        %v4989 = vsel %vm4833, %v4984, 0
        %4991 = vmatprep.subr.bf16.mxu0 0
        %4992 = vmatpush1.bf16.msra.mxu0 %v4989
        %4993 = vmatprep.subr.bf16.mxu0 0
        %4994 = vmatpush1.bf16.msra.mxu0 0
        %4995 = vmatprep.subr.bf16.mxu0 0
        %4996 = vmatpush1.bf16.msra.mxu0 0
        %4997 = vmatprep.subr.bf16.mxu0 0
        %4998 = vmatpush1.bf16.msra.mxu0 0
        %4999 = vmatprep.subr.bf16.mxu0 0
        %5000 = vmatpush1.bf16.msra.mxu0 0
        %5001 = vmatprep.subr.bf16.mxu0 0
        %5002 = vmatpush1.bf16.msra.mxu0 0
        %5003 = vmatprep.subr.bf16.mxu0 0
        %5004 = vmatpush1.bf16.msra.mxu0 0
        %5005 = vmatprep.subr.bf16.mxu0 0
        %5006 = vmatpush1.bf16.msra.mxu0 0
        %5007 = vmatprep.subr.bf16.mxu0 0
        %5008 = vmatpush1.bf16.msra.mxu0 0
        %5009 = vmatprep.subr.bf16.mxu0 0
        %5010 = vmatpush1.bf16.msra.mxu0 0
        %5011 = vmatprep.subr.bf16.mxu0 0
        %5012 = vmatpush1.bf16.msra.mxu0 0
        %5013 = vmatprep.subr.bf16.mxu0 0
        %5014 = vmatpush1.bf16.msra.mxu0 0
        %5015 = vmatprep.subr.bf16.mxu0 0
        %5016 = vmatpush1.bf16.msra.mxu0 0
        %5017 = vmatprep.subr.bf16.mxu0 0
        %5018 = vmatpush1.bf16.msra.mxu0 0
        %5019 = vmatprep.subr.bf16.mxu0 0
        %5020 = vmatpush1.bf16.msra.mxu0 0
        %5021 = vmatprep.subr.bf16.mxu0 0
        %5022 = vmatpush1.bf16.msra.mxu0 0
        %5023 = vmatprep.mubr.bf16.mxu0 0
        %5024 = vmatmul.mubr.bf16.gmra.mrb[0].mxu0 %v4986
        %v5025 = vpop.f32.mrb[0].mxu0
        %v5026 = vadd.f32 0.0, %v5025
        %v5027 = vpop.f32.mrb[0].mxu0
        %v5028 = vpop.f32.mrb[0].mxu0
        %v5029 = vpop.f32.mrb[0].mxu0
        %5030 = vdwg.mxu0
        %v5039 = vunpack.c.l.b16 %v4759
        %v5040 = vunpack.c.l.b16 %v4760
        %v5041 = vunpack.c.l.b16 %v4761
        %v5042 = vunpack.c.l.b16 %v4762
        %v5043 = vunpack.c.l.b16 %v4763
        %v5044 = vunpack.c.l.b16 %v4764
        %v5045 = vunpack.c.l.b16 %v4765
        %v5046 = vunpack.c.l.b16 %v4766
        %v5047 = vrot.slane %v5040, 7
        %v5048 = vsel %vm3121, %v5047, %v5039
        %v5049 = vrot.slane %v5041, 6
        %v5050 = vsel %vm3124, %v5049, %v5048
        %v5051 = vrot.slane %v5042, 5
        %v5052 = vsel %vm3127, %v5051, %v5050
        %v5053 = vrot.slane %v5043, 4
        %v5054 = vsel %vm3130, %v5053, %v5052
        %v5055 = vrot.slane %v5044, 3
        %v5056 = vsel %vm3133, %v5055, %v5054
        %v5057 = vrot.slane %v5045, 2
        %v5058 = vsel %vm3136, %v5057, %v5056
        %v5059 = vrot.slane %v5046, 1
        %v5060 = vsel %vm3139, %v5059, %v5058
        %v5061 = vpack.c.b16 %v5060, %v5060
        %v5063 = vsel %vm3173, %v4730, 0
        %v5066 = vsel %vm4833, %v5061, 0
        %5068 = vmatprep.subr.bf16.mxu0 0
        %5069 = vmatpush1.bf16.msra.mxu0 %v5066
        %5070 = vmatprep.subr.bf16.mxu0 0
        %5071 = vmatpush1.bf16.msra.mxu0 0
        %5072 = vmatprep.subr.bf16.mxu0 0
        %5073 = vmatpush1.bf16.msra.mxu0 0
        %5074 = vmatprep.subr.bf16.mxu0 0
        %5075 = vmatpush1.bf16.msra.mxu0 0
        %5076 = vmatprep.subr.bf16.mxu0 0
        %5077 = vmatpush1.bf16.msra.mxu0 0
        %5078 = vmatprep.subr.bf16.mxu0 0
        %5079 = vmatpush1.bf16.msra.mxu0 0
        %5080 = vmatprep.subr.bf16.mxu0 0
        %5081 = vmatpush1.bf16.msra.mxu0 0
        %5082 = vmatprep.subr.bf16.mxu0 0
        %5083 = vmatpush1.bf16.msra.mxu0 0
        %5084 = vmatprep.subr.bf16.mxu0 0
        %5085 = vmatpush1.bf16.msra.mxu0 0
        %5086 = vmatprep.subr.bf16.mxu0 0
        %5087 = vmatpush1.bf16.msra.mxu0 0
        %5088 = vmatprep.subr.bf16.mxu0 0
        %5089 = vmatpush1.bf16.msra.mxu0 0
        %5090 = vmatprep.subr.bf16.mxu0 0
        %5091 = vmatpush1.bf16.msra.mxu0 0
        %5092 = vmatprep.subr.bf16.mxu0 0
        %5093 = vmatpush1.bf16.msra.mxu0 0
        %5094 = vmatprep.subr.bf16.mxu0 0
        %5095 = vmatpush1.bf16.msra.mxu0 0
        %5096 = vmatprep.subr.bf16.mxu0 0
        %5097 = vmatpush1.bf16.msra.mxu0 0
        %5098 = vmatprep.subr.bf16.mxu0 0
        %5099 = vmatpush1.bf16.msra.mxu0 0
        %5100 = vmatprep.mubr.bf16.mxu0 0
        %5101 = vmatmul.mubr.bf16.gmra.mrb[0].mxu0 %v5063
        %v5102 = vpop.f32.mrb[0].mxu0
        %v5103 = vadd.f32 0.0, %v5102
        %v5104 = vpop.f32.mrb[0].mxu0
        %v5105 = vpop.f32.mrb[0].mxu0
        %v5106 = vpop.f32.mrb[0].mxu0
        %5107 = vdwg.mxu0
        %v5116 = vunpack.c.l.b16 %v4767
        %v5117 = vunpack.c.l.b16 %v4768
        %v5118 = vunpack.c.l.b16 %v4769
        %v5119 = vunpack.c.l.b16 %v4770
        %v5120 = vunpack.c.l.b16 %v4771
        %v5121 = vunpack.c.l.b16 %v4772
        %v5122 = vunpack.c.l.b16 %v4773
        %v5123 = vunpack.c.l.b16 %v4774
        %v5124 = vrot.slane %v5117, 7
        %v5125 = vsel %vm3121, %v5124, %v5116
        %v5126 = vrot.slane %v5118, 6
        %v5127 = vsel %vm3124, %v5126, %v5125
        %v5128 = vrot.slane %v5119, 5
        %v5129 = vsel %vm3127, %v5128, %v5127
        %v5130 = vrot.slane %v5120, 4
        %v5131 = vsel %vm3130, %v5130, %v5129
        %v5132 = vrot.slane %v5121, 3
        %v5133 = vsel %vm3133, %v5132, %v5131
        %v5134 = vrot.slane %v5122, 2
        %v5135 = vsel %vm3136, %v5134, %v5133
        %v5136 = vrot.slane %v5123, 1
        %v5137 = vsel %vm3139, %v5136, %v5135
        %v5138 = vpack.c.b16 %v5137, %v5137
        %v5140 = vsel %vm3173, %v4731, 0
        %v5143 = vsel %vm4833, %v5138, 0
        %5145 = vmatprep.subr.bf16.mxu0 0
        %5146 = vmatpush1.bf16.msra.mxu0 %v5143
        %5147 = vmatprep.subr.bf16.mxu0 0
        %5148 = vmatpush1.bf16.msra.mxu0 0
        %5149 = vmatprep.subr.bf16.mxu0 0
        %5150 = vmatpush1.bf16.msra.mxu0 0
        %5151 = vmatprep.subr.bf16.mxu0 0
        %5152 = vmatpush1.bf16.msra.mxu0 0
        %5153 = vmatprep.subr.bf16.mxu0 0
        %5154 = vmatpush1.bf16.msra.mxu0 0
        %5155 = vmatprep.subr.bf16.mxu0 0
        %5156 = vmatpush1.bf16.msra.mxu0 0
        %5157 = vmatprep.subr.bf16.mxu0 0
        %5158 = vmatpush1.bf16.msra.mxu0 0
        %5159 = vmatprep.subr.bf16.mxu0 0
        %5160 = vmatpush1.bf16.msra.mxu0 0
        %5161 = vmatprep.subr.bf16.mxu0 0
        %5162 = vmatpush1.bf16.msra.mxu0 0
        %5163 = vmatprep.subr.bf16.mxu0 0
        %5164 = vmatpush1.bf16.msra.mxu0 0
        %5165 = vmatprep.subr.bf16.mxu0 0
        %5166 = vmatpush1.bf16.msra.mxu0 0
        %5167 = vmatprep.subr.bf16.mxu0 0
        %5168 = vmatpush1.bf16.msra.mxu0 0
        %5169 = vmatprep.subr.bf16.mxu0 0
        %5170 = vmatpush1.bf16.msra.mxu0 0
        %5171 = vmatprep.subr.bf16.mxu0 0
        %5172 = vmatpush1.bf16.msra.mxu0 0
        %5173 = vmatprep.subr.bf16.mxu0 0
        %5174 = vmatpush1.bf16.msra.mxu0 0
        %5175 = vmatprep.subr.bf16.mxu0 0
        %5176 = vmatpush1.bf16.msra.mxu0 0
        %5177 = vmatprep.mubr.bf16.mxu0 0
        %5178 = vmatmul.mubr.bf16.gmra.mrb[0].mxu0 %v5140
        %v5179 = vpop.f32.mrb[0].mxu0
        %v5180 = vadd.f32 0.0, %v5179
        %v5181 = vpop.f32.mrb[0].mxu0
        %v5182 = vpop.f32.mrb[0].mxu0
        %v5183 = vpop.f32.mrb[0].mxu0
        %5184 = vdwg.mxu0
        %v5193 = vunpack.c.l.b16 %v4775
        %v5194 = vunpack.c.l.b16 %v4776
        %v5195 = vunpack.c.l.b16 %v4777
        %v5196 = vunpack.c.l.b16 %v4778
        %v5197 = vunpack.c.l.b16 %v4779
        %v5198 = vunpack.c.l.b16 %v4780
        %v5199 = vunpack.c.l.b16 %v4781
        %v5200 = vunpack.c.l.b16 %v4782
        %v5201 = vrot.slane %v5194, 7
        %v5202 = vsel %vm3121, %v5201, %v5193
        %v5203 = vrot.slane %v5195, 6
        %v5204 = vsel %vm3124, %v5203, %v5202
        %v5205 = vrot.slane %v5196, 5
        %v5206 = vsel %vm3127, %v5205, %v5204
        %v5207 = vrot.slane %v5197, 4
        %v5208 = vsel %vm3130, %v5207, %v5206
        %v5209 = vrot.slane %v5198, 3
        %v5210 = vsel %vm3133, %v5209, %v5208
        %v5211 = vrot.slane %v5199, 2
        %v5212 = vsel %vm3136, %v5211, %v5210
        %v5213 = vrot.slane %v5200, 1
        %v5214 = vsel %vm3139, %v5213, %v5212
        %v5215 = vpack.c.b16 %v5214, %v5214
        %v5217 = vsel %vm3173, %v4732, 0
        %v5220 = vsel %vm4833, %v5215, 0
        %5222 = vmatprep.subr.bf16.mxu0 0
        %5223 = vmatpush1.bf16.msra.mxu0 %v5220
        %5224 = vmatprep.subr.bf16.mxu0 0
        %5225 = vmatpush1.bf16.msra.mxu0 0
        %5226 = vmatprep.subr.bf16.mxu0 0
        %5227 = vmatpush1.bf16.msra.mxu0 0
        %5228 = vmatprep.subr.bf16.mxu0 0
        %5229 = vmatpush1.bf16.msra.mxu0 0
        %5230 = vmatprep.subr.bf16.mxu0 0
        %5231 = vmatpush1.bf16.msra.mxu0 0
        %5232 = vmatprep.subr.bf16.mxu0 0
        %5233 = vmatpush1.bf16.msra.mxu0 0
        %5234 = vmatprep.subr.bf16.mxu0 0
        %5235 = vmatpush1.bf16.msra.mxu0 0
        %5236 = vmatprep.subr.bf16.mxu0 0
        %5237 = vmatpush1.bf16.msra.mxu0 0
        %5238 = vmatprep.subr.bf16.mxu0 0
        %5239 = vmatpush1.bf16.msra.mxu0 0
        %5240 = vmatprep.subr.bf16.mxu0 0
        %5241 = vmatpush1.bf16.msra.mxu0 0
        %5242 = vmatprep.subr.bf16.mxu0 0
        %5243 = vmatpush1.bf16.msra.mxu0 0
        %5244 = vmatprep.subr.bf16.mxu0 0
        %5245 = vmatpush1.bf16.msra.mxu0 0
        %5246 = vmatprep.subr.bf16.mxu0 0
        %5247 = vmatpush1.bf16.msra.mxu0 0
        %5248 = vmatprep.subr.bf16.mxu0 0
        %5249 = vmatpush1.bf16.msra.mxu0 0
        %5250 = vmatprep.subr.bf16.mxu0 0
        %5251 = vmatpush1.bf16.msra.mxu0 0
        %5252 = vmatprep.subr.bf16.mxu0 0
        %5253 = vmatpush1.bf16.msra.mxu0 0
        %5254 = vmatprep.mubr.bf16.mxu0 0
        %5255 = vmatmul.mubr.bf16.gmra.mrb[0].mxu0 %v5217
        %v5256 = vpop.f32.mrb[0].mxu0
        %v5257 = vadd.f32 0.0, %v5256
        %v5258 = vpop.f32.mrb[0].mxu0
        %v5259 = vpop.f32.mrb[0].mxu0
        %v5260 = vpop.f32.mrb[0].mxu0
        %5261 = vdwg.mxu0
        %v5270 = vunpack.c.l.b16 %v4783
        %v5271 = vunpack.c.l.b16 %v4784
        %v5272 = vunpack.c.l.b16 %v4785
        %v5273 = vunpack.c.l.b16 %v4786
        %v5274 = vunpack.c.l.b16 %v4787
        %v5275 = vunpack.c.l.b16 %v4788
        %v5276 = vunpack.c.l.b16 %v4789
        %v5277 = vunpack.c.l.b16 %v4790
        %v5278 = vrot.slane %v5271, 7
        %v5279 = vsel %vm3121, %v5278, %v5270
        %v5280 = vrot.slane %v5272, 6
        %v5281 = vsel %vm3124, %v5280, %v5279
        %v5282 = vrot.slane %v5273, 5
        %v5283 = vsel %vm3127, %v5282, %v5281
        %v5284 = vrot.slane %v5274, 4
        %v5285 = vsel %vm3130, %v5284, %v5283
        %v5286 = vrot.slane %v5275, 3
        %v5287 = vsel %vm3133, %v5286, %v5285
        %v5288 = vrot.slane %v5276, 2
        %v5289 = vsel %vm3136, %v5288, %v5287
        %v5290 = vrot.slane %v5277, 1
        %v5291 = vsel %vm3139, %v5290, %v5289
        %v5292 = vpack.c.b16 %v5291, %v5291
        %v5294 = vsel %vm3173, %v4733, 0
        %v5297 = vsel %vm4833, %v5292, 0
        %5299 = vmatprep.subr.bf16.mxu0 0
        %5300 = vmatpush1.bf16.msra.mxu0 %v5297
        %5301 = vmatprep.subr.bf16.mxu0 0
        %5302 = vmatpush1.bf16.msra.mxu0 0
        %5303 = vmatprep.subr.bf16.mxu0 0
        %5304 = vmatpush1.bf16.msra.mxu0 0
        %5305 = vmatprep.subr.bf16.mxu0 0
        %5306 = vmatpush1.bf16.msra.mxu0 0
        %5307 = vmatprep.subr.bf16.mxu0 0
        %5308 = vmatpush1.bf16.msra.mxu0 0
        %5309 = vmatprep.subr.bf16.mxu0 0
        %5310 = vmatpush1.bf16.msra.mxu0 0
        %5311 = vmatprep.subr.bf16.mxu0 0
        %5312 = vmatpush1.bf16.msra.mxu0 0
        %5313 = vmatprep.subr.bf16.mxu0 0
        %5314 = vmatpush1.bf16.msra.mxu0 0
        %5315 = vmatprep.subr.bf16.mxu0 0
        %5316 = vmatpush1.bf16.msra.mxu0 0
        %5317 = vmatprep.subr.bf16.mxu0 0
        %5318 = vmatpush1.bf16.msra.mxu0 0
        %5319 = vmatprep.subr.bf16.mxu0 0
        %5320 = vmatpush1.bf16.msra.mxu0 0
        %5321 = vmatprep.subr.bf16.mxu0 0
        %5322 = vmatpush1.bf16.msra.mxu0 0
        %5323 = vmatprep.subr.bf16.mxu0 0
        %5324 = vmatpush1.bf16.msra.mxu0 0
        %5325 = vmatprep.subr.bf16.mxu0 0
        %5326 = vmatpush1.bf16.msra.mxu0 0
        %5327 = vmatprep.subr.bf16.mxu0 0
        %5328 = vmatpush1.bf16.msra.mxu0 0
        %5329 = vmatprep.subr.bf16.mxu0 0
        %5330 = vmatpush1.bf16.msra.mxu0 0
        %5331 = vmatprep.mubr.bf16.mxu0 0
        %5332 = vmatmul.mubr.bf16.gmra.mrb[0].mxu0 %v5294
        %v5333 = vpop.f32.mrb[0].mxu0
        %v5334 = vadd.f32 0.0, %v5333
        %v5335 = vpop.f32.mrb[0].mxu0
        %v5336 = vpop.f32.mrb[0].mxu0
        %v5337 = vpop.f32.mrb[0].mxu0
        %5338 = vdwg.mxu0
        %v5347 = vunpack.c.l.b16 %v4791
        %v5348 = vunpack.c.l.b16 %v4792
        %v5349 = vunpack.c.l.b16 %v4793
        %v5350 = vunpack.c.l.b16 %v4794
        %v5351 = vunpack.c.l.b16 %v4795
        %v5352 = vunpack.c.l.b16 %v4796
        %v5353 = vunpack.c.l.b16 %v4797
        %v5354 = vunpack.c.l.b16 %v4798
        %v5355 = vrot.slane %v5348, 7
        %v5356 = vsel %vm3121, %v5355, %v5347
        %v5357 = vrot.slane %v5349, 6
        %v5358 = vsel %vm3124, %v5357, %v5356
        %v5359 = vrot.slane %v5350, 5
        %v5360 = vsel %vm3127, %v5359, %v5358
        %v5361 = vrot.slane %v5351, 4
        %v5362 = vsel %vm3130, %v5361, %v5360
        %v5363 = vrot.slane %v5352, 3
        %v5364 = vsel %vm3133, %v5363, %v5362
        %v5365 = vrot.slane %v5353, 2
        %v5366 = vsel %vm3136, %v5365, %v5364
        %v5367 = vrot.slane %v5354, 1
        %v5368 = vsel %vm3139, %v5367, %v5366
        %v5369 = vpack.c.b16 %v5368, %v5368
        %v5371 = vsel %vm3173, %v4734, 0
        %v5374 = vsel %vm4833, %v5369, 0
        %5376 = vmatprep.subr.bf16.mxu0 0
        %5377 = vmatpush1.bf16.msra.mxu0 %v5374
        %5378 = vmatprep.subr.bf16.mxu0 0
        %5379 = vmatpush1.bf16.msra.mxu0 0
        %5380 = vmatprep.subr.bf16.mxu0 0
        %5381 = vmatpush1.bf16.msra.mxu0 0
        %5382 = vmatprep.subr.bf16.mxu0 0
        %5383 = vmatpush1.bf16.msra.mxu0 0
        %5384 = vmatprep.subr.bf16.mxu0 0
        %5385 = vmatpush1.bf16.msra.mxu0 0
        %5386 = vmatprep.subr.bf16.mxu0 0
        %5387 = vmatpush1.bf16.msra.mxu0 0
        %5388 = vmatprep.subr.bf16.mxu0 0
        %5389 = vmatpush1.bf16.msra.mxu0 0
        %5390 = vmatprep.subr.bf16.mxu0 0
        %5391 = vmatpush1.bf16.msra.mxu0 0
        %5392 = vmatprep.subr.bf16.mxu0 0
        %5393 = vmatpush1.bf16.msra.mxu0 0
        %5394 = vmatprep.subr.bf16.mxu0 0
        %5395 = vmatpush1.bf16.msra.mxu0 0
        %5396 = vmatprep.subr.bf16.mxu0 0
        %5397 = vmatpush1.bf16.msra.mxu0 0
        %5398 = vmatprep.subr.bf16.mxu0 0
        %5399 = vmatpush1.bf16.msra.mxu0 0
        %5400 = vmatprep.subr.bf16.mxu0 0
        %5401 = vmatpush1.bf16.msra.mxu0 0
        %5402 = vmatprep.subr.bf16.mxu0 0
        %5403 = vmatpush1.bf16.msra.mxu0 0
        %5404 = vmatprep.subr.bf16.mxu0 0
        %5405 = vmatpush1.bf16.msra.mxu0 0
        %5406 = vmatprep.subr.bf16.mxu0 0
        %5407 = vmatpush1.bf16.msra.mxu0 0
        %5408 = vmatprep.mubr.bf16.mxu0 0
        %5409 = vmatmul.mubr.bf16.gmra.mrb[0].mxu0 %v5371
        %v5410 = vpop.f32.mrb[0].mxu0
        %v5411 = vadd.f32 0.0, %v5410
        %v5412 = vpop.f32.mrb[0].mxu0
        %v5413 = vpop.f32.mrb[0].mxu0
        %v5414 = vpop.f32.mrb[0].mxu0
        %5415 = vdwg.mxu0
        %5416 = vst.msk [vmem:[%s983] sm:$0xff] %vm3173, %v4872
        %5417 = vst.msk [vmem:[%s983 + $0x8] sm:$0xff] %vm3173, %v4949
        %5418 = vst.msk [vmem:[%s983 + $0x10] sm:$0xff] %vm3173, %v5026
        %5419 = vst.msk [vmem:[%s983 + $0x18] sm:$0xff] %vm3173, %v5103
        %5420 = vst.msk [vmem:[%s983 + $0x20] sm:$0xff] %vm3173, %v5180
        %5421 = vst.msk [vmem:[%s983 + $0x28] sm:$0xff] %vm3173, %v5257
        %5422 = vst.msk [vmem:[%s983 + $0x30] sm:$0xff] %vm3173, %v5334
        %5423 = vst.msk [vmem:[%s983 + $0x38] sm:$0xff] %vm3173, %v5411
        %5426 = vrot.lane.b32.xlu0 %v4949, 8
        %v5427 = vpop.permute.xlu0 %5426
        %5428 = vrot.lane.b32.xlu0 %v5257, 8
        %v5429 = vpop.permute.xlu0 %5428
        %5434 = vrot.lane.b32.xlu0 %v5026, 16
        %v5435 = vpop.permute.xlu0 %5434
        %5436 = vrot.lane.b32.xlu0 %v5334, 16
        %v5437 = vpop.permute.xlu0 %5436
        %5442 = vrot.lane.b32.xlu0 %v5103, 24
        %v5443 = vpop.permute.xlu0 %5442
        %5444 = vrot.lane.b32.xlu0 %v5411, 24
        %v5445 = vpop.permute.xlu0 %5444
        %v5448 = vsel %vm3173, %v4872, %v5427
        %v5449 = vsel %vm3173, %v5180, %v5429
        %vm5450 = vcmask 130048
        %v5451 = vsel %vm5450, %v5448, %v5435
        %v5452 = vsel %vm5450, %v5449, %v5437
        %vm5453 = vcmask 195584
        %v5454 = vsel %vm5453, %v5451, %v5443
        %v5455 = vsel %vm5453, %v5452, %v5445
        %v5456 = vld [vmem:[%s932] sm:$0xf]
        %v5457 = vld [vmem:[%s932 + $0x4] sm:$0xf]
        %v5458 = vld [vmem:[%s932 + $0x8] sm:$0xf]
        %v5459 = vld [vmem:[%s932 + $0xc] sm:$0xf]
        %v5460 = vpack.c.bf16 %v5455, %v5454
        %v5461 = vld [vmem:[%s935] sm:$0x1]
        %v5463 = vlaneseq
        %v5464 = vshrl.u32 %v5463, 7
        %v5465 = vsub.s32 0, %v5464
        %v5466 = vrot.slane %v5461, %v5465
        %v5472 = vunpack.c.l.b16 %v5456
        %v5473 = vunpack.c.l.b16 %v5457
        %v5474 = vunpack.c.l.b16 %v5458
        %v5475 = vunpack.c.l.b16 %v5459
        %v5476 = vpack.c.b16 %v5473, %v5472
        %v5477 = vpack.c.b16 %v5475, %v5474
        %v5481 = vsel %vm1078, %v5460, 0
        %5483 = vmatprep.subr.bf16.mxu0 0
        %5484 = vmatpush1.bf16.msra.mxu0 %v5476
        %5485 = vmatprep.subr.bf16.mxu0 0
        %5486 = vmatpush1.bf16.msra.mxu0 %v5477
        %5487 = vmatprep.subr.bf16.mxu0 0
        %5488 = vmatpush1.bf16.msra.mxu0 0
        %5489 = vmatprep.subr.bf16.mxu0 0
        %5490 = vmatpush1.bf16.msra.mxu0 0
        %5491 = vmatprep.subr.bf16.mxu0 0
        %5492 = vmatpush1.bf16.msra.mxu0 0
        %5493 = vmatprep.subr.bf16.mxu0 0
        %5494 = vmatpush1.bf16.msra.mxu0 0
        %5495 = vmatprep.subr.bf16.mxu0 0
        %5496 = vmatpush1.bf16.msra.mxu0 0
        %5497 = vmatprep.subr.bf16.mxu0 0
        %5498 = vmatpush1.bf16.msra.mxu0 0
        %5499 = vmatprep.subr.bf16.mxu0 0
        %5500 = vmatpush1.bf16.msra.mxu0 0
        %5501 = vmatprep.subr.bf16.mxu0 0
        %5502 = vmatpush1.bf16.msra.mxu0 0
        %5503 = vmatprep.subr.bf16.mxu0 0
        %5504 = vmatpush1.bf16.msra.mxu0 0
        %5505 = vmatprep.subr.bf16.mxu0 0
        %5506 = vmatpush1.bf16.msra.mxu0 0
        %5507 = vmatprep.subr.bf16.mxu0 0
        %5508 = vmatpush1.bf16.msra.mxu0 0
        %5509 = vmatprep.subr.bf16.mxu0 0
        %5510 = vmatpush1.bf16.msra.mxu0 0
        %5511 = vmatprep.subr.bf16.mxu0 0
        %5512 = vmatpush1.bf16.msra.mxu0 0
        %5513 = vmatprep.subr.bf16.mxu0 0
        %5514 = vmatpush1.bf16.msra.mxu0 0
        %5515 = vmatprep.mubr.bf16.mxu0 0
        %5516 = vmatmul.mubr.bf16.gmra.mrb[0].mxu0 %v5481
        %v5517 = vpop.f32.mrb[0].mxu0
        %v5518 = vadd.f32 %v5466, %v5517
        %v5519 = vpop.f32.mrb[0].mxu0
        %v5520 = vpop.f32.mrb[0].mxu0
        %v5521 = vadd.f32 %v5466, %v5520
        %v5522 = vpop.f32.mrb[0].mxu0
        %5523 = vdwg.mxu0
        %5524 = vst.msk [vmem:[%s993] sm:$0xff] %vm1078, %v5518
        %5525 = vst.msk [vmem:[%s993 + $0x8] sm:$0xff] %vm1078, %v5521
        %v5526 = vadd.f32 %v5518, %v1051
        %v5527 = vadd.f32 %v5521, %v1052
        %v5528 = vld [vmem:[%s938] sm:$0x1]
        %v5529 = vld [vmem:[%s941] sm:$0x1]
        %v5530 = vsel %vm1078, %v5526, 0.0
        %5531 = vadd.xlane.f32.xlu0 %v5530
        %v5532 = vpop.xlane.xlu0 %5531
        %v5533 = vsel %vm1078, %v5527, 0.0
        %5534 = vadd.xlane.f32.xlu0 %v5533
        %v5535 = vpop.xlane.xlu0 %5534
        %v5536 = vrcp.pop 32.0
        %v5537 = vmul.f32 %v5532, %v5536
        %v5538 = vmul.f32 %v5535, %v5536
        %v5539 = vsub.f32 %v5526, %v5537
        %v5540 = vsub.f32 %v5527, %v5538
        %v5541 = vmul.f32 %v5539, %v5539
        %v5542 = vmul.f32 %v5540, %v5540
        %v5543 = vsel %vm1078, %v5541, 0.0
        %5544 = vadd.xlane.f32.xlu0 %v5543
        %v5545 = vpop.xlane.xlu0 %5544
        %v5546 = vsel %vm1078, %v5542, 0.0
        %5547 = vadd.xlane.f32.xlu0 %v5546
        %v5548 = vpop.xlane.xlu0 %5547
        %v5549 = vmul.f32 %v5545, %v5536
        %v5550 = vmul.f32 %v5548, %v5536
        %v5551 = vadd.f32 %v5549, 1e-12
        %v5552 = vadd.f32 %v5550, 1e-12
        %v5553 = vrsqrt.pop %v5551
        %v5554 = vrsqrt.pop %v5552
        %v5555 = vmul.f32 %v5539, %v5553
        %v5556 = vmul.f32 %v5540, %v5554
        %v5558 = vlaneseq
        %v5559 = vshrl.u32 %v5558, 7
        %v5560 = vsub.s32 0, %v5559
        %v5561 = vrot.slane %v5528, %v5560
        %v5563 = vmul.f32 %v5555, %v5561
        %v5564 = vmul.f32 %v5556, %v5561
        %v5566 = vlaneseq
        %v5567 = vshrl.u32 %v5566, 7
        %v5568 = vsub.s32 0, %v5567
        %v5569 = vrot.slane %v5529, %v5568
        %v5571 = vadd.f32 %v5563, %v5569
        %v5572 = vadd.f32 %v5564, %v5569
        %5573 = vst.msk [vmem:[%s988] sm:$0xff] %vm1078, %v5571
        %5574 = vst.msk [vmem:[%s988 + $0x8] sm:$0xff] %vm1078, %v5572
        %v5575 = vld [vmem:[%s946] sm:$0xf]
        %v5576 = vld [vmem:[%s946 + $0x4] sm:$0xf]
        %v5577 = vld [vmem:[%s946 + $0x8] sm:$0xf]
        %v5578 = vld [vmem:[%s946 + $0xc] sm:$0xf]
        %v5579 = vpack.c.bf16 %v5572, %v5571
        %v5580 = vld [vmem:[%s949] sm:$0x1]
        %v5582 = vlaneseq
        %v5583 = vshrl.u32 %v5582, 7
        %v5584 = vsub.s32 0, %v5583
        %v5585 = vrot.slane %v5580, %v5584
        %v5591 = vunpack.c.l.b16 %v5575
        %v5592 = vunpack.c.l.b16 %v5576
        %v5593 = vunpack.c.l.b16 %v5577
        %v5594 = vunpack.c.l.b16 %v5578
        %v5595 = vpack.c.b16 %v5592, %v5591
        %v5596 = vpack.c.b16 %v5594, %v5593
        %v5600 = vsel %vm1078, %v5579, 0
        %5602 = vmatprep.subr.bf16.mxu0 0
        %5603 = vmatpush1.bf16.msra.mxu0 %v5595
        %5604 = vmatprep.subr.bf16.mxu0 0
        %5605 = vmatpush1.bf16.msra.mxu0 %v5596
        %5606 = vmatprep.subr.bf16.mxu0 0
        %5607 = vmatpush1.bf16.msra.mxu0 0
        %5608 = vmatprep.subr.bf16.mxu0 0
        %5609 = vmatpush1.bf16.msra.mxu0 0
        %5610 = vmatprep.subr.bf16.mxu0 0
        %5611 = vmatpush1.bf16.msra.mxu0 0
        %5612 = vmatprep.subr.bf16.mxu0 0
        %5613 = vmatpush1.bf16.msra.mxu0 0
        %5614 = vmatprep.subr.bf16.mxu0 0
        %5615 = vmatpush1.bf16.msra.mxu0 0
        %5616 = vmatprep.subr.bf16.mxu0 0
        %5617 = vmatpush1.bf16.msra.mxu0 0
        %5618 = vmatprep.subr.bf16.mxu0 0
        %5619 = vmatpush1.bf16.msra.mxu0 0
        %5620 = vmatprep.subr.bf16.mxu0 0
        %5621 = vmatpush1.bf16.msra.mxu0 0
        %5622 = vmatprep.subr.bf16.mxu0 0
        %5623 = vmatpush1.bf16.msra.mxu0 0
        %5624 = vmatprep.subr.bf16.mxu0 0
        %5625 = vmatpush1.bf16.msra.mxu0 0
        %5626 = vmatprep.subr.bf16.mxu0 0
        %5627 = vmatpush1.bf16.msra.mxu0 0
        %5628 = vmatprep.subr.bf16.mxu0 0
        %5629 = vmatpush1.bf16.msra.mxu0 0
        %5630 = vmatprep.subr.bf16.mxu0 0
        %5631 = vmatpush1.bf16.msra.mxu0 0
        %5632 = vmatprep.subr.bf16.mxu0 0
        %5633 = vmatpush1.bf16.msra.mxu0 0
        %5634 = vmatprep.mubr.bf16.mxu0 0
        %5635 = vmatmul.mubr.bf16.gmra.mrb[0].mxu0 %v5600
        %v5636 = vpop.f32.mrb[0].mxu0
        %v5637 = vadd.f32 %v5585, %v5636
        %v5638 = vpop.f32.mrb[0].mxu0
        %v5639 = vpop.f32.mrb[0].mxu0
        %v5640 = vadd.f32 %v5585, %v5639
        %v5641 = vpop.f32.mrb[0].mxu0
        %5642 = vdwg.mxu0
        %v5643 = vmul.f32 %v5637, 0.5
        %v5644 = vmul.f32 %v5640, 0.5
        %v5645 = vmul.f32 %v5637, 0.70710677
        %v5646 = vmul.f32 %v5640, 0.70710677
        %v5647 = verf.f32.pop %v5645
        %v5648 = verf.f32.pop %v5646
        %v5649 = vadd.f32 %v5647, 1.0
        %v5650 = vadd.f32 %v5648, 1.0
        %v5651 = vmul.f32 %v5643, %v5649
        %v5652 = vmul.f32 %v5644, %v5650
        %v5653 = vld [vmem:[%s954] sm:$0xf]
        %v5654 = vld [vmem:[%s954 + $0x4] sm:$0xf]
        %v5655 = vld [vmem:[%s954 + $0x8] sm:$0xf]
        %v5656 = vld [vmem:[%s954 + $0xc] sm:$0xf]
        %v5657 = vld [vmem:[%s954 + $0x10] sm:$0xf]
        %v5658 = vld [vmem:[%s954 + $0x14] sm:$0xf]
        %v5659 = vld [vmem:[%s954 + $0x18] sm:$0xf]
        %v5660 = vld [vmem:[%s954 + $0x1c] sm:$0xf]
        %v5661 = vpack.c.bf16 %v5652, %v5651
        %v5662 = vld [vmem:[%s957] sm:$0x1]
        %v5664 = vlaneseq
        %v5665 = vshrl.u32 %v5664, 7
        %v5666 = vsub.s32 0, %v5665
        %v5667 = vrot.slane %v5662, %v5666
        %v5677 = vunpack.c.l.b16 %v5653
        %v5678 = vunpack.c.l.b16 %v5654
        %v5679 = vunpack.c.l.b16 %v5655
        %v5680 = vunpack.c.l.b16 %v5656
        %v5681 = vunpack.c.l.b16 %v5657
        %v5682 = vunpack.c.l.b16 %v5658
        %v5683 = vunpack.c.l.b16 %v5659
        %v5684 = vunpack.c.l.b16 %v5660
        %v5685 = vpack.c.b16 %v5678, %v5677
        %v5686 = vpack.c.b16 %v5680, %v5679
        %v5687 = vpack.c.b16 %v5682, %v5681
        %v5688 = vpack.c.b16 %v5684, %v5683
        %vm5693 = vcmask 523264
        %v5695 = vsel %vm5693, %v5661, 0
        %5697 = vmatprep.subr.bf16.mxu0 0
        %5698 = vmatpush1.bf16.msra.mxu0 %v5685
        %5699 = vmatprep.subr.bf16.mxu0 0
        %5700 = vmatpush1.bf16.msra.mxu0 %v5686
        %5701 = vmatprep.subr.bf16.mxu0 0
        %5702 = vmatpush1.bf16.msra.mxu0 %v5687
        %5703 = vmatprep.subr.bf16.mxu0 0
        %5704 = vmatpush1.bf16.msra.mxu0 %v5688
        %5705 = vmatprep.subr.bf16.mxu0 0
        %5706 = vmatpush1.bf16.msra.mxu0 0
        %5707 = vmatprep.subr.bf16.mxu0 0
        %5708 = vmatpush1.bf16.msra.mxu0 0
        %5709 = vmatprep.subr.bf16.mxu0 0
        %5710 = vmatpush1.bf16.msra.mxu0 0
        %5711 = vmatprep.subr.bf16.mxu0 0
        %5712 = vmatpush1.bf16.msra.mxu0 0
        %5713 = vmatprep.subr.bf16.mxu0 0
        %5714 = vmatpush1.bf16.msra.mxu0 0
        %5715 = vmatprep.subr.bf16.mxu0 0
        %5716 = vmatpush1.bf16.msra.mxu0 0
        %5717 = vmatprep.subr.bf16.mxu0 0
        %5718 = vmatpush1.bf16.msra.mxu0 0
        %5719 = vmatprep.subr.bf16.mxu0 0
        %5720 = vmatpush1.bf16.msra.mxu0 0
        %5721 = vmatprep.subr.bf16.mxu0 0
        %5722 = vmatpush1.bf16.msra.mxu0 0
        %5723 = vmatprep.subr.bf16.mxu0 0
        %5724 = vmatpush1.bf16.msra.mxu0 0
        %5725 = vmatprep.subr.bf16.mxu0 0
        %5726 = vmatpush1.bf16.msra.mxu0 0
        %5727 = vmatprep.subr.bf16.mxu0 0
        %5728 = vmatpush1.bf16.msra.mxu0 0
        %5729 = vmatprep.mubr.bf16.mxu0 0
        %5730 = vmatmul.mubr.bf16.gmra.mrb[0].mxu0 %v5695
        %v5731 = vpop.f32.mrb[0].mxu0
        %v5732 = vadd.f32 %v5667, %v5731
        %v5733 = vpop.f32.mrb[0].mxu0
        %v5734 = vpop.f32.mrb[0].mxu0
        %v5735 = vadd.f32 %v5667, %v5734
        %v5736 = vpop.f32.mrb[0].mxu0
        %5737 = vdwg.mxu0
        %v5738 = vadd.f32 %v5732, %v5571
        %v5739 = vadd.f32 %v5735, %v5572
        %v5740 = vld [vmem:[%s960] sm:$0x1]
        %v5741 = vld [vmem:[%s963] sm:$0x1]
        %v5742 = vsel %vm1078, %v5738, 0.0
        %5743 = vadd.xlane.f32.xlu0 %v5742
        %v5744 = vpop.xlane.xlu0 %5743
        %v5745 = vsel %vm1078, %v5739, 0.0
        %5746 = vadd.xlane.f32.xlu0 %v5745
        %v5747 = vpop.xlane.xlu0 %5746
        %v5748 = vmul.f32 %v5744, %v5536
        %v5749 = vmul.f32 %v5747, %v5536
        %v5750 = vsub.f32 %v5738, %v5748
        %v5751 = vsub.f32 %v5739, %v5749
        %v5752 = vmul.f32 %v5750, %v5750
        %v5753 = vmul.f32 %v5751, %v5751
        %v5754 = vsel %vm1078, %v5752, 0.0
        %5755 = vadd.xlane.f32.xlu0 %v5754
        %v5756 = vpop.xlane.xlu0 %5755
        %v5757 = vsel %vm1078, %v5753, 0.0
        %5758 = vadd.xlane.f32.xlu0 %v5757
        %v5759 = vpop.xlane.xlu0 %5758
        %v5760 = vmul.f32 %v5756, %v5536
        %v5761 = vmul.f32 %v5759, %v5536
        %v5762 = vadd.f32 %v5760, 1e-12
        %v5763 = vadd.f32 %v5761, 1e-12
        %v5764 = vrsqrt.pop %v5762
        %v5765 = vrsqrt.pop %v5763
        %v5766 = vmul.f32 %v5750, %v5764
        %v5767 = vmul.f32 %v5751, %v5765
        %v5769 = vlaneseq
        %v5770 = vshrl.u32 %v5769, 7
        %v5771 = vsub.s32 0, %v5770
        %v5772 = vrot.slane %v5740, %v5771
        %v5774 = vmul.f32 %v5766, %v5772
        %v5775 = vmul.f32 %v5767, %v5772
        %v5777 = vlaneseq
        %v5778 = vshrl.u32 %v5777, 7
        %v5779 = vsub.s32 0, %v5778
        %v5780 = vrot.slane %v5741, %v5779
        %v5782 = vadd.f32 %v5774, %v5780
        %v5783 = vadd.f32 %v5775, %v5780
        %5784 = vst.msk [vmem:[%s968] sm:$0xff] %vm1078, %v5782
        %5785 = vst.msk [vmem:[%s968 + $0x8] sm:$0xff] %vm1078, %v5783
        %5786 = vst.msk [vmem:[#allocation2] sm:$0xff] %vm1078, %v5782
        %5787 = vst.msk [vmem:[#allocation2 + $0x8] sm:$0xff] %vm1078, %v5783
        %p5788 = scmp.eq.s32.totalorder %s39, 1
        // Predicated region
        $region97: #{bert_model_forward.1} parent=91 // pred_check
          %p5789 = pneg %p5788
        $region98: #{bert_model_forward.1} parent=91 // pred_check_branch
          %5791 = sbr.rel (%p5789) target = $region100
        $region99: #{bert_model_forward.1} parent=91 // pred_region
          %v5792 = vld [vmem:[%s16] sm:$0xf]
          %v5793 = vld [vmem:[%s16 + $0x4] sm:$0xf]
          %v5794 = vld [vmem:[%s16 + $0x8] sm:$0xf]
          %v5795 = vld [vmem:[%s16 + $0xc] sm:$0xf]
          %v5796 = vpack.c.bf16 %v5782, %v5782
          %v5797 = vpack.c.bf16 %v5783, %v5783
          %v5798 = vld [vmem:[%s17] sm:$0x1]
          %v5800 = vlaneseq
          %v5801 = vshrl.u32 %v5800, 7
          %v5802 = vsub.s32 0, %v5801
          %v5803 = vrot.slane %v5798, %v5802
          %v5807 = vunpack.c.l.b16 %v5796
          %v5808 = vunpack.c.l.b16 %v5797
          %v5809 = vrot.slane %v5808, 7
          %v5810 = vsel %vm3121, %v5809, %v5807
          %v5811 = vpack.c.b16 %v5810, %v5810
          %v5816 = vunpack.c.l.b16 %v5792
          %v5817 = vunpack.c.l.b16 %v5793
          %v5818 = vunpack.c.l.b16 %v5794
          %v5819 = vunpack.c.l.b16 %v5795
          %v5820 = vpack.c.b16 %v5817, %v5816
          %v5821 = vpack.c.b16 %v5819, %v5818
          %v5825 = vsel %vm1078, %v5811, 0
          %5827 = vmatprep.subr.bf16.mxu0 0
          %5828 = vmatpush1.bf16.msra.mxu0 %v5820
          %5829 = vmatprep.subr.bf16.mxu0 0
          %5830 = vmatpush1.bf16.msra.mxu0 %v5821
          %5831 = vmatprep.subr.bf16.mxu0 0
          %5832 = vmatpush1.bf16.msra.mxu0 0
          %5833 = vmatprep.subr.bf16.mxu0 0
          %5834 = vmatpush1.bf16.msra.mxu0 0
          %5835 = vmatprep.subr.bf16.mxu0 0
          %5836 = vmatpush1.bf16.msra.mxu0 0
          %5837 = vmatprep.subr.bf16.mxu0 0
          %5838 = vmatpush1.bf16.msra.mxu0 0
          %5839 = vmatprep.subr.bf16.mxu0 0
          %5840 = vmatpush1.bf16.msra.mxu0 0
          %5841 = vmatprep.subr.bf16.mxu0 0
          %5842 = vmatpush1.bf16.msra.mxu0 0
          %5843 = vmatprep.subr.bf16.mxu0 0
          %5844 = vmatpush1.bf16.msra.mxu0 0
          %5845 = vmatprep.subr.bf16.mxu0 0
          %5846 = vmatpush1.bf16.msra.mxu0 0
          %5847 = vmatprep.subr.bf16.mxu0 0
          %5848 = vmatpush1.bf16.msra.mxu0 0
          %5849 = vmatprep.subr.bf16.mxu0 0
          %5850 = vmatpush1.bf16.msra.mxu0 0
          %5851 = vmatprep.subr.bf16.mxu0 0
          %5852 = vmatpush1.bf16.msra.mxu0 0
          %5853 = vmatprep.subr.bf16.mxu0 0
          %5854 = vmatpush1.bf16.msra.mxu0 0
          %5855 = vmatprep.subr.bf16.mxu0 0
          %5856 = vmatpush1.bf16.msra.mxu0 0
          %5857 = vmatprep.subr.bf16.mxu0 0
          %5858 = vmatpush1.bf16.msra.mxu0 0
          %5859 = vmatprep.mubr.bf16.mxu0 0
          %5860 = vmatmul.mubr.bf16.gmra.mrb[0].mxu0 %v5825
          %v5861 = vpop.f32.mrb[0].mxu0
          %v5862 = vadd.f32 %v5803, %v5861
          %v5863 = vpop.f32.mrb[0].mxu0
          %v5864 = vpop.f32.mrb[0].mxu0
          %v5865 = vpop.f32.mrb[0].mxu0
          %5866 = vdwg.mxu0
          %v5867 = vtanh.pop %v5862
          %vm5868 = vcmask 254976
          %5869 = vst.msk [vmem:[#allocation5] sm:$0x3] %vm5868, %v5867
        $region100: #{bert_model_forward.1} parent=91 // pred_fallthru
          _
        %p5870 = scmp.lt.s32.totalorder %s39, 1
        %s5871 = scalar_select %p5870, %s39, 1
        %s5872 = smul.addr %s5871, 2
        %s5873 = smul.addr %s5872, 8
        %s5874 = scalar_lea.vmem %s19, %s5873
        %p5875 = scmp.lt.s32.totalorder %s39, 1
        %s5876 = scalar_select %p5875, %s39, 1
        %s5877 = smul.addr %s5876, 8
        %s5878 = smul.addr %s5877, 8
        %s5879 = scalar_lea.vmem %s20, %s5878
        %p5880 = scmp.lt.s32.totalorder %s39, 1
        %s5881 = scalar_select %p5880, %s39, 1
        %s5882 = smul.addr %s5881, 8
        %s5883 = smul.addr %s5882, 8
        %s5884 = scalar_lea.vmem %s21, %s5883
        %p5885 = scmp.lt.s32.totalorder %s39, 1
        %s5886 = scalar_select %p5885, %s39, 1
        %s5887 = smul.addr %s5886, 8
        %s5888 = smul.addr %s5887, 8
        %s5889 = scalar_lea.vmem %s22, %s5888
        %p5890 = scmp.lt.s32.totalorder %s39, 1
        %s5891 = scalar_select %p5890, %s39, 1
        %s5892 = smul.addr %s5891, 2
        %s5893 = smul.addr %s5892, 8
        %s5894 = scalar_lea.vmem %s23, %s5893
        %p5895 = scmp.lt.s32.totalorder %s39, 1
        %s5896 = scalar_select %p5895, %s39, 1
        %s5897 = smul.addr %s5896, 2
        %s5898 = smul.addr %s5897, 8
        %s5899 = scalar_lea.vmem %s24, %s5898
        // Predicated region
        $region101: #{bert_model_forward.1} parent=91 // pred_check
          %p5900 = pneg %p490
        $region102: #{bert_model_forward.1} parent=91 // pred_check_branch
          %5902 = sbr.rel (%p5900) target = $region104
        $region103: #{bert_model_forward.1} parent=91 // pred_region
          %s5904 = ssub.s32 256, 256
          %5905 = vsyncadd [#allocation4], %s5904
          %s5906 = sshll.u32 [#allocation3], 4
          %s5907 = int_to_ptr.vmem [resolvable:$true] %s5906
          %5912 = dma.vmem_to_hbm [thread:$0]  %s5907, 256, %s18, [#allocation4], 128, 128, 8
        $region104: #{bert_model_forward.1} parent=91 // pred_fallthru
          _
        // Predicated region
        $region105: #{bert_model_forward.1} parent=91 // pred_check
          %p5913 = pneg %p516
        $region106: #{bert_model_forward.1} parent=91 // pred_check_branch
          %5915 = sbr.rel (%p5913) target = $region108
        $region107: #{bert_model_forward.1} parent=91 // pred_region
          _
        $region108: #{bert_model_forward.1} parent=91 // pred_fallthru
          _
        // Predicated region
        $region109: #{bert_model_forward.1} parent=91 // pred_check
          %p5916 = pneg %p542
        $region110: #{bert_model_forward.1} parent=91 // pred_check_branch
          %5918 = sbr.rel (%p5916) target = $region112
        $region111: #{bert_model_forward.1} parent=91 // pred_region
          _
        $region112: #{bert_model_forward.1} parent=91 // pred_fallthru
          _
        // Predicated region
        $region113: #{bert_model_forward.1} parent=91 // pred_check
          %p5919 = pneg %p568
        $region114: #{bert_model_forward.1} parent=91 // pred_check_branch
          %5921 = sbr.rel (%p5919) target = $region116
        $region115: #{bert_model_forward.1} parent=91 // pred_region
          _
        $region116: #{bert_model_forward.1} parent=91 // pred_fallthru
          _
        // Predicated region
        $region117: #{bert_model_forward.1} parent=91 // pred_check
          %p5922 = pneg %p594
        $region118: #{bert_model_forward.1} parent=91 // pred_check_branch
          %5924 = sbr.rel (%p5922) target = $region120
        $region119: #{bert_model_forward.1} parent=91 // pred_region
          _
        $region120: #{bert_model_forward.1} parent=91 // pred_fallthru
          _
        // Predicated region
        $region121: #{bert_model_forward.1} parent=91 // pred_check
          %p5925 = pneg %p620
        $region122: #{bert_model_forward.1} parent=91 // pred_check_branch
          %5927 = sbr.rel (%p5925) target = $region124
        $region123: #{bert_model_forward.1} parent=91 // pred_region
          _
        $region124: #{bert_model_forward.1} parent=91 // pred_fallthru
          _
        // Predicated region
        $region125: #{bert_model_forward.1} parent=91 // pred_check
          %p5928 = pneg %p646
        $region126: #{bert_model_forward.1} parent=91 // pred_check_branch
          %5930 = sbr.rel (%p5928) target = $region128
        $region127: #{bert_model_forward.1} parent=91 // pred_region
          _
        $region128: #{bert_model_forward.1} parent=91 // pred_fallthru
          _
        // Predicated region
        $region129: #{bert_model_forward.1} parent=91 // pred_check
          %p5931 = pneg %p667
        $region130: #{bert_model_forward.1} parent=91 // pred_check_branch
          %5933 = sbr.rel (%p5931) target = $region132
        $region131: #{bert_model_forward.1} parent=91 // pred_region
          %s5935 = ssub.s32 32, 32
          %5936 = vsyncadd [#allocation6], %s5935
          %s5938 = sshll.u32 [#allocation5], 4
          %s5939 = int_to_ptr.vmem [resolvable:$true] %s5938
          %5941 = dma.vmem_to_hbm [thread:$0]  %s5939, 32, %s25, [#allocation6]
        $region132: #{bert_model_forward.1} parent=91 // pred_fallthru
          _
        // Predicated region
        $region133: #{bert_model_forward.1} parent=91 // pred_check
          %p5942 = pneg %p490
        $region134: #{bert_model_forward.1} parent=91 // pred_check_branch
          %5944 = sbr.rel (%p5942) target = $region136
        $region135: #{bert_model_forward.1} parent=91 // pred_region
          %5945 = dma.done [#allocation4], 256
        $region136: #{bert_model_forward.1} parent=91 // pred_fallthru
          _
        // Predicated region
        $region137: #{bert_model_forward.1} parent=91 // pred_check
          %p5946 = pneg %p667
        $region138: #{bert_model_forward.1} parent=91 // pred_check_branch
          %5948 = sbr.rel (%p5946) target = $region140
        $region139: #{bert_model_forward.1} parent=91 // pred_region
          %5949 = dma.done [#allocation6], 32
        $region140: #{bert_model_forward.1} parent=91 // pred_fallthru
          _
      $region92: #{bert_model_forward.1} parent=5 // pred_fallthru
        _
      %p5950 = scmp.le.s32.totalorder 2, %s34
      // Predicated region
      $region141: #{bert_model_forward.1} parent=5 // pred_check
        %p5951 = pneg %p5950
      $region142: #{bert_model_forward.1} parent=5 // pred_check_branch
        %5953 = sbr.rel (%p5951) target = $region144
      $region143: #{bert_model_forward.1} parent=5 // pred_region
        %s5954 = ssub.s32 %s34, 2
        // Predicated region
        $region145: #{bert_model_forward.1} parent=143 // pred_check
          %p5955 = pneg %p522
        $region146: #{bert_model_forward.1} parent=143 // pred_check_branch
          %5957 = sbr.rel (%p5955) target = $region148
        $region147: #{bert_model_forward.1} parent=143 // pred_region
          %p5958 = scmp.lt.s32.totalorder %s40, 1
          %s5959 = scalar_select %p5958, %s40, 1
          %s5960 = smul.addr %s5959, 2
          %s5961 = smul.addr %s5960, 8
          %s5962 = scalar_lea.vmem %s19, %s5961
        $region148: #{bert_model_forward.1} parent=143 // pred_fallthru
          _
        // Predicated region
        $region149: #{bert_model_forward.1} parent=143 // pred_check
          %p5963 = pneg %p548
        $region150: #{bert_model_forward.1} parent=143 // pred_check_branch
          %5965 = sbr.rel (%p5963) target = $region152
        $region151: #{bert_model_forward.1} parent=143 // pred_region
          %p5966 = scmp.lt.s32.totalorder %s40, 1
          %s5967 = scalar_select %p5966, %s40, 1
          %s5968 = smul.addr %s5967, 8
          %s5969 = smul.addr %s5968, 8
          %s5970 = scalar_lea.vmem %s20, %s5969
        $region152: #{bert_model_forward.1} parent=143 // pred_fallthru
          _
        // Predicated region
        $region153: #{bert_model_forward.1} parent=143 // pred_check
          %p5971 = pneg %p574
        $region154: #{bert_model_forward.1} parent=143 // pred_check_branch
          %5973 = sbr.rel (%p5971) target = $region156
        $region155: #{bert_model_forward.1} parent=143 // pred_region
          %p5974 = scmp.lt.s32.totalorder %s40, 1
          %s5975 = scalar_select %p5974, %s40, 1
          %s5976 = smul.addr %s5975, 8
          %s5977 = smul.addr %s5976, 8
          %s5978 = scalar_lea.vmem %s21, %s5977
        $region156: #{bert_model_forward.1} parent=143 // pred_fallthru
          _
        // Predicated region
        $region157: #{bert_model_forward.1} parent=143 // pred_check
          %p5979 = pneg %p600
        $region158: #{bert_model_forward.1} parent=143 // pred_check_branch
          %5981 = sbr.rel (%p5979) target = $region160
        $region159: #{bert_model_forward.1} parent=143 // pred_region
          %p5982 = scmp.lt.s32.totalorder %s40, 1
          %s5983 = scalar_select %p5982, %s40, 1
          %s5984 = smul.addr %s5983, 8
          %s5985 = smul.addr %s5984, 8
          %s5986 = scalar_lea.vmem %s22, %s5985
        $region160: #{bert_model_forward.1} parent=143 // pred_fallthru
          _
        // Predicated region
        $region161: #{bert_model_forward.1} parent=143 // pred_check
          %p5987 = pneg %p626
        $region162: #{bert_model_forward.1} parent=143 // pred_check_branch
          %5989 = sbr.rel (%p5987) target = $region164
        $region163: #{bert_model_forward.1} parent=143 // pred_region
          %p5990 = scmp.lt.s32.totalorder %s40, 1
          %s5991 = scalar_select %p5990, %s40, 1
          %s5992 = smul.addr %s5991, 2
          %s5993 = smul.addr %s5992, 8
          %s5994 = scalar_lea.vmem %s23, %s5993
        $region164: #{bert_model_forward.1} parent=143 // pred_fallthru
          _
        // Predicated region
        $region165: #{bert_model_forward.1} parent=143 // pred_check
          %p5995 = pneg %p652
        $region166: #{bert_model_forward.1} parent=143 // pred_check_branch
          %5997 = sbr.rel (%p5995) target = $region168
        $region167: #{bert_model_forward.1} parent=143 // pred_region
          %p5998 = scmp.lt.s32.totalorder %s40, 1
          %s5999 = scalar_select %p5998, %s40, 1
          %s6000 = smul.addr %s5999, 2
          %s6001 = smul.addr %s6000, 8
          %s6002 = scalar_lea.vmem %s24, %s6001
        $region168: #{bert_model_forward.1} parent=143 // pred_fallthru
          _
      $region144: #{bert_model_forward.1} parent=5 // pred_fallthru
        _
    $region6: #{bert_model_forward.1} parent=1 // loop_footer
      %s38 = sadd.s32 1, %s34
    $region7: #{bert_model_forward.1} parent=1 // loop_footer_branch
      %33 = sbr.rel target = $region3
    $region8: #{bert_model_forward.1} parent=1 // loop_exit
      _
    %6003 = vsyncpa [#allocation4], 1
    %s6004 = scalar_lea.sflag [#allocation4], 1
    %6005 = vsyncpa %s6004, 1
    %6006 = vsyncpa [#allocation6], 1

</llo_original>
